<compile_context>
chip_gen: v6e
topology: v6e:2x2x1
jax: 0.10.0
libtpu: 0.0.40
codegen_flags: <defaults>
</compile_context>

<pallas_src>
import numpy as np
import jax
import jax.numpy as jnp
from jax.experimental import pallas as pl
from jax.experimental.pallas import tpu as pltpu

# ---- fixed hyper-parameters of the PyTorch module (defaults) ----
FS = 128
T = 100                                   # input_samples: Linear(600,1) forces 6*T == 600
N_CHANS = 8
FPB = 8                                   # filters per branch
SCALES_TIME = (500, 250, 125)
SCALES1 = [int(s * FS / 1000) for s in SCALES_TIME]   # [64, 32, 16]
SCALES2 = [k // 2 for k in SCALES1]                   # [32, 16, 8]
K1 = max(SCALES1)                         # 64  (fused block-1 tap length)
K2 = max(SCALES2)                         # 32  (fused block-2 tap length)
K3 = 32                                   # b3_u1 kernel
K4 = 16                                   # b3_u2 kernel
NF1 = FPB * len(SCALES1)                  # 24  fused conv-1 filters
C1 = 2 * NF1                              # 48  channels after grouped conv
C2 = FPB * len(SCALES1)                   # 24  channels after inception block 2
C3 = C2 // 2                              # 12
C4 = C2 // 4                              # 6
BN_EPS = 1e-5


# ----------------------------- kernel helpers ------------------------------

def _elu(y):
    # ELU(alpha=1); exp only on the clamped negative side (no inf in dead branch).
    return jnp.where(y > 0.0, y, jnp.exp(jnp.minimum(y, 0.0)) - 1.0)


def _conv_same_cf(x_cf, w_mat, scale, bias, k):
    """'same'-padded temporal conv + folded BN + ELU, channels-first layout.

    x_cf : (Cin, T) activations (channels on sublanes, time on lanes)
    w_mat: (Cout, k*Cin) flat weights, row index = tap*Cin + cin
    scale, bias: (Cout, 1) folded BatchNorm affine
    """
    cin, tlen = x_cf.shape
    left = (k - 1) // 2
    right = k - 1 - left
    xp = jnp.concatenate(
        [jnp.zeros((cin, left), x_cf.dtype), x_cf,
         jnp.zeros((cin, right), x_cf.dtype)], axis=1)                   # (Cin, T+k-1)
    im = jnp.concatenate([xp[:, j:j + tlen] for j in range(k)], axis=0)  # (k*Cin, T)
    y = jnp.dot(w_mat, im, preferred_element_type=jnp.float32)           # (Cout, T)
    return _elu(y * scale + bias)


# ----------------------------- fused kernel --------------------------------

def _eeg_fused_kernel(x_ref, t1_ref, s1_ref, b1_ref, w2_ref, s2_ref, b2_ref,
                      w3_ref, s3_ref, b3_ref, w4_ref, s4_ref, b4_ref,
                      w5_ref, s5_ref, b5_ref, dw_ref, db_ref,
                      emb_ref, logit_ref):
    x = x_ref[...]                                                      # (8, 100)

    # inception block 1: temporal convs of all 3 branches = one Toeplitz matmul
    y1 = jnp.dot(x, t1_ref[...], preferred_element_type=jnp.float32)    # (8, 24*100)
    a1 = _elu(y1 * s1_ref[...] + b1_ref[...])                           # BN1 folded

    # grouped (n_chans, 1) conv + BN + ELU -> channels-first (48, 100)
    rows0, rows1 = [], []
    for f in range(NF1):
        af = a1[:, f * T:(f + 1) * T]                                   # (8, 100)
        rows0.append(jnp.sum(af * w2_ref[:, f:f + 1], axis=0, keepdims=True))
        rows1.append(jnp.sum(af * w2_ref[:, NF1 + f:NF1 + f + 1],
                             axis=0, keepdims=True))
    b1cf = jnp.concatenate(rows0 + rows1, axis=0)                       # (48, 100)
    b1cf = _elu(b1cf * s2_ref[...] + b2_ref[...])

    # inception block 2 (3 branches fused into one K=32 conv)
    z = _conv_same_cf(b1cf, w3_ref[...], s3_ref[...], b3_ref[...], K2)  # (24, 100)
    # output block
    z = _conv_same_cf(z, w4_ref[...], s4_ref[...], b4_ref[...], K3)     # (12, 100)
    z = _conv_same_cf(z, w5_ref[...], s5_ref[...], b5_ref[...], K4)     # (6, 100)

    # epilogue: embeddings (PyTorch flatten order = channel-major) + dense(600->1)
    emb_ref[...] = z
    r = jnp.sum(z * dw_ref[...], axis=1, keepdims=True)                 # (6, 1)
    r = jnp.sum(r, axis=0, keepdims=True)                               # (1, 1)
    logit_ref[...] = r + db_ref[...]


# ----------------------------- wrapper --------------------------------------

def eeg_inception_forward(x, prep):
    """x: (N, 1, n_chans, T) NCHW.  Returns (embeddings (N, 600), logits (N, 1))."""
    n = x.shape[0]
    xc = x[:, 0, :, :]                                                  # (N, 8, 100)

    def whole(shape):
        return pl.BlockSpec(shape, lambda i: (0,) * len(shape))

    emb, logit = pl.pallas_call(
        _eeg_fused_kernel,
        out_shape=(jax.ShapeDtypeStruct((n, C4, T), jnp.float32),
                   jax.ShapeDtypeStruct((n, 1, 1), jnp.float32)),
        grid=(n,),
        in_specs=[
            pl.BlockSpec((None, N_CHANS, T), lambda i: (i, 0, 0)),      # x
            whole((T, NF1 * T)),                                        # Toeplitz conv1
            whole((1, NF1 * T)), whole((1, NF1 * T)),                   # BN1 scale/bias (tiled)
            whole((N_CHANS, C1)),                                       # grouped conv weights
            whole((C1, 1)), whole((C1, 1)),                             # BN2 scale/bias
            whole((C2, K2 * C1)),                                       # block-2 fused weights
            whole((C2, 1)), whole((C2, 1)),
            whole((C3, K3 * C2)),                                       # b3_u1 weights
            whole((C3, 1)), whole((C3, 1)),
            whole((C4, K4 * C3)),                                       # b3_u2 weights
            whole((C4, 1)), whole((C4, 1)),
            whole((C4, T)),                                             # dense weight (6, 100)
            whole((1, 1)),                                              # dense bias
        ],
        out_specs=(pl.BlockSpec((None, C4, T), lambda i: (i, 0, 0)),
                   pl.BlockSpec((None, 1, 1), lambda i: (i, 0, 0))),
        compiler_params=pltpu.CompilerParams(
            dimension_semantics=("parallel",),
            vmem_limit_bytes=32 * 1024 * 1024),
    )(xc, *prep)
    return emb.reshape(n, C4 * T), logit.reshape(n, 1)


# ----------------------------- parameters -----------------------------------

def init_params(key):
    """Random parameters in PyTorch layout (eval-mode BatchNorm statistics)."""
    ks = iter(jax.random.split(key, 80))

    def bn(c):
        return dict(
            gamma=1.0 + 0.1 * jax.random.normal(next(ks), (c,), jnp.float32),
            beta=0.1 * jax.random.normal(next(ks), (c,), jnp.float32),
            mean=0.1 * jax.random.normal(next(ks), (c,), jnp.float32),
            var=1.0 + 0.1 * jax.random.uniform(next(ks), (c,), jnp.float32))

    p = {'b1': [], 'b2': []}
    for k in SCALES1:
        p['b1'].append(dict(
            w1=0.1 * jax.random.normal(next(ks), (FPB, 1, 1, k), jnp.float32),
            bias1=0.1 * jax.random.normal(next(ks), (FPB,), jnp.float32),
            bn1=bn(FPB),
            w2=0.1 * jax.random.normal(next(ks), (2 * FPB, 1, N_CHANS, 1), jnp.float32),
            bn2=bn(2 * FPB)))
    for k in SCALES2:
        p['b2'].append(dict(
            w=0.1 * jax.random.normal(next(ks), (FPB, C1, 1, k), jnp.float32),
            bn=bn(FPB)))
    p['b3u1'] = dict(w=0.1 * jax.random.normal(next(ks), (C3, C2, 1, K3), jnp.float32),
                     bn=bn(C3))
    p['b3u2'] = dict(w=0.1 * jax.random.normal(next(ks), (C4, C3, 1, K4), jnp.float32),
                     bn=bn(C4))
    p['dense'] = dict(w=0.1 * jax.random.normal(next(ks), (1, C4 * T), jnp.float32),
                      b=0.1 * jax.random.normal(next(ks), (1,), jnp.float32))
    return p


def _fold_bn_np(bnd, conv_bias=None, eps=BN_EPS):
    gamma = np.asarray(bnd['gamma'], np.float32)
    beta = np.asarray(bnd['beta'], np.float32)
    mean = np.asarray(bnd['mean'], np.float32)
    var = np.asarray(bnd['var'], np.float32)
    scale = gamma / np.sqrt(var + eps)
    cb = np.zeros_like(gamma) if conv_bias is None else np.asarray(conv_bias, np.float32)
    bias = (cb - mean) * scale + beta
    return scale, bias


def prepare_params(p):
    """One-time, host-side constant folding: BN folding, branch fusion,
    Toeplitz-ification of conv1 and 2D flattening of all conv weights."""
    # -- block 1 temporal conv (Cin=1), branches fused along Cout --
    w1c = np.zeros((K1, NF1), np.float32)
    s1 = np.zeros((NF1,), np.float32)
    bb1 = np.zeros((NF1,), np.float32)
    for br, k in enumerate(SCALES1):
        unit = p['b1'][br]
        off = (K1 - 1) // 2 - (k - 1) // 2      # align per-branch 'same' padding
        w1 = np.asarray(unit['w1'], np.float32)[:, 0, 0, :]            # (8, k)
        w1c[off:off + k, br * FPB:(br + 1) * FPB] = w1.T
        sc, bi = _fold_bn_np(unit['bn1'], conv_bias=unit['bias1'])
        s1[br * FPB:(br + 1) * FPB] = sc
        bb1[br * FPB:(br + 1) * FPB] = bi
    # Toeplitz: out[c, f*T+t] = sum_p x[c, p] * T1[p, f*T+t]  ('same' pad absorbed)
    jj = np.arange(T)[:, None] - np.arange(T)[None, :] + (K1 - 1) // 2
    valid = (jj >= 0) & (jj < K1)
    t1 = (w1c[np.clip(jj, 0, K1 - 1), :] * valid[:, :, None]).astype(np.float32)
    t1 = np.transpose(t1, (0, 2, 1)).reshape(T, NF1 * T)               # (p, f*T+t)
    s1_t = np.repeat(s1, T)[None, :].astype(np.float32)                # (1, 24*T)
    b1_t = np.repeat(bb1, T)[None, :].astype(np.float32)

    # -- grouped (n_chans,1) conv + BN2; our row order r = m*24 + f --
    w2 = np.zeros((N_CHANS, C1), np.float32)
    s2 = np.zeros((C1,), np.float32)
    b2 = np.zeros((C1,), np.float32)
    for br in range(len(SCALES1)):
        unit = p['b1'][br]
        w2_pt = np.asarray(unit['w2'], np.float32)[:, 0, :, 0]         # (16, 8)
        sc, bi = _fold_bn_np(unit['bn2'])
        for g in range(FPB):
            f = br * FPB + g
            for m in range(2):
                r = m * NF1 + f
                w2[:, r] = w2_pt[2 * g + m]
                s2[r] = sc[2 * g + m]
                b2[r] = bi[2 * g + m]
    # our row r  <->  PyTorch b1_out channel 16*br + 2*g + m
    perm = np.array([16 * ((r % NF1) // FPB) + 2 * ((r % NF1) % FPB) + (r // NF1)
                     for r in range(C1)], np.int64)

    # -- inception block 2: branches fused to Cout=24, common K=32 --
    w3 = np.zeros((K2, C1, C2), np.float32)                            # [tap, cin(pt), cout]
    s3 = np.zeros((C2,), np.float32)
    b3 = np.zeros((C2,), np.float32)
    for br, k in enumerate(SCALES2):
        unit = p['b2'][br]
        off = (K2 - 1) // 2 - (k - 1) // 2
        wpt = np.asarray(unit['w'], np.float32)[:, :, 0, :]            # (8, 48, k)
        w3[off:off + k, :, br * FPB:(br + 1) * FPB] = np.transpose(wpt, (2, 1, 0))
        sc, bi = _fold_bn_np(unit['bn'])
        s3[br * FPB:(br + 1) * FPB] = sc
        b3[br * FPB:(br + 1) * FPB] = bi
    w3 = w3[:, perm, :]                                                # re-index cin to our order
    w3_mat = np.transpose(w3, (2, 0, 1)).reshape(C2, K2 * C1)          # [cout, tap*48+cin]

    # -- output block convs --
    def conv_mat(wpt):
        w = np.asarray(wpt, np.float32)[:, :, 0, :]                    # (cout, cin, k)
        return np.transpose(w, (0, 2, 1)).reshape(w.shape[0], -1)      # [cout, tap*cin+ci]

    w4_mat = conv_mat(p['b3u1']['w'])
    s4, b4 = _fold_bn_np(p['b3u1']['bn'])
    w5_mat = conv_mat(p['b3u2']['w'])
    s5, b5 = _fold_bn_np(p['b3u2']['bn'])

    # -- dense, re-indexed to the (channel, time) embedding layout --
    dw = np.asarray(p['dense']['w'], np.float32).reshape(C4, T)
    db = np.asarray(p['dense']['b'], np.float32).reshape(1, 1)

    col = lambda v: np.asarray(v, np.float32).reshape(-1, 1)
    prep = (t1, s1_t, b1_t,
            w2, col(s2), col(b2),
            w3_mat, col(s3), col(b3),
            w4_mat, col(s4), col(b4),
            w5_mat, col(s5), col(b5),
            dw, db)
    return tuple(jnp.asarray(a) for a in prep)


# ----------------------------- main ------------------------------------------

if __name__ == "__main__":
    key = jax.random.PRNGKey(0)
    kx, kp = jax.random.split(key)
    N = 2
    x = jax.random.normal(kx, (N, 1, N_CHANS, T), dtype=jnp.float32)

    params = init_params(kp)
    prep = prepare_params(params)          # one-time host-side constant folding

    fwd = jax.jit(eeg_inception_forward)
    emb, logits = fwd(x, prep)
    jax.block_until_ready((emb, logits))

    assert emb.shape == (N, C4 * T), emb.shape          # (2, 600)
    assert logits.shape == (N, 1), logits.shape
    assert bool(jnp.all(jnp.isfinite(emb))) and bool(jnp.all(jnp.isfinite(logits)))
    print("KERNEL_OK")
</pallas_src>

<mosaic_0001>
module attributes {stable_mosaic.version = 11 : i64} {
  func.func @_eeg_fused_kernel(%arg0: i32, %arg1: memref<1x8x100xf32, #tpu.memory_space<vmem>>, %arg2: memref<100x2400xf32, #tpu.memory_space<vmem>>, %arg3: memref<1x2400xf32, #tpu.memory_space<vmem>>, %arg4: memref<1x2400xf32, #tpu.memory_space<vmem>>, %arg5: memref<8x48xf32, #tpu.memory_space<vmem>>, %arg6: memref<48x1xf32, #tpu.memory_space<vmem>>, %arg7: memref<48x1xf32, #tpu.memory_space<vmem>>, %arg8: memref<24x1536xf32, #tpu.memory_space<vmem>>, %arg9: memref<24x1xf32, #tpu.memory_space<vmem>>, %arg10: memref<24x1xf32, #tpu.memory_space<vmem>>, %arg11: memref<12x768xf32, #tpu.memory_space<vmem>>, %arg12: memref<12x1xf32, #tpu.memory_space<vmem>>, %arg13: memref<12x1xf32, #tpu.memory_space<vmem>>, %arg14: memref<6x192xf32, #tpu.memory_space<vmem>>, %arg15: memref<6x1xf32, #tpu.memory_space<vmem>>, %arg16: memref<6x1xf32, #tpu.memory_space<vmem>>, %arg17: memref<6x100xf32, #tpu.memory_space<vmem>>, %arg18: memref<1x1xf32, #tpu.memory_space<vmem>>, %arg19: memref<1x6x100xf32, #tpu.memory_space<vmem>>, %arg20: memref<1x1x1xf32, #tpu.memory_space<vmem>>) attributes {dimension_semantics = [#tpu.dimension_semantics<parallel>], iteration_bounds = array<i64: 2>, scalar_prefetch = 0 : i64, scratch_operands = 0 : i64, tpu.core_type = #tpu.core_type<tc>, window_params = [{transform_indices = @transform_0, window_bounds = array<i64: 1, 8, 100>}, {pipeline_mode = #tpu.pipeline_mode<synchronous>, transform_indices = @transform_1, window_bounds = array<i64: 100, 2400>}, {pipeline_mode = #tpu.pipeline_mode<synchronous>, transform_indices = @transform_2, window_bounds = array<i64: 1, 2400>}, {pipeline_mode = #tpu.pipeline_mode<synchronous>, transform_indices = @transform_3, window_bounds = array<i64: 1, 2400>}, {pipeline_mode = #tpu.pipeline_mode<synchronous>, transform_indices = @transform_4, window_bounds = array<i64: 8, 48>}, {pipeline_mode = #tpu.pipeline_mode<synchronous>, transform_indices = @transform_5, window_bounds = array<i64: 48, 1>}, {pipeline_mode = #tpu.pipeline_mode<synchronous>, transform_indices = @transform_6, window_bounds = array<i64: 48, 1>}, {pipeline_mode = #tpu.pipeline_mode<synchronous>, transform_indices = @transform_7, window_bounds = array<i64: 24, 1536>}, {pipeline_mode = #tpu.pipeline_mode<synchronous>, transform_indices = @transform_8, window_bounds = array<i64: 24, 1>}, {pipeline_mode = #tpu.pipeline_mode<synchronous>, transform_indices = @transform_9, window_bounds = array<i64: 24, 1>}, {pipeline_mode = #tpu.pipeline_mode<synchronous>, transform_indices = @transform_10, window_bounds = array<i64: 12, 768>}, {pipeline_mode = #tpu.pipeline_mode<synchronous>, transform_indices = @transform_11, window_bounds = array<i64: 12, 1>}, {pipeline_mode = #tpu.pipeline_mode<synchronous>, transform_indices = @transform_12, window_bounds = array<i64: 12, 1>}, {pipeline_mode = #tpu.pipeline_mode<synchronous>, transform_indices = @transform_13, window_bounds = array<i64: 6, 192>}, {pipeline_mode = #tpu.pipeline_mode<synchronous>, transform_indices = @transform_14, window_bounds = array<i64: 6, 1>}, {pipeline_mode = #tpu.pipeline_mode<synchronous>, transform_indices = @transform_15, window_bounds = array<i64: 6, 1>}, {pipeline_mode = #tpu.pipeline_mode<synchronous>, transform_indices = @transform_16, window_bounds = array<i64: 6, 100>}, {pipeline_mode = #tpu.pipeline_mode<synchronous>, transform_indices = @transform_17, window_bounds = array<i64: 1, 1>}, {transform_indices = @transform_18, window_bounds = array<i64: 1, 6, 100>}, {transform_indices = @transform_19, window_bounds = array<i64: 1, 1, 1>}]} {
    %c0 = arith.constant 0 : index
    %c0_0 = arith.constant 0 : index
    %c0_1 = arith.constant 0 : index
    %0 = vector.load %arg1[%c0, %c0_0, %c0_1] : memref<1x8x100xf32, #tpu.memory_space<vmem>>, vector<1x8x100xf32>
    %1 = vector.shape_cast %0 : vector<1x8x100xf32> to vector<8x100xf32>
    %c0_2 = arith.constant 0 : index
    %c0_3 = arith.constant 0 : index
    %2 = vector.load %arg2[%c0_2, %c0_3] : memref<100x2400xf32, #tpu.memory_space<vmem>>, vector<100x2400xf32>
    %cst = arith.constant dense<0.000000e+00> : vector<8x2400xf32>
    %3 = tpu.matmul %1, %2, %cst {dimension_numbers = #tpu.dot_dimension_numbers<[1], [0], [0], [1], [0, 0, 1, 1], [], []>} : vector<8x100xf32>, vector<100x2400xf32>, vector<8x2400xf32> -> vector<8x2400xf32>
    %c0_4 = arith.constant 0 : index
    %c0_5 = arith.constant 0 : index
    %4 = vector.load %arg3[%c0_4, %c0_5] : memref<1x2400xf32, #tpu.memory_space<vmem>>, vector<1x2400xf32>
    %5 = vector.broadcast %4 : vector<1x2400xf32> to vector<8x2400xf32>
    %6 = arith.mulf %3, %5 : vector<8x2400xf32>
    %c0_6 = arith.constant 0 : index
    %c0_7 = arith.constant 0 : index
    %7 = vector.load %arg4[%c0_6, %c0_7] : memref<1x2400xf32, #tpu.memory_space<vmem>>, vector<1x2400xf32>
    %8 = vector.broadcast %7 : vector<1x2400xf32> to vector<8x2400xf32>
    %9 = arith.addf %6, %8 : vector<8x2400xf32>
    %cst_8 = arith.constant 0.000000e+00 : f32
    %10 = vector.broadcast %cst_8 : f32 to vector<8x2400xf32>
    %11 = arith.cmpf ogt, %9, %10 : vector<8x2400xf32>
    %cst_9 = arith.constant 0.000000e+00 : f32
    %12 = vector.broadcast %cst_9 : f32 to vector<8x2400xf32>
    %13 = arith.minimumf %9, %12 : vector<8x2400xf32>
    %14 = math.exp %13 : vector<8x2400xf32>
    %cst_10 = arith.constant 1.000000e+00 : f32
    %15 = vector.broadcast %cst_10 : f32 to vector<8x2400xf32>
    %16 = arith.subf %14, %15 : vector<8x2400xf32>
    %17 = arith.select %11, %9, %16 : vector<8x2400xi1>, vector<8x2400xf32>
    %18 = vector.extract_strided_slice %17 {offsets = [0, 0], sizes = [8, 100], strides = [1, 1]} : vector<8x2400xf32> to vector<8x100xf32>
    %c0_11 = arith.constant 0 : index
    %c0_12 = arith.constant 0 : index
    %19 = vector.load %arg5[%c0_11, %c0_12] : memref<8x48xf32, #tpu.memory_space<vmem>>, vector<8x1xf32>
    %20 = vector.broadcast %19 : vector<8x1xf32> to vector<8x100xf32>
    %21 = arith.mulf %18, %20 : vector<8x100xf32>
    %cst_13 = arith.constant dense<0.000000e+00> : vector<100xf32>
    %22 = vector.multi_reduction <add>, %21, %cst_13 [0] : vector<8x100xf32> to vector<100xf32>
    %23 = vector.shape_cast %22 : vector<100xf32> to vector<1x100xf32>
    %c0_14 = arith.constant 0 : index
    %c24 = arith.constant 24 : index
    %24 = vector.load %arg5[%c0_14, %c24] : memref<8x48xf32, #tpu.memory_space<vmem>>, vector<8x1xf32>
    %25 = vector.broadcast %24 : vector<8x1xf32> to vector<8x100xf32>
    %26 = arith.mulf %18, %25 : vector<8x100xf32>
    %cst_15 = arith.constant dense<0.000000e+00> : vector<100xf32>
    %27 = vector.multi_reduction <add>, %26, %cst_15 [0] : vector<8x100xf32> to vector<100xf32>
    %28 = vector.shape_cast %27 : vector<100xf32> to vector<1x100xf32>
    %29 = vector.extract_strided_slice %17 {offsets = [0, 100], sizes = [8, 100], strides = [1, 1]} : vector<8x2400xf32> to vector<8x100xf32>
    %c0_16 = arith.constant 0 : index
    %c1 = arith.constant 1 : index
    %30 = vector.load %arg5[%c0_16, %c1] : memref<8x48xf32, #tpu.memory_space<vmem>>, vector<8x1xf32>
    %31 = vector.broadcast %30 : vector<8x1xf32> to vector<8x100xf32>
    %32 = arith.mulf %29, %31 : vector<8x100xf32>
    %cst_17 = arith.constant dense<0.000000e+00> : vector<100xf32>
    %33 = vector.multi_reduction <add>, %32, %cst_17 [0] : vector<8x100xf32> to vector<100xf32>
    %34 = vector.shape_cast %33 : vector<100xf32> to vector<1x100xf32>
    %c0_18 = arith.constant 0 : index
    %c25 = arith.constant 25 : index
    %35 = vector.load %arg5[%c0_18, %c25] : memref<8x48xf32, #tpu.memory_space<vmem>>, vector<8x1xf32>
    %36 = vector.broadcast %35 : vector<8x1xf32> to vector<8x100xf32>
    %37 = arith.mulf %29, %36 : vector<8x100xf32>
    %cst_19 = arith.constant dense<0.000000e+00> : vector<100xf32>
    %38 = vector.multi_reduction <add>, %37, %cst_19 [0] : vector<8x100xf32> to vector<100xf32>
    %39 = vector.shape_cast %38 : vector<100xf32> to vector<1x100xf32>
    %40 = vector.extract_strided_slice %17 {offsets = [0, 200], sizes = [8, 100], strides = [1, 1]} : vector<8x2400xf32> to vector<8x100xf32>
    %c0_20 = arith.constant 0 : index
    %c2 = arith.constant 2 : index
    %41 = vector.load %arg5[%c0_20, %c2] : memref<8x48xf32, #tpu.memory_space<vmem>>, vector<8x1xf32>
    %42 = vector.broadcast %41 : vector<8x1xf32> to vector<8x100xf32>
    %43 = arith.mulf %40, %42 : vector<8x100xf32>
    %cst_21 = arith.constant dense<0.000000e+00> : vector<100xf32>
    %44 = vector.multi_reduction <add>, %43, %cst_21 [0] : vector<8x100xf32> to vector<100xf32>
    %45 = vector.shape_cast %44 : vector<100xf32> to vector<1x100xf32>
    %c0_22 = arith.constant 0 : index
    %c26 = arith.constant 26 : index
    %46 = vector.load %arg5[%c0_22, %c26] : memref<8x48xf32, #tpu.memory_space<vmem>>, vector<8x1xf32>
    %47 = vector.broadcast %46 : vector<8x1xf32> to vector<8x100xf32>
    %48 = arith.mulf %40, %47 : vector<8x100xf32>
    %cst_23 = arith.constant dense<0.000000e+00> : vector<100xf32>
    %49 = vector.multi_reduction <add>, %48, %cst_23 [0] : vector<8x100xf32> to vector<100xf32>
    %50 = vector.shape_cast %49 : vector<100xf32> to vector<1x100xf32>
    %51 = vector.extract_strided_slice %17 {offsets = [0, 300], sizes = [8, 100], strides = [1, 1]} : vector<8x2400xf32> to vector<8x100xf32>
    %c0_24 = arith.constant 0 : index
    %c3 = arith.constant 3 : index
    %52 = vector.load %arg5[%c0_24, %c3] : memref<8x48xf32, #tpu.memory_space<vmem>>, vector<8x1xf32>
    %53 = vector.broadcast %52 : vector<8x1xf32> to vector<8x100xf32>
    %54 = arith.mulf %51, %53 : vector<8x100xf32>
    %cst_25 = arith.constant dense<0.000000e+00> : vector<100xf32>
    %55 = vector.multi_reduction <add>, %54, %cst_25 [0] : vector<8x100xf32> to vector<100xf32>
    %56 = vector.shape_cast %55 : vector<100xf32> to vector<1x100xf32>
    %c0_26 = arith.constant 0 : index
    %c27 = arith.constant 27 : index
    %57 = vector.load %arg5[%c0_26, %c27] : memref<8x48xf32, #tpu.memory_space<vmem>>, vector<8x1xf32>
    %58 = vector.broadcast %57 : vector<8x1xf32> to vector<8x100xf32>
    %59 = arith.mulf %51, %58 : vector<8x100xf32>
    %cst_27 = arith.constant dense<0.000000e+00> : vector<100xf32>
    %60 = vector.multi_reduction <add>, %59, %cst_27 [0] : vector<8x100xf32> to vector<100xf32>
    %61 = vector.shape_cast %60 : vector<100xf32> to vector<1x100xf32>
    %62 = vector.extract_strided_slice %17 {offsets = [0, 400], sizes = [8, 100], strides = [1, 1]} : vector<8x2400xf32> to vector<8x100xf32>
    %c0_28 = arith.constant 0 : index
    %c4 = arith.constant 4 : index
    %63 = vector.load %arg5[%c0_28, %c4] : memref<8x48xf32, #tpu.memory_space<vmem>>, vector<8x1xf32>
    %64 = vector.broadcast %63 : vector<8x1xf32> to vector<8x100xf32>
    %65 = arith.mulf %62, %64 : vector<8x100xf32>
    %cst_29 = arith.constant dense<0.000000e+00> : vector<100xf32>
    %66 = vector.multi_reduction <add>, %65, %cst_29 [0] : vector<8x100xf32> to vector<100xf32>
    %67 = vector.shape_cast %66 : vector<100xf32> to vector<1x100xf32>
    %c0_30 = arith.constant 0 : index
    %c28 = arith.constant 28 : index
    %68 = vector.load %arg5[%c0_30, %c28] : memref<8x48xf32, #tpu.memory_space<vmem>>, vector<8x1xf32>
    %69 = vector.broadcast %68 : vector<8x1xf32> to vector<8x100xf32>
    %70 = arith.mulf %62, %69 : vector<8x100xf32>
    %cst_31 = arith.constant dense<0.000000e+00> : vector<100xf32>
    %71 = vector.multi_reduction <add>, %70, %cst_31 [0] : vector<8x100xf32> to vector<100xf32>
    %72 = vector.shape_cast %71 : vector<100xf32> to vector<1x100xf32>
    %73 = vector.extract_strided_slice %17 {offsets = [0, 500], sizes = [8, 100], strides = [1, 1]} : vector<8x2400xf32> to vector<8x100xf32>
    %c0_32 = arith.constant 0 : index
    %c5 = arith.constant 5 : index
    %74 = vector.load %arg5[%c0_32, %c5] : memref<8x48xf32, #tpu.memory_space<vmem>>, vector<8x1xf32>
    %75 = vector.broadcast %74 : vector<8x1xf32> to vector<8x100xf32>
    %76 = arith.mulf %73, %75 : vector<8x100xf32>
    %cst_33 = arith.constant dense<0.000000e+00> : vector<100xf32>
    %77 = vector.multi_reduction <add>, %76, %cst_33 [0] : vector<8x100xf32> to vector<100xf32>
    %78 = vector.shape_cast %77 : vector<100xf32> to vector<1x100xf32>
    %c0_34 = arith.constant 0 : index
    %c29 = arith.constant 29 : index
    %79 = vector.load %arg5[%c0_34, %c29] : memref<8x48xf32, #tpu.memory_space<vmem>>, vector<8x1xf32>
    %80 = vector.broadcast %79 : vector<8x1xf32> to vector<8x100xf32>
    %81 = arith.mulf %73, %80 : vector<8x100xf32>
    %cst_35 = arith.constant dense<0.000000e+00> : vector<100xf32>
    %82 = vector.multi_reduction <add>, %81, %cst_35 [0] : vector<8x100xf32> to vector<100xf32>
    %83 = vector.shape_cast %82 : vector<100xf32> to vector<1x100xf32>
    %84 = vector.extract_strided_slice %17 {offsets = [0, 600], sizes = [8, 100], strides = [1, 1]} : vector<8x2400xf32> to vector<8x100xf32>
    %c0_36 = arith.constant 0 : index
    %c6 = arith.constant 6 : index
    %85 = vector.load %arg5[%c0_36, %c6] : memref<8x48xf32, #tpu.memory_space<vmem>>, vector<8x1xf32>
    %86 = vector.broadcast %85 : vector<8x1xf32> to vector<8x100xf32>
    %87 = arith.mulf %84, %86 : vector<8x100xf32>
    %cst_37 = arith.constant dense<0.000000e+00> : vector<100xf32>
    %88 = vector.multi_reduction <add>, %87, %cst_37 [0] : vector<8x100xf32> to vector<100xf32>
    %89 = vector.shape_cast %88 : vector<100xf32> to vector<1x100xf32>
    %c0_38 = arith.constant 0 : index
    %c30 = arith.constant 30 : index
    %90 = vector.load %arg5[%c0_38, %c30] : memref<8x48xf32, #tpu.memory_space<vmem>>, vector<8x1xf32>
    %91 = vector.broadcast %90 : vector<8x1xf32> to vector<8x100xf32>
    %92 = arith.mulf %84, %91 : vector<8x100xf32>
    %cst_39 = arith.constant dense<0.000000e+00> : vector<100xf32>
    %93 = vector.multi_reduction <add>, %92, %cst_39 [0] : vector<8x100xf32> to vector<100xf32>
    %94 = vector.shape_cast %93 : vector<100xf32> to vector<1x100xf32>
    %95 = vector.extract_strided_slice %17 {offsets = [0, 700], sizes = [8, 100], strides = [1, 1]} : vector<8x2400xf32> to vector<8x100xf32>
    %c0_40 = arith.constant 0 : index
    %c7 = arith.constant 7 : index
    %96 = vector.load %arg5[%c0_40, %c7] : memref<8x48xf32, #tpu.memory_space<vmem>>, vector<8x1xf32>
    %97 = vector.broadcast %96 : vector<8x1xf32> to vector<8x100xf32>
    %98 = arith.mulf %95, %97 : vector<8x100xf32>
    %cst_41 = arith.constant dense<0.000000e+00> : vector<100xf32>
    %99 = vector.multi_reduction <add>, %98, %cst_41 [0] : vector<8x100xf32> to vector<100xf32>
    %100 = vector.shape_cast %99 : vector<100xf32> to vector<1x100xf32>
    %c0_42 = arith.constant 0 : index
    %c31 = arith.constant 31 : index
    %101 = vector.load %arg5[%c0_42, %c31] : memref<8x48xf32, #tpu.memory_space<vmem>>, vector<8x1xf32>
    %102 = vector.broadcast %101 : vector<8x1xf32> to vector<8x100xf32>
    %103 = arith.mulf %95, %102 : vector<8x100xf32>
    %cst_43 = arith.constant dense<0.000000e+00> : vector<100xf32>
    %104 = vector.multi_reduction <add>, %103, %cst_43 [0] : vector<8x100xf32> to vector<100xf32>
    %105 = vector.shape_cast %104 : vector<100xf32> to vector<1x100xf32>
    %106 = vector.extract_strided_slice %17 {offsets = [0, 800], sizes = [8, 100], strides = [1, 1]} : vector<8x2400xf32> to vector<8x100xf32>
    %c0_44 = arith.constant 0 : index
    %c8 = arith.constant 8 : index
    %107 = vector.load %arg5[%c0_44, %c8] : memref<8x48xf32, #tpu.memory_space<vmem>>, vector<8x1xf32>
    %108 = vector.broadcast %107 : vector<8x1xf32> to vector<8x100xf32>
    %109 = arith.mulf %106, %108 : vector<8x100xf32>
    %cst_45 = arith.constant dense<0.000000e+00> : vector<100xf32>
    %110 = vector.multi_reduction <add>, %109, %cst_45 [0] : vector<8x100xf32> to vector<100xf32>
    %111 = vector.shape_cast %110 : vector<100xf32> to vector<1x100xf32>
    %c0_46 = arith.constant 0 : index
    %c32 = arith.constant 32 : index
    %112 = vector.load %arg5[%c0_46, %c32] : memref<8x48xf32, #tpu.memory_space<vmem>>, vector<8x1xf32>
    %113 = vector.broadcast %112 : vector<8x1xf32> to vector<8x100xf32>
    %114 = arith.mulf %106, %113 : vector<8x100xf32>
    %cst_47 = arith.constant dense<0.000000e+00> : vector<100xf32>
    %115 = vector.multi_reduction <add>, %114, %cst_47 [0] : vector<8x100xf32> to vector<100xf32>
    %116 = vector.shape_cast %115 : vector<100xf32> to vector<1x100xf32>
    %117 = vector.extract_strided_slice %17 {offsets = [0, 900], sizes = [8, 100], strides = [1, 1]} : vector<8x2400xf32> to vector<8x100xf32>
    %c0_48 = arith.constant 0 : index
    %c9 = arith.constant 9 : index
    %118 = vector.load %arg5[%c0_48, %c9] : memref<8x48xf32, #tpu.memory_space<vmem>>, vector<8x1xf32>
    %119 = vector.broadcast %118 : vector<8x1xf32> to vector<8x100xf32>
    %120 = arith.mulf %117, %119 : vector<8x100xf32>
    %cst_49 = arith.constant dense<0.000000e+00> : vector<100xf32>
    %121 = vector.multi_reduction <add>, %120, %cst_49 [0] : vector<8x100xf32> to vector<100xf32>
    %122 = vector.shape_cast %121 : vector<100xf32> to vector<1x100xf32>
    %c0_50 = arith.constant 0 : index
    %c33 = arith.constant 33 : index
    %123 = vector.load %arg5[%c0_50, %c33] : memref<8x48xf32, #tpu.memory_space<vmem>>, vector<8x1xf32>
    %124 = vector.broadcast %123 : vector<8x1xf32> to vector<8x100xf32>
    %125 = arith.mulf %117, %124 : vector<8x100xf32>
    %cst_51 = arith.constant dense<0.000000e+00> : vector<100xf32>
    %126 = vector.multi_reduction <add>, %125, %cst_51 [0] : vector<8x100xf32> to vector<100xf32>
    %127 = vector.shape_cast %126 : vector<100xf32> to vector<1x100xf32>
    %128 = vector.extract_strided_slice %17 {offsets = [0, 1000], sizes = [8, 100], strides = [1, 1]} : vector<8x2400xf32> to vector<8x100xf32>
    %c0_52 = arith.constant 0 : index
    %c10 = arith.constant 10 : index
    %129 = vector.load %arg5[%c0_52, %c10] : memref<8x48xf32, #tpu.memory_space<vmem>>, vector<8x1xf32>
    %130 = vector.broadcast %129 : vector<8x1xf32> to vector<8x100xf32>
    %131 = arith.mulf %128, %130 : vector<8x100xf32>
    %cst_53 = arith.constant dense<0.000000e+00> : vector<100xf32>
    %132 = vector.multi_reduction <add>, %131, %cst_53 [0] : vector<8x100xf32> to vector<100xf32>
    %133 = vector.shape_cast %132 : vector<100xf32> to vector<1x100xf32>
    %c0_54 = arith.constant 0 : index
    %c34 = arith.constant 34 : index
    %134 = vector.load %arg5[%c0_54, %c34] : memref<8x48xf32, #tpu.memory_space<vmem>>, vector<8x1xf32>
    %135 = vector.broadcast %134 : vector<8x1xf32> to vector<8x100xf32>
    %136 = arith.mulf %128, %135 : vector<8x100xf32>
    %cst_55 = arith.constant dense<0.000000e+00> : vector<100xf32>
    %137 = vector.multi_reduction <add>, %136, %cst_55 [0] : vector<8x100xf32> to vector<100xf32>
    %138 = vector.shape_cast %137 : vector<100xf32> to vector<1x100xf32>
    %139 = vector.extract_strided_slice %17 {offsets = [0, 1100], sizes = [8, 100], strides = [1, 1]} : vector<8x2400xf32> to vector<8x100xf32>
    %c0_56 = arith.constant 0 : index
    %c11 = arith.constant 11 : index
    %140 = vector.load %arg5[%c0_56, %c11] : memref<8x48xf32, #tpu.memory_space<vmem>>, vector<8x1xf32>
    %141 = vector.broadcast %140 : vector<8x1xf32> to vector<8x100xf32>
    %142 = arith.mulf %139, %141 : vector<8x100xf32>
    %cst_57 = arith.constant dense<0.000000e+00> : vector<100xf32>
    %143 = vector.multi_reduction <add>, %142, %cst_57 [0] : vector<8x100xf32> to vector<100xf32>
    %144 = vector.shape_cast %143 : vector<100xf32> to vector<1x100xf32>
    %c0_58 = arith.constant 0 : index
    %c35 = arith.constant 35 : index
    %145 = vector.load %arg5[%c0_58, %c35] : memref<8x48xf32, #tpu.memory_space<vmem>>, vector<8x1xf32>
    %146 = vector.broadcast %145 : vector<8x1xf32> to vector<8x100xf32>
    %147 = arith.mulf %139, %146 : vector<8x100xf32>
    %cst_59 = arith.constant dense<0.000000e+00> : vector<100xf32>
    %148 = vector.multi_reduction <add>, %147, %cst_59 [0] : vector<8x100xf32> to vector<100xf32>
    %149 = vector.shape_cast %148 : vector<100xf32> to vector<1x100xf32>
    %150 = vector.extract_strided_slice %17 {offsets = [0, 1200], sizes = [8, 100], strides = [1, 1]} : vector<8x2400xf32> to vector<8x100xf32>
    %c0_60 = arith.constant 0 : index
    %c12 = arith.constant 12 : index
    %151 = vector.load %arg5[%c0_60, %c12] : memref<8x48xf32, #tpu.memory_space<vmem>>, vector<8x1xf32>
    %152 = vector.broadcast %151 : vector<8x1xf32> to vector<8x100xf32>
    %153 = arith.mulf %150, %152 : vector<8x100xf32>
    %cst_61 = arith.constant dense<0.000000e+00> : vector<100xf32>
    %154 = vector.multi_reduction <add>, %153, %cst_61 [0] : vector<8x100xf32> to vector<100xf32>
    %155 = vector.shape_cast %154 : vector<100xf32> to vector<1x100xf32>
    %c0_62 = arith.constant 0 : index
    %c36 = arith.constant 36 : index
    %156 = vector.load %arg5[%c0_62, %c36] : memref<8x48xf32, #tpu.memory_space<vmem>>, vector<8x1xf32>
    %157 = vector.broadcast %156 : vector<8x1xf32> to vector<8x100xf32>
    %158 = arith.mulf %150, %157 : vector<8x100xf32>
    %cst_63 = arith.constant dense<0.000000e+00> : vector<100xf32>
    %159 = vector.multi_reduction <add>, %158, %cst_63 [0] : vector<8x100xf32> to vector<100xf32>
    %160 = vector.shape_cast %159 : vector<100xf32> to vector<1x100xf32>
    %161 = vector.extract_strided_slice %17 {offsets = [0, 1300], sizes = [8, 100], strides = [1, 1]} : vector<8x2400xf32> to vector<8x100xf32>
    %c0_64 = arith.constant 0 : index
    %c13 = arith.constant 13 : index
    %162 = vector.load %arg5[%c0_64, %c13] : memref<8x48xf32, #tpu.memory_space<vmem>>, vector<8x1xf32>
    %163 = vector.broadcast %162 : vector<8x1xf32> to vector<8x100xf32>
    %164 = arith.mulf %161, %163 : vector<8x100xf32>
    %cst_65 = arith.constant dense<0.000000e+00> : vector<100xf32>
    %165 = vector.multi_reduction <add>, %164, %cst_65 [0] : vector<8x100xf32> to vector<100xf32>
    %166 = vector.shape_cast %165 : vector<100xf32> to vector<1x100xf32>
    %c0_66 = arith.constant 0 : index
    %c37 = arith.constant 37 : index
    %167 = vector.load %arg5[%c0_66, %c37] : memref<8x48xf32, #tpu.memory_space<vmem>>, vector<8x1xf32>
    %168 = vector.broadcast %167 : vector<8x1xf32> to vector<8x100xf32>
    %169 = arith.mulf %161, %168 : vector<8x100xf32>
    %cst_67 = arith.constant dense<0.000000e+00> : vector<100xf32>
    %170 = vector.multi_reduction <add>, %169, %cst_67 [0] : vector<8x100xf32> to vector<100xf32>
    %171 = vector.shape_cast %170 : vector<100xf32> to vector<1x100xf32>
    %172 = vector.extract_strided_slice %17 {offsets = [0, 1400], sizes = [8, 100], strides = [1, 1]} : vector<8x2400xf32> to vector<8x100xf32>
    %c0_68 = arith.constant 0 : index
    %c14 = arith.constant 14 : index
    %173 = vector.load %arg5[%c0_68, %c14] : memref<8x48xf32, #tpu.memory_space<vmem>>, vector<8x1xf32>
    %174 = vector.broadcast %173 : vector<8x1xf32> to vector<8x100xf32>
    %175 = arith.mulf %172, %174 : vector<8x100xf32>
    %cst_69 = arith.constant dense<0.000000e+00> : vector<100xf32>
    %176 = vector.multi_reduction <add>, %175, %cst_69 [0] : vector<8x100xf32> to vector<100xf32>
    %177 = vector.shape_cast %176 : vector<100xf32> to vector<1x100xf32>
    %c0_70 = arith.constant 0 : index
    %c38 = arith.constant 38 : index
    %178 = vector.load %arg5[%c0_70, %c38] : memref<8x48xf32, #tpu.memory_space<vmem>>, vector<8x1xf32>
    %179 = vector.broadcast %178 : vector<8x1xf32> to vector<8x100xf32>
    %180 = arith.mulf %172, %179 : vector<8x100xf32>
    %cst_71 = arith.constant dense<0.000000e+00> : vector<100xf32>
    %181 = vector.multi_reduction <add>, %180, %cst_71 [0] : vector<8x100xf32> to vector<100xf32>
    %182 = vector.shape_cast %181 : vector<100xf32> to vector<1x100xf32>
    %183 = vector.extract_strided_slice %17 {offsets = [0, 1500], sizes = [8, 100], strides = [1, 1]} : vector<8x2400xf32> to vector<8x100xf32>
    %c0_72 = arith.constant 0 : index
    %c15 = arith.constant 15 : index
    %184 = vector.load %arg5[%c0_72, %c15] : memref<8x48xf32, #tpu.memory_space<vmem>>, vector<8x1xf32>
    %185 = vector.broadcast %184 : vector<8x1xf32> to vector<8x100xf32>
    %186 = arith.mulf %183, %185 : vector<8x100xf32>
    %cst_73 = arith.constant dense<0.000000e+00> : vector<100xf32>
    %187 = vector.multi_reduction <add>, %186, %cst_73 [0] : vector<8x100xf32> to vector<100xf32>
    %188 = vector.shape_cast %187 : vector<100xf32> to vector<1x100xf32>
    %c0_74 = arith.constant 0 : index
    %c39 = arith.constant 39 : index
    %189 = vector.load %arg5[%c0_74, %c39] : memref<8x48xf32, #tpu.memory_space<vmem>>, vector<8x1xf32>
    %190 = vector.broadcast %189 : vector<8x1xf32> to vector<8x100xf32>
    %191 = arith.mulf %183, %190 : vector<8x100xf32>
    %cst_75 = arith.constant dense<0.000000e+00> : vector<100xf32>
    %192 = vector.multi_reduction <add>, %191, %cst_75 [0] : vector<8x100xf32> to vector<100xf32>
    %193 = vector.shape_cast %192 : vector<100xf32> to vector<1x100xf32>
    %194 = vector.extract_strided_slice %17 {offsets = [0, 1600], sizes = [8, 100], strides = [1, 1]} : vector<8x2400xf32> to vector<8x100xf32>
    %c0_76 = arith.constant 0 : index
    %c16 = arith.constant 16 : index
    %195 = vector.load %arg5[%c0_76, %c16] : memref<8x48xf32, #tpu.memory_space<vmem>>, vector<8x1xf32>
    %196 = vector.broadcast %195 : vector<8x1xf32> to vector<8x100xf32>
    %197 = arith.mulf %194, %196 : vector<8x100xf32>
    %cst_77 = arith.constant dense<0.000000e+00> : vector<100xf32>
    %198 = vector.multi_reduction <add>, %197, %cst_77 [0] : vector<8x100xf32> to vector<100xf32>
    %199 = vector.shape_cast %198 : vector<100xf32> to vector<1x100xf32>
    %c0_78 = arith.constant 0 : index
    %c40 = arith.constant 40 : index
    %200 = vector.load %arg5[%c0_78, %c40] : memref<8x48xf32, #tpu.memory_space<vmem>>, vector<8x1xf32>
    %201 = vector.broadcast %200 : vector<8x1xf32> to vector<8x100xf32>
    %202 = arith.mulf %194, %201 : vector<8x100xf32>
    %cst_79 = arith.constant dense<0.000000e+00> : vector<100xf32>
    %203 = vector.multi_reduction <add>, %202, %cst_79 [0] : vector<8x100xf32> to vector<100xf32>
    %204 = vector.shape_cast %203 : vector<100xf32> to vector<1x100xf32>
    %205 = vector.extract_strided_slice %17 {offsets = [0, 1700], sizes = [8, 100], strides = [1, 1]} : vector<8x2400xf32> to vector<8x100xf32>
    %c0_80 = arith.constant 0 : index
    %c17 = arith.constant 17 : index
    %206 = vector.load %arg5[%c0_80, %c17] : memref<8x48xf32, #tpu.memory_space<vmem>>, vector<8x1xf32>
    %207 = vector.broadcast %206 : vector<8x1xf32> to vector<8x100xf32>
    %208 = arith.mulf %205, %207 : vector<8x100xf32>
    %cst_81 = arith.constant dense<0.000000e+00> : vector<100xf32>
    %209 = vector.multi_reduction <add>, %208, %cst_81 [0] : vector<8x100xf32> to vector<100xf32>
    %210 = vector.shape_cast %209 : vector<100xf32> to vector<1x100xf32>
    %c0_82 = arith.constant 0 : index
    %c41 = arith.constant 41 : index
    %211 = vector.load %arg5[%c0_82, %c41] : memref<8x48xf32, #tpu.memory_space<vmem>>, vector<8x1xf32>
    %212 = vector.broadcast %211 : vector<8x1xf32> to vector<8x100xf32>
    %213 = arith.mulf %205, %212 : vector<8x100xf32>
    %cst_83 = arith.constant dense<0.000000e+00> : vector<100xf32>
    %214 = vector.multi_reduction <add>, %213, %cst_83 [0] : vector<8x100xf32> to vector<100xf32>
    %215 = vector.shape_cast %214 : vector<100xf32> to vector<1x100xf32>
    %216 = vector.extract_strided_slice %17 {offsets = [0, 1800], sizes = [8, 100], strides = [1, 1]} : vector<8x2400xf32> to vector<8x100xf32>
    %c0_84 = arith.constant 0 : index
    %c18 = arith.constant 18 : index
    %217 = vector.load %arg5[%c0_84, %c18] : memref<8x48xf32, #tpu.memory_space<vmem>>, vector<8x1xf32>
    %218 = vector.broadcast %217 : vector<8x1xf32> to vector<8x100xf32>
    %219 = arith.mulf %216, %218 : vector<8x100xf32>
    %cst_85 = arith.constant dense<0.000000e+00> : vector<100xf32>
    %220 = vector.multi_reduction <add>, %219, %cst_85 [0] : vector<8x100xf32> to vector<100xf32>
    %221 = vector.shape_cast %220 : vector<100xf32> to vector<1x100xf32>
    %c0_86 = arith.constant 0 : index
    %c42 = arith.constant 42 : index
    %222 = vector.load %arg5[%c0_86, %c42] : memref<8x48xf32, #tpu.memory_space<vmem>>, vector<8x1xf32>
    %223 = vector.broadcast %222 : vector<8x1xf32> to vector<8x100xf32>
    %224 = arith.mulf %216, %223 : vector<8x100xf32>
    %cst_87 = arith.constant dense<0.000000e+00> : vector<100xf32>
    %225 = vector.multi_reduction <add>, %224, %cst_87 [0] : vector<8x100xf32> to vector<100xf32>
    %226 = vector.shape_cast %225 : vector<100xf32> to vector<1x100xf32>
    %227 = vector.extract_strided_slice %17 {offsets = [0, 1900], sizes = [8, 100], strides = [1, 1]} : vector<8x2400xf32> to vector<8x100xf32>
    %c0_88 = arith.constant 0 : index
    %c19 = arith.constant 19 : index
    %228 = vector.load %arg5[%c0_88, %c19] : memref<8x48xf32, #tpu.memory_space<vmem>>, vector<8x1xf32>
    %229 = vector.broadcast %228 : vector<8x1xf32> to vector<8x100xf32>
    %230 = arith.mulf %227, %229 : vector<8x100xf32>
    %cst_89 = arith.constant dense<0.000000e+00> : vector<100xf32>
    %231 = vector.multi_reduction <add>, %230, %cst_89 [0] : vector<8x100xf32> to vector<100xf32>
    %232 = vector.shape_cast %231 : vector<100xf32> to vector<1x100xf32>
    %c0_90 = arith.constant 0 : index
    %c43 = arith.constant 43 : index
    %233 = vector.load %arg5[%c0_90, %c43] : memref<8x48xf32, #tpu.memory_space<vmem>>, vector<8x1xf32>
    %234 = vector.broadcast %233 : vector<8x1xf32> to vector<8x100xf32>
    %235 = arith.mulf %227, %234 : vector<8x100xf32>
    %cst_91 = arith.constant dense<0.000000e+00> : vector<100xf32>
    %236 = vector.multi_reduction <add>, %235, %cst_91 [0] : vector<8x100xf32> to vector<100xf32>
    %237 = vector.shape_cast %236 : vector<100xf32> to vector<1x100xf32>
    %238 = vector.extract_strided_slice %17 {offsets = [0, 2000], sizes = [8, 100], strides = [1, 1]} : vector<8x2400xf32> to vector<8x100xf32>
    %c0_92 = arith.constant 0 : index
    %c20 = arith.constant 20 : index
    %239 = vector.load %arg5[%c0_92, %c20] : memref<8x48xf32, #tpu.memory_space<vmem>>, vector<8x1xf32>
    %240 = vector.broadcast %239 : vector<8x1xf32> to vector<8x100xf32>
    %241 = arith.mulf %238, %240 : vector<8x100xf32>
    %cst_93 = arith.constant dense<0.000000e+00> : vector<100xf32>
    %242 = vector.multi_reduction <add>, %241, %cst_93 [0] : vector<8x100xf32> to vector<100xf32>
    %243 = vector.shape_cast %242 : vector<100xf32> to vector<1x100xf32>
    %c0_94 = arith.constant 0 : index
    %c44 = arith.constant 44 : index
    %244 = vector.load %arg5[%c0_94, %c44] : memref<8x48xf32, #tpu.memory_space<vmem>>, vector<8x1xf32>
    %245 = vector.broadcast %244 : vector<8x1xf32> to vector<8x100xf32>
    %246 = arith.mulf %238, %245 : vector<8x100xf32>
    %cst_95 = arith.constant dense<0.000000e+00> : vector<100xf32>
    %247 = vector.multi_reduction <add>, %246, %cst_95 [0] : vector<8x100xf32> to vector<100xf32>
    %248 = vector.shape_cast %247 : vector<100xf32> to vector<1x100xf32>
    %249 = vector.extract_strided_slice %17 {offsets = [0, 2100], sizes = [8, 100], strides = [1, 1]} : vector<8x2400xf32> to vector<8x100xf32>
    %c0_96 = arith.constant 0 : index
    %c21 = arith.constant 21 : index
    %250 = vector.load %arg5[%c0_96, %c21] : memref<8x48xf32, #tpu.memory_space<vmem>>, vector<8x1xf32>
    %251 = vector.broadcast %250 : vector<8x1xf32> to vector<8x100xf32>
    %252 = arith.mulf %249, %251 : vector<8x100xf32>
    %cst_97 = arith.constant dense<0.000000e+00> : vector<100xf32>
    %253 = vector.multi_reduction <add>, %252, %cst_97 [0] : vector<8x100xf32> to vector<100xf32>
    %254 = vector.shape_cast %253 : vector<100xf32> to vector<1x100xf32>
    %c0_98 = arith.constant 0 : index
    %c45 = arith.constant 45 : index
    %255 = vector.load %arg5[%c0_98, %c45] : memref<8x48xf32, #tpu.memory_space<vmem>>, vector<8x1xf32>
    %256 = vector.broadcast %255 : vector<8x1xf32> to vector<8x100xf32>
    %257 = arith.mulf %249, %256 : vector<8x100xf32>
    %cst_99 = arith.constant dense<0.000000e+00> : vector<100xf32>
    %258 = vector.multi_reduction <add>, %257, %cst_99 [0] : vector<8x100xf32> to vector<100xf32>
    %259 = vector.shape_cast %258 : vector<100xf32> to vector<1x100xf32>
    %260 = vector.extract_strided_slice %17 {offsets = [0, 2200], sizes = [8, 100], strides = [1, 1]} : vector<8x2400xf32> to vector<8x100xf32>
    %c0_100 = arith.constant 0 : index
    %c22 = arith.constant 22 : index
    %261 = vector.load %arg5[%c0_100, %c22] : memref<8x48xf32, #tpu.memory_space<vmem>>, vector<8x1xf32>
    %262 = vector.broadcast %261 : vector<8x1xf32> to vector<8x100xf32>
    %263 = arith.mulf %260, %262 : vector<8x100xf32>
    %cst_101 = arith.constant dense<0.000000e+00> : vector<100xf32>
    %264 = vector.multi_reduction <add>, %263, %cst_101 [0] : vector<8x100xf32> to vector<100xf32>
    %265 = vector.shape_cast %264 : vector<100xf32> to vector<1x100xf32>
    %c0_102 = arith.constant 0 : index
    %c46 = arith.constant 46 : index
    %266 = vector.load %arg5[%c0_102, %c46] : memref<8x48xf32, #tpu.memory_space<vmem>>, vector<8x1xf32>
    %267 = vector.broadcast %266 : vector<8x1xf32> to vector<8x100xf32>
    %268 = arith.mulf %260, %267 : vector<8x100xf32>
    %cst_103 = arith.constant dense<0.000000e+00> : vector<100xf32>
    %269 = vector.multi_reduction <add>, %268, %cst_103 [0] : vector<8x100xf32> to vector<100xf32>
    %270 = vector.shape_cast %269 : vector<100xf32> to vector<1x100xf32>
    %271 = vector.extract_strided_slice %17 {offsets = [0, 2300], sizes = [8, 100], strides = [1, 1]} : vector<8x2400xf32> to vector<8x100xf32>
    %c0_104 = arith.constant 0 : index
    %c23 = arith.constant 23 : index
    %272 = vector.load %arg5[%c0_104, %c23] : memref<8x48xf32, #tpu.memory_space<vmem>>, vector<8x1xf32>
    %273 = vector.broadcast %272 : vector<8x1xf32> to vector<8x100xf32>
    %274 = arith.mulf %271, %273 : vector<8x100xf32>
    %cst_105 = arith.constant dense<0.000000e+00> : vector<100xf32>
    %275 = vector.multi_reduction <add>, %274, %cst_105 [0] : vector<8x100xf32> to vector<100xf32>
    %276 = vector.shape_cast %275 : vector<100xf32> to vector<1x100xf32>
    %c0_106 = arith.constant 0 : index
    %c47 = arith.constant 47 : index
    %277 = vector.load %arg5[%c0_106, %c47] : memref<8x48xf32, #tpu.memory_space<vmem>>, vector<8x1xf32>
    %278 = vector.broadcast %277 : vector<8x1xf32> to vector<8x100xf32>
    %279 = arith.mulf %271, %278 : vector<8x100xf32>
    %cst_107 = arith.constant dense<0.000000e+00> : vector<100xf32>
    %280 = vector.multi_reduction <add>, %279, %cst_107 [0] : vector<8x100xf32> to vector<100xf32>
    %281 = vector.shape_cast %280 : vector<100xf32> to vector<1x100xf32>
    %282 = tpu.concatenate %23, %34, %45, %56, %67, %78, %89, %100, %111, %122, %133, %144, %155, %166, %177, %188 in 0 : vector<1x100xf32>, vector<1x100xf32>, vector<1x100xf32>, vector<1x100xf32>, vector<1x100xf32>, vector<1x100xf32>, vector<1x100xf32>, vector<1x100xf32>, vector<1x100xf32>, vector<1x100xf32>, vector<1x100xf32>, vector<1x100xf32>, vector<1x100xf32>, vector<1x100xf32>, vector<1x100xf32>, vector<1x100xf32> -> vector<16x100xf32>
    %283 = tpu.concatenate %199, %210, %221, %232, %243, %254, %265, %276, %28, %39, %50, %61, %72, %83, %94, %105 in 0 : vector<1x100xf32>, vector<1x100xf32>, vector<1x100xf32>, vector<1x100xf32>, vector<1x100xf32>, vector<1x100xf32>, vector<1x100xf32>, vector<1x100xf32>, vector<1x100xf32>, vector<1x100xf32>, vector<1x100xf32>, vector<1x100xf32>, vector<1x100xf32>, vector<1x100xf32>, vector<1x100xf32>, vector<1x100xf32> -> vector<16x100xf32>
    %284 = tpu.concatenate %116, %127, %138, %149, %160, %171, %182, %193, %204, %215, %226, %237, %248, %259, %270, %281 in 0 : vector<1x100xf32>, vector<1x100xf32>, vector<1x100xf32>, vector<1x100xf32>, vector<1x100xf32>, vector<1x100xf32>, vector<1x100xf32>, vector<1x100xf32>, vector<1x100xf32>, vector<1x100xf32>, vector<1x100xf32>, vector<1x100xf32>, vector<1x100xf32>, vector<1x100xf32>, vector<1x100xf32>, vector<1x100xf32> -> vector<16x100xf32>
    %285 = tpu.concatenate %282, %283, %284 in 0 : vector<16x100xf32>, vector<16x100xf32>, vector<16x100xf32> -> vector<48x100xf32>
    %c0_108 = arith.constant 0 : index
    %c0_109 = arith.constant 0 : index
    %286 = vector.load %arg6[%c0_108, %c0_109] : memref<48x1xf32, #tpu.memory_space<vmem>>, vector<48x1xf32>
    %287 = vector.broadcast %286 : vector<48x1xf32> to vector<48x100xf32>
    %288 = arith.mulf %285, %287 : vector<48x100xf32>
    %c0_110 = arith.constant 0 : index
    %c0_111 = arith.constant 0 : index
    %289 = vector.load %arg7[%c0_110, %c0_111] : memref<48x1xf32, #tpu.memory_space<vmem>>, vector<48x1xf32>
    %290 = vector.broadcast %289 : vector<48x1xf32> to vector<48x100xf32>
    %291 = arith.addf %288, %290 : vector<48x100xf32>
    %cst_112 = arith.constant 0.000000e+00 : f32
    %292 = vector.broadcast %cst_112 : f32 to vector<48x100xf32>
    %293 = arith.cmpf ogt, %291, %292 : vector<48x100xf32>
    %cst_113 = arith.constant 0.000000e+00 : f32
    %294 = vector.broadcast %cst_113 : f32 to vector<48x100xf32>
    %295 = arith.minimumf %291, %294 : vector<48x100xf32>
    %296 = math.exp %295 : vector<48x100xf32>
    %cst_114 = arith.constant 1.000000e+00 : f32
    %297 = vector.broadcast %cst_114 : f32 to vector<48x100xf32>
    %298 = arith.subf %296, %297 : vector<48x100xf32>
    %299 = arith.select %293, %291, %298 : vector<48x100xi1>, vector<48x100xf32>
    %c0_115 = arith.constant 0 : index
    %c0_116 = arith.constant 0 : index
    %300 = vector.load %arg8[%c0_115, %c0_116] : memref<24x1536xf32, #tpu.memory_space<vmem>>, vector<24x1536xf32>
    %c0_117 = arith.constant 0 : index
    %c0_118 = arith.constant 0 : index
    %301 = vector.load %arg9[%c0_117, %c0_118] : memref<24x1xf32, #tpu.memory_space<vmem>>, vector<24x1xf32>
    %c0_119 = arith.constant 0 : index
    %c0_120 = arith.constant 0 : index
    %302 = vector.load %arg10[%c0_119, %c0_120] : memref<24x1xf32, #tpu.memory_space<vmem>>, vector<24x1xf32>
    %cst_121 = arith.constant 0.000000e+00 : f32
    %303 = vector.broadcast %cst_121 : f32 to vector<48x15xf32>
    %cst_122 = arith.constant 0.000000e+00 : f32
    %304 = vector.broadcast %cst_122 : f32 to vector<48x16xf32>
    %305 = tpu.concatenate %303, %299, %304 in 1 : vector<48x15xf32>, vector<48x100xf32>, vector<48x16xf32> -> vector<48x131xf32>
    %306 = vector.extract_strided_slice %305 {offsets = [0, 0], sizes = [48, 100], strides = [1, 1]} : vector<48x131xf32> to vector<48x100xf32>
    %307 = vector.extract_strided_slice %305 {offsets = [0, 1], sizes = [48, 100], strides = [1, 1]} : vector<48x131xf32> to vector<48x100xf32>
    %308 = vector.extract_strided_slice %305 {offsets = [0, 2], sizes = [48, 100], strides = [1, 1]} : vector<48x131xf32> to vector<48x100xf32>
    %309 = vector.extract_strided_slice %305 {offsets = [0, 3], sizes = [48, 100], strides = [1, 1]} : vector<48x131xf32> to vector<48x100xf32>
    %310 = vector.extract_strided_slice %305 {offsets = [0, 4], sizes = [48, 100], strides = [1, 1]} : vector<48x131xf32> to vector<48x100xf32>
    %311 = vector.extract_strided_slice %305 {offsets = [0, 5], sizes = [48, 100], strides = [1, 1]} : vector<48x131xf32> to vector<48x100xf32>
    %312 = vector.extract_strided_slice %305 {offsets = [0, 6], sizes = [48, 100], strides = [1, 1]} : vector<48x131xf32> to vector<48x100xf32>
    %313 = vector.extract_strided_slice %305 {offsets = [0, 7], sizes = [48, 100], strides = [1, 1]} : vector<48x131xf32> to vector<48x100xf32>
    %314 = vector.extract_strided_slice %305 {offsets = [0, 8], sizes = [48, 100], strides = [1, 1]} : vector<48x131xf32> to vector<48x100xf32>
    %315 = vector.extract_strided_slice %305 {offsets = [0, 9], sizes = [48, 100], strides = [1, 1]} : vector<48x131xf32> to vector<48x100xf32>
    %316 = vector.extract_strided_slice %305 {offsets = [0, 10], sizes = [48, 100], strides = [1, 1]} : vector<48x131xf32> to vector<48x100xf32>
    %317 = vector.extract_strided_slice %305 {offsets = [0, 11], sizes = [48, 100], strides = [1, 1]} : vector<48x131xf32> to vector<48x100xf32>
    %318 = vector.extract_strided_slice %305 {offsets = [0, 12], sizes = [48, 100], strides = [1, 1]} : vector<48x131xf32> to vector<48x100xf32>
    %319 = vector.extract_strided_slice %305 {offsets = [0, 13], sizes = [48, 100], strides = [1, 1]} : vector<48x131xf32> to vector<48x100xf32>
    %320 = vector.extract_strided_slice %305 {offsets = [0, 14], sizes = [48, 100], strides = [1, 1]} : vector<48x131xf32> to vector<48x100xf32>
    %321 = vector.extract_strided_slice %305 {offsets = [0, 15], sizes = [48, 100], strides = [1, 1]} : vector<48x131xf32> to vector<48x100xf32>
    %322 = vector.extract_strided_slice %305 {offsets = [0, 16], sizes = [48, 100], strides = [1, 1]} : vector<48x131xf32> to vector<48x100xf32>
    %323 = vector.extract_strided_slice %305 {offsets = [0, 17], sizes = [48, 100], strides = [1, 1]} : vector<48x131xf32> to vector<48x100xf32>
    %324 = vector.extract_strided_slice %305 {offsets = [0, 18], sizes = [48, 100], strides = [1, 1]} : vector<48x131xf32> to vector<48x100xf32>
    %325 = vector.extract_strided_slice %305 {offsets = [0, 19], sizes = [48, 100], strides = [1, 1]} : vector<48x131xf32> to vector<48x100xf32>
    %326 = vector.extract_strided_slice %305 {offsets = [0, 20], sizes = [48, 100], strides = [1, 1]} : vector<48x131xf32> to vector<48x100xf32>
    %327 = vector.extract_strided_slice %305 {offsets = [0, 21], sizes = [48, 100], strides = [1, 1]} : vector<48x131xf32> to vector<48x100xf32>
    %328 = vector.extract_strided_slice %305 {offsets = [0, 22], sizes = [48, 100], strides = [1, 1]} : vector<48x131xf32> to vector<48x100xf32>
    %329 = vector.extract_strided_slice %305 {offsets = [0, 23], sizes = [48, 100], strides = [1, 1]} : vector<48x131xf32> to vector<48x100xf32>
    %330 = vector.extract_strided_slice %305 {offsets = [0, 24], sizes = [48, 100], strides = [1, 1]} : vector<48x131xf32> to vector<48x100xf32>
    %331 = vector.extract_strided_slice %305 {offsets = [0, 25], sizes = [48, 100], strides = [1, 1]} : vector<48x131xf32> to vector<48x100xf32>
    %332 = vector.extract_strided_slice %305 {offsets = [0, 26], sizes = [48, 100], strides = [1, 1]} : vector<48x131xf32> to vector<48x100xf32>
    %333 = vector.extract_strided_slice %305 {offsets = [0, 27], sizes = [48, 100], strides = [1, 1]} : vector<48x131xf32> to vector<48x100xf32>
    %334 = vector.extract_strided_slice %305 {offsets = [0, 28], sizes = [48, 100], strides = [1, 1]} : vector<48x131xf32> to vector<48x100xf32>
    %335 = vector.extract_strided_slice %305 {offsets = [0, 29], sizes = [48, 100], strides = [1, 1]} : vector<48x131xf32> to vector<48x100xf32>
    %336 = vector.extract_strided_slice %305 {offsets = [0, 30], sizes = [48, 100], strides = [1, 1]} : vector<48x131xf32> to vector<48x100xf32>
    %337 = vector.extract_strided_slice %305 {offsets = [0, 31], sizes = [48, 100], strides = [1, 1]} : vector<48x131xf32> to vector<48x100xf32>
    %338 = tpu.concatenate %306, %307, %308, %309, %310, %311, %312, %313, %314, %315, %316, %317, %318, %319, %320, %321 in 0 : vector<48x100xf32>, vector<48x100xf32>, vector<48x100xf32>, vector<48x100xf32>, vector<48x100xf32>, vector<48x100xf32>, vector<48x100xf32>, vector<48x100xf32>, vector<48x100xf32>, vector<48x100xf32>, vector<48x100xf32>, vector<48x100xf32>, vector<48x100xf32>, vector<48x100xf32>, vector<48x100xf32>, vector<48x100xf32> -> vector<768x100xf32>
    %339 = tpu.concatenate %322, %323, %324, %325, %326, %327, %328, %329, %330, %331, %332, %333, %334, %335, %336, %337 in 0 : vector<48x100xf32>, vector<48x100xf32>, vector<48x100xf32>, vector<48x100xf32>, vector<48x100xf32>, vector<48x100xf32>, vector<48x100xf32>, vector<48x100xf32>, vector<48x100xf32>, vector<48x100xf32>, vector<48x100xf32>, vector<48x100xf32>, vector<48x100xf32>, vector<48x100xf32>, vector<48x100xf32>, vector<48x100xf32> -> vector<768x100xf32>
    %340 = tpu.concatenate %338, %339 in 0 : vector<768x100xf32>, vector<768x100xf32> -> vector<1536x100xf32>
    %cst_123 = arith.constant dense<0.000000e+00> : vector<24x100xf32>
    %341 = tpu.matmul %300, %340, %cst_123 {dimension_numbers = #tpu.dot_dimension_numbers<[1], [0], [0], [1], [0, 0, 1, 1], [], []>} : vector<24x1536xf32>, vector<1536x100xf32>, vector<24x100xf32> -> vector<24x100xf32>
    %342 = vector.broadcast %301 : vector<24x1xf32> to vector<24x100xf32>
    %343 = arith.mulf %341, %342 : vector<24x100xf32>
    %344 = vector.broadcast %302 : vector<24x1xf32> to vector<24x100xf32>
    %345 = arith.addf %343, %344 : vector<24x100xf32>
    %cst_124 = arith.constant 0.000000e+00 : f32
    %346 = vector.broadcast %cst_124 : f32 to vector<24x100xf32>
    %347 = arith.cmpf ogt, %345, %346 : vector<24x100xf32>
    %cst_125 = arith.constant 0.000000e+00 : f32
    %348 = vector.broadcast %cst_125 : f32 to vector<24x100xf32>
    %349 = arith.minimumf %345, %348 : vector<24x100xf32>
    %350 = math.exp %349 : vector<24x100xf32>
    %cst_126 = arith.constant 1.000000e+00 : f32
    %351 = vector.broadcast %cst_126 : f32 to vector<24x100xf32>
    %352 = arith.subf %350, %351 : vector<24x100xf32>
    %353 = arith.select %347, %345, %352 : vector<24x100xi1>, vector<24x100xf32>
    %c0_127 = arith.constant 0 : index
    %c0_128 = arith.constant 0 : index
    %354 = vector.load %arg11[%c0_127, %c0_128] : memref<12x768xf32, #tpu.memory_space<vmem>>, vector<12x768xf32>
    %c0_129 = arith.constant 0 : index
    %c0_130 = arith.constant 0 : index
    %355 = vector.load %arg12[%c0_129, %c0_130] : memref<12x1xf32, #tpu.memory_space<vmem>>, vector<12x1xf32>
    %c0_131 = arith.constant 0 : index
    %c0_132 = arith.constant 0 : index
    %356 = vector.load %arg13[%c0_131, %c0_132] : memref<12x1xf32, #tpu.memory_space<vmem>>, vector<12x1xf32>
    %cst_133 = arith.constant 0.000000e+00 : f32
    %357 = vector.broadcast %cst_133 : f32 to vector<24x15xf32>
    %cst_134 = arith.constant 0.000000e+00 : f32
    %358 = vector.broadcast %cst_134 : f32 to vector<24x16xf32>
    %359 = tpu.concatenate %357, %353, %358 in 1 : vector<24x15xf32>, vector<24x100xf32>, vector<24x16xf32> -> vector<24x131xf32>
    %360 = vector.extract_strided_slice %359 {offsets = [0, 0], sizes = [24, 100], strides = [1, 1]} : vector<24x131xf32> to vector<24x100xf32>
    %361 = vector.extract_strided_slice %359 {offsets = [0, 1], sizes = [24, 100], strides = [1, 1]} : vector<24x131xf32> to vector<24x100xf32>
    %362 = vector.extract_strided_slice %359 {offsets = [0, 2], sizes = [24, 100], strides = [1, 1]} : vector<24x131xf32> to vector<24x100xf32>
    %363 = vector.extract_strided_slice %359 {offsets = [0, 3], sizes = [24, 100], strides = [1, 1]} : vector<24x131xf32> to vector<24x100xf32>
    %364 = vector.extract_strided_slice %359 {offsets = [0, 4], sizes = [24, 100], strides = [1, 1]} : vector<24x131xf32> to vector<24x100xf32>
    %365 = vector.extract_strided_slice %359 {offsets = [0, 5], sizes = [24, 100], strides = [1, 1]} : vector<24x131xf32> to vector<24x100xf32>
    %366 = vector.extract_strided_slice %359 {offsets = [0, 6], sizes = [24, 100], strides = [1, 1]} : vector<24x131xf32> to vector<24x100xf32>
    %367 = vector.extract_strided_slice %359 {offsets = [0, 7], sizes = [24, 100], strides = [1, 1]} : vector<24x131xf32> to vector<24x100xf32>
    %368 = vector.extract_strided_slice %359 {offsets = [0, 8], sizes = [24, 100], strides = [1, 1]} : vector<24x131xf32> to vector<24x100xf32>
    %369 = vector.extract_strided_slice %359 {offsets = [0, 9], sizes = [24, 100], strides = [1, 1]} : vector<24x131xf32> to vector<24x100xf32>
    %370 = vector.extract_strided_slice %359 {offsets = [0, 10], sizes = [24, 100], strides = [1, 1]} : vector<24x131xf32> to vector<24x100xf32>
    %371 = vector.extract_strided_slice %359 {offsets = [0, 11], sizes = [24, 100], strides = [1, 1]} : vector<24x131xf32> to vector<24x100xf32>
    %372 = vector.extract_strided_slice %359 {offsets = [0, 12], sizes = [24, 100], strides = [1, 1]} : vector<24x131xf32> to vector<24x100xf32>
    %373 = vector.extract_strided_slice %359 {offsets = [0, 13], sizes = [24, 100], strides = [1, 1]} : vector<24x131xf32> to vector<24x100xf32>
    %374 = vector.extract_strided_slice %359 {offsets = [0, 14], sizes = [24, 100], strides = [1, 1]} : vector<24x131xf32> to vector<24x100xf32>
    %375 = vector.extract_strided_slice %359 {offsets = [0, 15], sizes = [24, 100], strides = [1, 1]} : vector<24x131xf32> to vector<24x100xf32>
    %376 = vector.extract_strided_slice %359 {offsets = [0, 16], sizes = [24, 100], strides = [1, 1]} : vector<24x131xf32> to vector<24x100xf32>
    %377 = vector.extract_strided_slice %359 {offsets = [0, 17], sizes = [24, 100], strides = [1, 1]} : vector<24x131xf32> to vector<24x100xf32>
    %378 = vector.extract_strided_slice %359 {offsets = [0, 18], sizes = [24, 100], strides = [1, 1]} : vector<24x131xf32> to vector<24x100xf32>
    %379 = vector.extract_strided_slice %359 {offsets = [0, 19], sizes = [24, 100], strides = [1, 1]} : vector<24x131xf32> to vector<24x100xf32>
    %380 = vector.extract_strided_slice %359 {offsets = [0, 20], sizes = [24, 100], strides = [1, 1]} : vector<24x131xf32> to vector<24x100xf32>
    %381 = vector.extract_strided_slice %359 {offsets = [0, 21], sizes = [24, 100], strides = [1, 1]} : vector<24x131xf32> to vector<24x100xf32>
    %382 = vector.extract_strided_slice %359 {offsets = [0, 22], sizes = [24, 100], strides = [1, 1]} : vector<24x131xf32> to vector<24x100xf32>
    %383 = vector.extract_strided_slice %359 {offsets = [0, 23], sizes = [24, 100], strides = [1, 1]} : vector<24x131xf32> to vector<24x100xf32>
    %384 = vector.extract_strided_slice %359 {offsets = [0, 24], sizes = [24, 100], strides = [1, 1]} : vector<24x131xf32> to vector<24x100xf32>
    %385 = vector.extract_strided_slice %359 {offsets = [0, 25], sizes = [24, 100], strides = [1, 1]} : vector<24x131xf32> to vector<24x100xf32>
    %386 = vector.extract_strided_slice %359 {offsets = [0, 26], sizes = [24, 100], strides = [1, 1]} : vector<24x131xf32> to vector<24x100xf32>
    %387 = vector.extract_strided_slice %359 {offsets = [0, 27], sizes = [24, 100], strides = [1, 1]} : vector<24x131xf32> to vector<24x100xf32>
    %388 = vector.extract_strided_slice %359 {offsets = [0, 28], sizes = [24, 100], strides = [1, 1]} : vector<24x131xf32> to vector<24x100xf32>
    %389 = vector.extract_strided_slice %359 {offsets = [0, 29], sizes = [24, 100], strides = [1, 1]} : vector<24x131xf32> to vector<24x100xf32>
    %390 = vector.extract_strided_slice %359 {offsets = [0, 30], sizes = [24, 100], strides = [1, 1]} : vector<24x131xf32> to vector<24x100xf32>
    %391 = vector.extract_strided_slice %359 {offsets = [0, 31], sizes = [24, 100], strides = [1, 1]} : vector<24x131xf32> to vector<24x100xf32>
    %392 = tpu.concatenate %360, %361, %362, %363, %364, %365, %366, %367, %368, %369, %370, %371, %372, %373, %374, %375 in 0 : vector<24x100xf32>, vector<24x100xf32>, vector<24x100xf32>, vector<24x100xf32>, vector<24x100xf32>, vector<24x100xf32>, vector<24x100xf32>, vector<24x100xf32>, vector<24x100xf32>, vector<24x100xf32>, vector<24x100xf32>, vector<24x100xf32>, vector<24x100xf32>, vector<24x100xf32>, vector<24x100xf32>, vector<24x100xf32> -> vector<384x100xf32>
    %393 = tpu.concatenate %376, %377, %378, %379, %380, %381, %382, %383, %384, %385, %386, %387, %388, %389, %390, %391 in 0 : vector<24x100xf32>, vector<24x100xf32>, vector<24x100xf32>, vector<24x100xf32>, vector<24x100xf32>, vector<24x100xf32>, vector<24x100xf32>, vector<24x100xf32>, vector<24x100xf32>, vector<24x100xf32>, vector<24x100xf32>, vector<24x100xf32>, vector<24x100xf32>, vector<24x100xf32>, vector<24x100xf32>, vector<24x100xf32> -> vector<384x100xf32>
    %394 = tpu.concatenate %392, %393 in 0 : vector<384x100xf32>, vector<384x100xf32> -> vector<768x100xf32>
    %cst_135 = arith.constant dense<0.000000e+00> : vector<12x100xf32>
    %395 = tpu.matmul %354, %394, %cst_135 {dimension_numbers = #tpu.dot_dimension_numbers<[1], [0], [0], [1], [0, 0, 1, 1], [], []>} : vector<12x768xf32>, vector<768x100xf32>, vector<12x100xf32> -> vector<12x100xf32>
    %396 = vector.broadcast %355 : vector<12x1xf32> to vector<12x100xf32>
    %397 = arith.mulf %395, %396 : vector<12x100xf32>
    %398 = vector.broadcast %356 : vector<12x1xf32> to vector<12x100xf32>
    %399 = arith.addf %397, %398 : vector<12x100xf32>
    %cst_136 = arith.constant 0.000000e+00 : f32
    %400 = vector.broadcast %cst_136 : f32 to vector<12x100xf32>
    %401 = arith.cmpf ogt, %399, %400 : vector<12x100xf32>
    %cst_137 = arith.constant 0.000000e+00 : f32
    %402 = vector.broadcast %cst_137 : f32 to vector<12x100xf32>
    %403 = arith.minimumf %399, %402 : vector<12x100xf32>
    %404 = math.exp %403 : vector<12x100xf32>
    %cst_138 = arith.constant 1.000000e+00 : f32
    %405 = vector.broadcast %cst_138 : f32 to vector<12x100xf32>
    %406 = arith.subf %404, %405 : vector<12x100xf32>
    %407 = arith.select %401, %399, %406 : vector<12x100xi1>, vector<12x100xf32>
    %c0_139 = arith.constant 0 : index
    %c0_140 = arith.constant 0 : index
    %408 = vector.load %arg14[%c0_139, %c0_140] : memref<6x192xf32, #tpu.memory_space<vmem>>, vector<6x192xf32>
    %c0_141 = arith.constant 0 : index
    %c0_142 = arith.constant 0 : index
    %409 = vector.load %arg15[%c0_141, %c0_142] : memref<6x1xf32, #tpu.memory_space<vmem>>, vector<6x1xf32>
    %c0_143 = arith.constant 0 : index
    %c0_144 = arith.constant 0 : index
    %410 = vector.load %arg16[%c0_143, %c0_144] : memref<6x1xf32, #tpu.memory_space<vmem>>, vector<6x1xf32>
    %cst_145 = arith.constant 0.000000e+00 : f32
    %411 = vector.broadcast %cst_145 : f32 to vector<12x7xf32>
    %cst_146 = arith.constant 0.000000e+00 : f32
    %412 = vector.broadcast %cst_146 : f32 to vector<12x8xf32>
    %413 = tpu.concatenate %411, %407, %412 in 1 : vector<12x7xf32>, vector<12x100xf32>, vector<12x8xf32> -> vector<12x115xf32>
    %414 = vector.extract_strided_slice %413 {offsets = [0, 0], sizes = [12, 100], strides = [1, 1]} : vector<12x115xf32> to vector<12x100xf32>
    %415 = vector.extract_strided_slice %413 {offsets = [0, 1], sizes = [12, 100], strides = [1, 1]} : vector<12x115xf32> to vector<12x100xf32>
    %416 = vector.extract_strided_slice %413 {offsets = [0, 2], sizes = [12, 100], strides = [1, 1]} : vector<12x115xf32> to vector<12x100xf32>
    %417 = vector.extract_strided_slice %413 {offsets = [0, 3], sizes = [12, 100], strides = [1, 1]} : vector<12x115xf32> to vector<12x100xf32>
    %418 = vector.extract_strided_slice %413 {offsets = [0, 4], sizes = [12, 100], strides = [1, 1]} : vector<12x115xf32> to vector<12x100xf32>
    %419 = vector.extract_strided_slice %413 {offsets = [0, 5], sizes = [12, 100], strides = [1, 1]} : vector<12x115xf32> to vector<12x100xf32>
    %420 = vector.extract_strided_slice %413 {offsets = [0, 6], sizes = [12, 100], strides = [1, 1]} : vector<12x115xf32> to vector<12x100xf32>
    %421 = vector.extract_strided_slice %413 {offsets = [0, 7], sizes = [12, 100], strides = [1, 1]} : vector<12x115xf32> to vector<12x100xf32>
    %422 = vector.extract_strided_slice %413 {offsets = [0, 8], sizes = [12, 100], strides = [1, 1]} : vector<12x115xf32> to vector<12x100xf32>
    %423 = vector.extract_strided_slice %413 {offsets = [0, 9], sizes = [12, 100], strides = [1, 1]} : vector<12x115xf32> to vector<12x100xf32>
    %424 = vector.extract_strided_slice %413 {offsets = [0, 10], sizes = [12, 100], strides = [1, 1]} : vector<12x115xf32> to vector<12x100xf32>
    %425 = vector.extract_strided_slice %413 {offsets = [0, 11], sizes = [12, 100], strides = [1, 1]} : vector<12x115xf32> to vector<12x100xf32>
    %426 = vector.extract_strided_slice %413 {offsets = [0, 12], sizes = [12, 100], strides = [1, 1]} : vector<12x115xf32> to vector<12x100xf32>
    %427 = vector.extract_strided_slice %413 {offsets = [0, 13], sizes = [12, 100], strides = [1, 1]} : vector<12x115xf32> to vector<12x100xf32>
    %428 = vector.extract_strided_slice %413 {offsets = [0, 14], sizes = [12, 100], strides = [1, 1]} : vector<12x115xf32> to vector<12x100xf32>
    %429 = vector.extract_strided_slice %413 {offsets = [0, 15], sizes = [12, 100], strides = [1, 1]} : vector<12x115xf32> to vector<12x100xf32>
    %430 = tpu.concatenate %414, %415, %416, %417, %418, %419, %420, %421, %422, %423, %424, %425, %426, %427, %428, %429 in 0 : vector<12x100xf32>, vector<12x100xf32>, vector<12x100xf32>, vector<12x100xf32>, vector<12x100xf32>, vector<12x100xf32>, vector<12x100xf32>, vector<12x100xf32>, vector<12x100xf32>, vector<12x100xf32>, vector<12x100xf32>, vector<12x100xf32>, vector<12x100xf32>, vector<12x100xf32>, vector<12x100xf32>, vector<12x100xf32> -> vector<192x100xf32>
    %cst_147 = arith.constant dense<0.000000e+00> : vector<6x100xf32>
    %431 = tpu.matmul %408, %430, %cst_147 {dimension_numbers = #tpu.dot_dimension_numbers<[1], [0], [0], [1], [0, 0, 1, 1], [], []>} : vector<6x192xf32>, vector<192x100xf32>, vector<6x100xf32> -> vector<6x100xf32>
    %432 = vector.broadcast %409 : vector<6x1xf32> to vector<6x100xf32>
    %433 = arith.mulf %431, %432 : vector<6x100xf32>
    %434 = vector.broadcast %410 : vector<6x1xf32> to vector<6x100xf32>
    %435 = arith.addf %433, %434 : vector<6x100xf32>
    %cst_148 = arith.constant 0.000000e+00 : f32
    %436 = vector.broadcast %cst_148 : f32 to vector<6x100xf32>
    %437 = arith.cmpf ogt, %435, %436 : vector<6x100xf32>
    %cst_149 = arith.constant 0.000000e+00 : f32
    %438 = vector.broadcast %cst_149 : f32 to vector<6x100xf32>
    %439 = arith.minimumf %435, %438 : vector<6x100xf32>
    %440 = math.exp %439 : vector<6x100xf32>
    %cst_150 = arith.constant 1.000000e+00 : f32
    %441 = vector.broadcast %cst_150 : f32 to vector<6x100xf32>
    %442 = arith.subf %440, %441 : vector<6x100xf32>
    %443 = arith.select %437, %435, %442 : vector<6x100xi1>, vector<6x100xf32>
    %c0_151 = arith.constant 0 : index
    %c0_152 = arith.constant 0 : index
    %c0_153 = arith.constant 0 : index
    %444 = vector.load %arg19[%c0_151, %c0_152, %c0_153] : memref<1x6x100xf32, #tpu.memory_space<vmem>>, vector<1x6x100xf32>
    %445 = vector.shape_cast %444 : vector<1x6x100xf32> to vector<6x100xf32>
    %446 = vector.shape_cast %443 : vector<6x100xf32> to vector<1x6x100xf32>
    tpu.vector_store %arg19[%c0_151, %c0_152, %c0_153], %446 {strides = array<i32>} : memref<1x6x100xf32, #tpu.memory_space<vmem>>, vector<1x6x100xf32>,
    %c0_154 = arith.constant 0 : index
    %c0_155 = arith.constant 0 : index
    %447 = vector.load %arg17[%c0_154, %c0_155] : memref<6x100xf32, #tpu.memory_space<vmem>>, vector<6x100xf32>
    %448 = arith.mulf %443, %447 : vector<6x100xf32>
    %cst_156 = arith.constant dense<0.000000e+00> : vector<6xf32>
    %449 = vector.multi_reduction <add>, %448, %cst_156 [1] : vector<6x100xf32> to vector<6xf32>
    %450 = vector.shape_cast %449 : vector<6xf32> to vector<6x1xf32>
    %cst_157 = arith.constant dense<0.000000e+00> : vector<1xf32>
    %451 = vector.multi_reduction <add>, %450, %cst_157 [0] : vector<6x1xf32> to vector<1xf32>
    %452 = vector.shape_cast %451 : vector<1xf32> to vector<1x1xf32>
    %c0_158 = arith.constant 0 : index
    %c0_159 = arith.constant 0 : index
    %453 = vector.load %arg18[%c0_158, %c0_159] : memref<1x1xf32, #tpu.memory_space<vmem>>, vector<1x1xf32>
    %454 = arith.addf %452, %453 : vector<1x1xf32>
    %c0_160 = arith.constant 0 : index
    %c0_161 = arith.constant 0 : index
    %c0_162 = arith.constant 0 : index
    %455 = vector.load %arg20[%c0_160, %c0_161, %c0_162] : memref<1x1x1xf32, #tpu.memory_space<vmem>>, vector<1x1x1xf32>
    %456 = vector.shape_cast %455 : vector<1x1x1xf32> to vector<1x1xf32>
    %457 = vector.shape_cast %454 : vector<1x1xf32> to vector<1x1x1xf32>
    tpu.vector_store %arg20[%c0_160, %c0_161, %c0_162], %457 {strides = array<i32>} : memref<1x1x1xf32, #tpu.memory_space<vmem>>, vector<1x1x1xf32>,
    return
  }
  func.func @transform_0(%arg0: i32) -> (i32, i32, i32) {
    %c0_i32 = arith.constant 0 : i32
    %c0_i32_0 = arith.constant 0 : i32
    %c0_i32_1 = arith.constant 0 : i32
    return %arg0, %c0_i32, %c0_i32_0 : i32, i32, i32
  }
  func.func @transform_1(%arg0: i32) -> (i32, i32) {
    %c0_i32 = arith.constant 0 : i32
    %c0_i32_0 = arith.constant 0 : i32
    %c0_i32_1 = arith.constant 0 : i32
    return %c0_i32, %c0_i32_0 : i32, i32
  }
  func.func @transform_2(%arg0: i32) -> (i32, i32) {
    %c0_i32 = arith.constant 0 : i32
    %c0_i32_0 = arith.constant 0 : i32
    %c0_i32_1 = arith.constant 0 : i32
    return %c0_i32, %c0_i32_0 : i32, i32
  }
  func.func @transform_3(%arg0: i32) -> (i32, i32) {
    %c0_i32 = arith.constant 0 : i32
    %c0_i32_0 = arith.constant 0 : i32
    %c0_i32_1 = arith.constant 0 : i32
    return %c0_i32, %c0_i32_0 : i32, i32
  }
  func.func @transform_4(%arg0: i32) -> (i32, i32) {
    %c0_i32 = arith.constant 0 : i32
    %c0_i32_0 = arith.constant 0 : i32
    %c0_i32_1 = arith.constant 0 : i32
    return %c0_i32, %c0_i32_0 : i32, i32
  }
  func.func @transform_5(%arg0: i32) -> (i32, i32) {
    %c0_i32 = arith.constant 0 : i32
    %c0_i32_0 = arith.constant 0 : i32
    %c0_i32_1 = arith.constant 0 : i32
    return %c0_i32, %c0_i32_0 : i32, i32
  }
  func.func @transform_6(%arg0: i32) -> (i32, i32) {
    %c0_i32 = arith.constant 0 : i32
    %c0_i32_0 = arith.constant 0 : i32
    %c0_i32_1 = arith.constant 0 : i32
    return %c0_i32, %c0_i32_0 : i32, i32
  }
  func.func @transform_7(%arg0: i32) -> (i32, i32) {
    %c0_i32 = arith.constant 0 : i32
    %c0_i32_0 = arith.constant 0 : i32
    %c0_i32_1 = arith.constant 0 : i32
    return %c0_i32, %c0_i32_0 : i32, i32
  }
  func.func @transform_8(%arg0: i32) -> (i32, i32) {
    %c0_i32 = arith.constant 0 : i32
    %c0_i32_0 = arith.constant 0 : i32
    %c0_i32_1 = arith.constant 0 : i32
    return %c0_i32, %c0_i32_0 : i32, i32
  }
  func.func @transform_9(%arg0: i32) -> (i32, i32) {
    %c0_i32 = arith.constant 0 : i32
    %c0_i32_0 = arith.constant 0 : i32
    %c0_i32_1 = arith.constant 0 : i32
    return %c0_i32, %c0_i32_0 : i32, i32
  }
  func.func @transform_10(%arg0: i32) -> (i32, i32) {
    %c0_i32 = arith.constant 0 : i32
    %c0_i32_0 = arith.constant 0 : i32
    %c0_i32_1 = arith.constant 0 : i32
    return %c0_i32, %c0_i32_0 : i32, i32
  }
  func.func @transform_11(%arg0: i32) -> (i32, i32) {
    %c0_i32 = arith.constant 0 : i32
    %c0_i32_0 = arith.constant 0 : i32
    %c0_i32_1 = arith.constant 0 : i32
    return %c0_i32, %c0_i32_0 : i32, i32
  }
  func.func @transform_12(%arg0: i32) -> (i32, i32) {
    %c0_i32 = arith.constant 0 : i32
    %c0_i32_0 = arith.constant 0 : i32
    %c0_i32_1 = arith.constant 0 : i32
    return %c0_i32, %c0_i32_0 : i32, i32
  }
  func.func @transform_13(%arg0: i32) -> (i32, i32) {
    %c0_i32 = arith.constant 0 : i32
    %c0_i32_0 = arith.constant 0 : i32
    %c0_i32_1 = arith.constant 0 : i32
    return %c0_i32, %c0_i32_0 : i32, i32
  }
  func.func @transform_14(%arg0: i32) -> (i32, i32) {
    %c0_i32 = arith.constant 0 : i32
    %c0_i32_0 = arith.constant 0 : i32
    %c0_i32_1 = arith.constant 0 : i32
    return %c0_i32, %c0_i32_0 : i32, i32
  }
  func.func @transform_15(%arg0: i32) -> (i32, i32) {
    %c0_i32 = arith.constant 0 : i32
    %c0_i32_0 = arith.constant 0 : i32
    %c0_i32_1 = arith.constant 0 : i32
    return %c0_i32, %c0_i32_0 : i32, i32
  }
  func.func @transform_16(%arg0: i32) -> (i32, i32) {
    %c0_i32 = arith.constant 0 : i32
    %c0_i32_0 = arith.constant 0 : i32
    %c0_i32_1 = arith.constant 0 : i32
    return %c0_i32, %c0_i32_0 : i32, i32
  }
  func.func @transform_17(%arg0: i32) -> (i32, i32) {
    %c0_i32 = arith.constant 0 : i32
    %c0_i32_0 = arith.constant 0 : i32
    %c0_i32_1 = arith.constant 0 : i32
    return %c0_i32, %c0_i32_0 : i32, i32
  }
  func.func @transform_18(%arg0: i32) -> (i32, i32, i32) {
    %c0_i32 = arith.constant 0 : i32
    %c0_i32_0 = arith.constant 0 : i32
    %c0_i32_1 = arith.constant 0 : i32
    return %arg0, %c0_i32, %c0_i32_0 : i32, i32, i32
  }
  func.func @transform_19(%arg0: i32) -> (i32, i32, i32) {
    %c0_i32 = arith.constant 0 : i32
    %c0_i32_0 = arith.constant 0 : i32
    %c0_i32_1 = arith.constant 0 : i32
    return %arg0, %c0_i32, %c0_i32_0 : i32, i32, i32
  }
}

</mosaic_0001>

<llo_original>
// kernel: eeg_inception_forward.1
$region0: #{eeg_inception_forward.1}
  #allocation0 [shape = 'u32[]', space=smem, size = 0x4, offset = 0x4, fixed_abs, tag = 'smem constant byte address 0x4 - core index']
  #allocation1 [shape = 'u32[144,128]{1,0:T(1,128)}', space=vmem, size = 0x12000, scoped, tag = 'internal scratch']
  #allocation2 [shape = 'f32[1,1]{1,0:T(1,128)S(1)}', space=vmem, size = 0x200, scoped, tag = 'scoped memory for eeg_inception_forward.1']
  %s0 = inlined_call_operand.vmem [shape: f32[2,8,100], index: 0, kind: input, shape index: {}]
  %s1 = inlined_call_operand.hbm [shape: f32[100,2400], index: 1, kind: input, shape index: {}]
  %s2 = inlined_call_operand.vmem [shape: f32[1,2400], index: 2, kind: input, shape index: {}]
  %s3 = inlined_call_operand.vmem [shape: f32[1,2400], index: 3, kind: input, shape index: {}]
  %s4 = inlined_call_operand.vmem [shape: f32[8,48], index: 4, kind: input, shape index: {}]
  %s5 = inlined_call_operand.vmem [shape: f32[48,1], index: 5, kind: input, shape index: {}]
  %s6 = inlined_call_operand.vmem [shape: f32[48,1], index: 6, kind: input, shape index: {}]
  %s7 = inlined_call_operand.hbm [shape: f32[24,1536], index: 7, kind: input, shape index: {}]
  %s8 = inlined_call_operand.vmem [shape: f32[24,1], index: 8, kind: input, shape index: {}]
  %s9 = inlined_call_operand.vmem [shape: f32[24,1], index: 9, kind: input, shape index: {}]
  %s10 = inlined_call_operand.vmem [shape: f32[12,768], index: 10, kind: input, shape index: {}]
  %s11 = inlined_call_operand.vmem [shape: f32[12,1], index: 11, kind: input, shape index: {}]
  %s12 = inlined_call_operand.vmem [shape: f32[12,1], index: 12, kind: input, shape index: {}]
  %s13 = inlined_call_operand.vmem [shape: f32[6,192], index: 13, kind: input, shape index: {}]
  %s14 = inlined_call_operand.vmem [shape: f32[6,1], index: 14, kind: input, shape index: {}]
  %s15 = inlined_call_operand.vmem [shape: f32[6,1], index: 15, kind: input, shape index: {}]
  %s16 = inlined_call_operand.vmem [shape: f32[6,100], index: 16, kind: input, shape index: {}]
  %s17 = inlined_call_operand.<no memory space> [shape: f32[1,1], index: 17, kind: input, shape index: {}]
  %s18 = inlined_call_operand.vmem [shape: f32[2,6,100], index: 18, kind: output, shape index: {0}]
  %s19 = inlined_call_operand.vmem [shape: f32[2,1,1], index: 19, kind: output, shape index: {1}]
  %20 = xla_tuple %s18, %s19
  %s21 = sld [smem:[#allocation0]]
  $region121: #{eeg_inception_forward.1} parent=0
    _
  %s23 = ssub.s32 1, %s21
  %s24 = scalar_select 0, %s23, %s21
  %v25 = vstv %s17
  %26 = vst [vmem:[#allocation2] sm:$0x1] %v25
  $region1: #{eeg_inception_forward.1} parent=0
    #allocation3 [shape = 'u8[1011712]{0}', space=vmem, size = 0xf7000, scoped, tag = 'input window, operand 1, single buffered']
    #allocation4 [shape = 's32[2]{0}', space=sflag, size = 0x8, scoped, tag = 'scoped memory for eeg_inception_forward.1']
    #allocation5 [shape = 'u8[147456]{0}', space=vmem, size = 0x24000, scoped, tag = 'input window, operand 7, single buffered']
    #allocation6 [shape = 's32[1]{0}', space=sflag, size = 0x4, scoped, tag = 'scoped memory for eeg_inception_forward.1']
    %27 = vsyncpa [#allocation4], 0
    %28 = vsyncpa [#allocation6], 0
    loop: start=0, step=1, limit=4
    $region2: #{eeg_inception_forward.1} parent=1 // loop_pre_header
      _
    $region3: #{eeg_inception_forward.1} parent=1 // loop_header
      %s30 = sphi 0, %s34
      %p31 = scmp.ge.s32.totalorder %s30, 4
      %s40 = sphi 0, %s42
      %s43 = sphi 0, %s40
      %s44 = sphi 0, %s43
      %s60 = sphi 0, %s44
      %s64 = sphi 0, %s64
      %s66 = sphi 0, %s64
      %s67 = sphi 0, %s66
      %s81 = sphi 0, %s67
      %s85 = sphi 0, %s85
      %s87 = sphi 0, %s85
      %s88 = sphi 0, %s87
      %s102 = sphi 0, %s88
      %s106 = sphi 0, %s106
      %s108 = sphi 0, %s106
      %s109 = sphi 0, %s108
      %s123 = sphi 0, %s109
      %s127 = sphi 0, %s127
      %s129 = sphi 0, %s127
      %s130 = sphi 0, %s129
      %s144 = sphi 0, %s130
      %s148 = sphi 0, %s148
      %s150 = sphi 0, %s148
      %s151 = sphi 0, %s150
      %s165 = sphi 0, %s151
      %s169 = sphi 0, %s169
      %s171 = sphi 0, %s169
      %s172 = sphi 0, %s171
      %s186 = sphi 0, %s172
      %s190 = sphi 0, %s190
      %s192 = sphi 0, %s190
      %s193 = sphi 0, %s192
      %s207 = sphi 0, %s193
      %s211 = sphi 0, %s211
      %s213 = sphi 0, %s211
      %s214 = sphi 0, %s213
      %s228 = sphi 0, %s214
      %s232 = sphi 0, %s232
      %s234 = sphi 0, %s232
      %s235 = sphi 0, %s234
      %s249 = sphi 0, %s235
      %s253 = sphi 0, %s253
      %s255 = sphi 0, %s253
      %s256 = sphi 0, %s255
      %s270 = sphi 0, %s256
      %s274 = sphi 0, %s274
      %s276 = sphi 0, %s274
      %s277 = sphi 0, %s276
      %s291 = sphi 0, %s277
      %s295 = sphi 0, %s295
      %s297 = sphi 0, %s295
      %s298 = sphi 0, %s297
      %s312 = sphi 0, %s298
      %s316 = sphi 0, %s316
      %s318 = sphi 0, %s316
      %s319 = sphi 0, %s318
      %s333 = sphi 0, %s319
      %s337 = sphi 0, %s337
      %s339 = sphi 0, %s337
      %s340 = sphi 0, %s339
      %s354 = sphi 0, %s340
      %s358 = sphi 0, %s358
      %s360 = sphi 0, %s358
      %s361 = sphi 0, %s360
      %s375 = sphi 0, %s361
      %s379 = sphi 0, %s379
      %s381 = sphi 0, %s379
      %s382 = sphi 0, %s381
      %s396 = sphi 0, %s382
      %s400 = sphi 0, %s400
      %s402 = sphi 0, %s400
      %s403 = sphi 0, %s402
      %s417 = sphi 0, %s403
      %s423 = sphi 0, %s425
      %s426 = sphi 0, %s423
      %s427 = sphi 0, %s426
      %s443 = sphi 0, %s427
      %s449 = sphi 0, %s451
      %s452 = sphi 0, %s449
      %s453 = sphi 0, %s452
      %s469 = sphi 0, %s453
    $region4: #{eeg_inception_forward.1} parent=1 // loop_header_branch
      %33 = sbr.rel (%p31) target = $region8
    $region5: #{eeg_inception_forward.1} parent=1 // loop_body
      %s35 = ssub.s32 %s30, 1
      %s36 = ssub.s32 %s30, 2
      %s37 = sadd.s32 %s30, 1
      %s38 = ssub.s32 %s30, %s37
      %p39 = scmp.eq.s32.totalorder %s38, 0
      %s41 = sadd.s32 %s40, 1
      %s42 = scalar_select %p39, %s40, %s41
      %p45 = pneg %p39
      %p46 = scmp.eq.s32.totalorder %s30, 1
      %p47 = por %p45, %p46
      %p48 = scmp.ne.s32.totalorder %s40, %s43
      %p49 = scmp.eq.s32.totalorder %s30, 0
      %p50 = por %p48, %p49
      %p51 = scmp.ne.s32.totalorder %s40, %s43
      %p52 = scmp.eq.s32.totalorder %s35, 1
      %p53 = por %p51, %p52
      %p54 = scmp.ne.s32.totalorder %s43, %s44
      %p55 = scmp.eq.s32.totalorder %s35, 0
      %p56 = por %p54, %p55
      %p57 = scmp.ne.s32.totalorder %s43, %s44
      %p58 = scmp.eq.s32.totalorder %s36, 1
      %p59 = por %p57, %p58
      %p61 = scmp.ne.s32.totalorder %s44, %s60
      %p62 = scmp.eq.s32.totalorder %s36, 0
      %p63 = por %p61, %p62
      %s65 = sadd.s32 %s64, 1
      %p68 = scmp.eq.s32.totalorder %s30, 1
      %p69 = scmp.ne.s32.totalorder %s64, %s66
      %p70 = scmp.eq.s32.totalorder %s30, 0
      %p71 = por %p69, %p70
      %p72 = scmp.ne.s32.totalorder %s64, %s66
      %p73 = scmp.eq.s32.totalorder %s35, 1
      %p74 = por %p72, %p73
      %p75 = scmp.ne.s32.totalorder %s66, %s67
      %p76 = scmp.eq.s32.totalorder %s35, 0
      %p77 = por %p75, %p76
      %p78 = scmp.ne.s32.totalorder %s66, %s67
      %p79 = scmp.eq.s32.totalorder %s36, 1
      %p80 = por %p78, %p79
      %p82 = scmp.ne.s32.totalorder %s67, %s81
      %p83 = scmp.eq.s32.totalorder %s36, 0
      %p84 = por %p82, %p83
      %s86 = sadd.s32 %s85, 1
      %p89 = scmp.eq.s32.totalorder %s30, 1
      %p90 = scmp.ne.s32.totalorder %s85, %s87
      %p91 = scmp.eq.s32.totalorder %s30, 0
      %p92 = por %p90, %p91
      %p93 = scmp.ne.s32.totalorder %s85, %s87
      %p94 = scmp.eq.s32.totalorder %s35, 1
      %p95 = por %p93, %p94
      %p96 = scmp.ne.s32.totalorder %s87, %s88
      %p97 = scmp.eq.s32.totalorder %s35, 0
      %p98 = por %p96, %p97
      %p99 = scmp.ne.s32.totalorder %s87, %s88
      %p100 = scmp.eq.s32.totalorder %s36, 1
      %p101 = por %p99, %p100
      %p103 = scmp.ne.s32.totalorder %s88, %s102
      %p104 = scmp.eq.s32.totalorder %s36, 0
      %p105 = por %p103, %p104
      %s107 = sadd.s32 %s106, 1
      %p110 = scmp.eq.s32.totalorder %s30, 1
      %p111 = scmp.ne.s32.totalorder %s106, %s108
      %p112 = scmp.eq.s32.totalorder %s30, 0
      %p113 = por %p111, %p112
      %p114 = scmp.ne.s32.totalorder %s106, %s108
      %p115 = scmp.eq.s32.totalorder %s35, 1
      %p116 = por %p114, %p115
      %p117 = scmp.ne.s32.totalorder %s108, %s109
      %p118 = scmp.eq.s32.totalorder %s35, 0
      %p119 = por %p117, %p118
      %p120 = scmp.ne.s32.totalorder %s108, %s109
      %p121 = scmp.eq.s32.totalorder %s36, 1
      %p122 = por %p120, %p121
      %p124 = scmp.ne.s32.totalorder %s109, %s123
      %p125 = scmp.eq.s32.totalorder %s36, 0
      %p126 = por %p124, %p125
      %s128 = sadd.s32 %s127, 1
      %p131 = scmp.eq.s32.totalorder %s30, 1
      %p132 = scmp.ne.s32.totalorder %s127, %s129
      %p133 = scmp.eq.s32.totalorder %s30, 0
      %p134 = por %p132, %p133
      %p135 = scmp.ne.s32.totalorder %s127, %s129
      %p136 = scmp.eq.s32.totalorder %s35, 1
      %p137 = por %p135, %p136
      %p138 = scmp.ne.s32.totalorder %s129, %s130
      %p139 = scmp.eq.s32.totalorder %s35, 0
      %p140 = por %p138, %p139
      %p141 = scmp.ne.s32.totalorder %s129, %s130
      %p142 = scmp.eq.s32.totalorder %s36, 1
      %p143 = por %p141, %p142
      %p145 = scmp.ne.s32.totalorder %s130, %s144
      %p146 = scmp.eq.s32.totalorder %s36, 0
      %p147 = por %p145, %p146
      %s149 = sadd.s32 %s148, 1
      %p152 = scmp.eq.s32.totalorder %s30, 1
      %p153 = scmp.ne.s32.totalorder %s148, %s150
      %p154 = scmp.eq.s32.totalorder %s30, 0
      %p155 = por %p153, %p154
      %p156 = scmp.ne.s32.totalorder %s148, %s150
      %p157 = scmp.eq.s32.totalorder %s35, 1
      %p158 = por %p156, %p157
      %p159 = scmp.ne.s32.totalorder %s150, %s151
      %p160 = scmp.eq.s32.totalorder %s35, 0
      %p161 = por %p159, %p160
      %p162 = scmp.ne.s32.totalorder %s150, %s151
      %p163 = scmp.eq.s32.totalorder %s36, 1
      %p164 = por %p162, %p163
      %p166 = scmp.ne.s32.totalorder %s151, %s165
      %p167 = scmp.eq.s32.totalorder %s36, 0
      %p168 = por %p166, %p167
      %s170 = sadd.s32 %s169, 1
      %p173 = scmp.eq.s32.totalorder %s30, 1
      %p174 = scmp.ne.s32.totalorder %s169, %s171
      %p175 = scmp.eq.s32.totalorder %s30, 0
      %p176 = por %p174, %p175
      %p177 = scmp.ne.s32.totalorder %s169, %s171
      %p178 = scmp.eq.s32.totalorder %s35, 1
      %p179 = por %p177, %p178
      %p180 = scmp.ne.s32.totalorder %s171, %s172
      %p181 = scmp.eq.s32.totalorder %s35, 0
      %p182 = por %p180, %p181
      %p183 = scmp.ne.s32.totalorder %s171, %s172
      %p184 = scmp.eq.s32.totalorder %s36, 1
      %p185 = por %p183, %p184
      %p187 = scmp.ne.s32.totalorder %s172, %s186
      %p188 = scmp.eq.s32.totalorder %s36, 0
      %p189 = por %p187, %p188
      %s191 = sadd.s32 %s190, 1
      %p194 = scmp.eq.s32.totalorder %s30, 1
      %p195 = scmp.ne.s32.totalorder %s190, %s192
      %p196 = scmp.eq.s32.totalorder %s30, 0
      %p197 = por %p195, %p196
      %p198 = scmp.ne.s32.totalorder %s190, %s192
      %p199 = scmp.eq.s32.totalorder %s35, 1
      %p200 = por %p198, %p199
      %p201 = scmp.ne.s32.totalorder %s192, %s193
      %p202 = scmp.eq.s32.totalorder %s35, 0
      %p203 = por %p201, %p202
      %p204 = scmp.ne.s32.totalorder %s192, %s193
      %p205 = scmp.eq.s32.totalorder %s36, 1
      %p206 = por %p204, %p205
      %p208 = scmp.ne.s32.totalorder %s193, %s207
      %p209 = scmp.eq.s32.totalorder %s36, 0
      %p210 = por %p208, %p209
      %s212 = sadd.s32 %s211, 1
      %p215 = scmp.eq.s32.totalorder %s30, 1
      %p216 = scmp.ne.s32.totalorder %s211, %s213
      %p217 = scmp.eq.s32.totalorder %s30, 0
      %p218 = por %p216, %p217
      %p219 = scmp.ne.s32.totalorder %s211, %s213
      %p220 = scmp.eq.s32.totalorder %s35, 1
      %p221 = por %p219, %p220
      %p222 = scmp.ne.s32.totalorder %s213, %s214
      %p223 = scmp.eq.s32.totalorder %s35, 0
      %p224 = por %p222, %p223
      %p225 = scmp.ne.s32.totalorder %s213, %s214
      %p226 = scmp.eq.s32.totalorder %s36, 1
      %p227 = por %p225, %p226
      %p229 = scmp.ne.s32.totalorder %s214, %s228
      %p230 = scmp.eq.s32.totalorder %s36, 0
      %p231 = por %p229, %p230
      %s233 = sadd.s32 %s232, 1
      %p236 = scmp.eq.s32.totalorder %s30, 1
      %p237 = scmp.ne.s32.totalorder %s232, %s234
      %p238 = scmp.eq.s32.totalorder %s30, 0
      %p239 = por %p237, %p238
      %p240 = scmp.ne.s32.totalorder %s232, %s234
      %p241 = scmp.eq.s32.totalorder %s35, 1
      %p242 = por %p240, %p241
      %p243 = scmp.ne.s32.totalorder %s234, %s235
      %p244 = scmp.eq.s32.totalorder %s35, 0
      %p245 = por %p243, %p244
      %p246 = scmp.ne.s32.totalorder %s234, %s235
      %p247 = scmp.eq.s32.totalorder %s36, 1
      %p248 = por %p246, %p247
      %p250 = scmp.ne.s32.totalorder %s235, %s249
      %p251 = scmp.eq.s32.totalorder %s36, 0
      %p252 = por %p250, %p251
      %s254 = sadd.s32 %s253, 1
      %p257 = scmp.eq.s32.totalorder %s30, 1
      %p258 = scmp.ne.s32.totalorder %s253, %s255
      %p259 = scmp.eq.s32.totalorder %s30, 0
      %p260 = por %p258, %p259
      %p261 = scmp.ne.s32.totalorder %s253, %s255
      %p262 = scmp.eq.s32.totalorder %s35, 1
      %p263 = por %p261, %p262
      %p264 = scmp.ne.s32.totalorder %s255, %s256
      %p265 = scmp.eq.s32.totalorder %s35, 0
      %p266 = por %p264, %p265
      %p267 = scmp.ne.s32.totalorder %s255, %s256
      %p268 = scmp.eq.s32.totalorder %s36, 1
      %p269 = por %p267, %p268
      %p271 = scmp.ne.s32.totalorder %s256, %s270
      %p272 = scmp.eq.s32.totalorder %s36, 0
      %p273 = por %p271, %p272
      %s275 = sadd.s32 %s274, 1
      %p278 = scmp.eq.s32.totalorder %s30, 1
      %p279 = scmp.ne.s32.totalorder %s274, %s276
      %p280 = scmp.eq.s32.totalorder %s30, 0
      %p281 = por %p279, %p280
      %p282 = scmp.ne.s32.totalorder %s274, %s276
      %p283 = scmp.eq.s32.totalorder %s35, 1
      %p284 = por %p282, %p283
      %p285 = scmp.ne.s32.totalorder %s276, %s277
      %p286 = scmp.eq.s32.totalorder %s35, 0
      %p287 = por %p285, %p286
      %p288 = scmp.ne.s32.totalorder %s276, %s277
      %p289 = scmp.eq.s32.totalorder %s36, 1
      %p290 = por %p288, %p289
      %p292 = scmp.ne.s32.totalorder %s277, %s291
      %p293 = scmp.eq.s32.totalorder %s36, 0
      %p294 = por %p292, %p293
      %s296 = sadd.s32 %s295, 1
      %p299 = scmp.eq.s32.totalorder %s30, 1
      %p300 = scmp.ne.s32.totalorder %s295, %s297
      %p301 = scmp.eq.s32.totalorder %s30, 0
      %p302 = por %p300, %p301
      %p303 = scmp.ne.s32.totalorder %s295, %s297
      %p304 = scmp.eq.s32.totalorder %s35, 1
      %p305 = por %p303, %p304
      %p306 = scmp.ne.s32.totalorder %s297, %s298
      %p307 = scmp.eq.s32.totalorder %s35, 0
      %p308 = por %p306, %p307
      %p309 = scmp.ne.s32.totalorder %s297, %s298
      %p310 = scmp.eq.s32.totalorder %s36, 1
      %p311 = por %p309, %p310
      %p313 = scmp.ne.s32.totalorder %s298, %s312
      %p314 = scmp.eq.s32.totalorder %s36, 0
      %p315 = por %p313, %p314
      %s317 = sadd.s32 %s316, 1
      %p320 = scmp.eq.s32.totalorder %s30, 1
      %p321 = scmp.ne.s32.totalorder %s316, %s318
      %p322 = scmp.eq.s32.totalorder %s30, 0
      %p323 = por %p321, %p322
      %p324 = scmp.ne.s32.totalorder %s316, %s318
      %p325 = scmp.eq.s32.totalorder %s35, 1
      %p326 = por %p324, %p325
      %p327 = scmp.ne.s32.totalorder %s318, %s319
      %p328 = scmp.eq.s32.totalorder %s35, 0
      %p329 = por %p327, %p328
      %p330 = scmp.ne.s32.totalorder %s318, %s319
      %p331 = scmp.eq.s32.totalorder %s36, 1
      %p332 = por %p330, %p331
      %p334 = scmp.ne.s32.totalorder %s319, %s333
      %p335 = scmp.eq.s32.totalorder %s36, 0
      %p336 = por %p334, %p335
      %s338 = sadd.s32 %s337, 1
      %p341 = scmp.eq.s32.totalorder %s30, 1
      %p342 = scmp.ne.s32.totalorder %s337, %s339
      %p343 = scmp.eq.s32.totalorder %s30, 0
      %p344 = por %p342, %p343
      %p345 = scmp.ne.s32.totalorder %s337, %s339
      %p346 = scmp.eq.s32.totalorder %s35, 1
      %p347 = por %p345, %p346
      %p348 = scmp.ne.s32.totalorder %s339, %s340
      %p349 = scmp.eq.s32.totalorder %s35, 0
      %p350 = por %p348, %p349
      %p351 = scmp.ne.s32.totalorder %s339, %s340
      %p352 = scmp.eq.s32.totalorder %s36, 1
      %p353 = por %p351, %p352
      %p355 = scmp.ne.s32.totalorder %s340, %s354
      %p356 = scmp.eq.s32.totalorder %s36, 0
      %p357 = por %p355, %p356
      %s359 = sadd.s32 %s358, 1
      %p362 = scmp.eq.s32.totalorder %s30, 1
      %p363 = scmp.ne.s32.totalorder %s358, %s360
      %p364 = scmp.eq.s32.totalorder %s30, 0
      %p365 = por %p363, %p364
      %p366 = scmp.ne.s32.totalorder %s358, %s360
      %p367 = scmp.eq.s32.totalorder %s35, 1
      %p368 = por %p366, %p367
      %p369 = scmp.ne.s32.totalorder %s360, %s361
      %p370 = scmp.eq.s32.totalorder %s35, 0
      %p371 = por %p369, %p370
      %p372 = scmp.ne.s32.totalorder %s360, %s361
      %p373 = scmp.eq.s32.totalorder %s36, 1
      %p374 = por %p372, %p373
      %p376 = scmp.ne.s32.totalorder %s361, %s375
      %p377 = scmp.eq.s32.totalorder %s36, 0
      %p378 = por %p376, %p377
      %s380 = sadd.s32 %s379, 1
      %p383 = scmp.eq.s32.totalorder %s30, 1
      %p384 = scmp.ne.s32.totalorder %s379, %s381
      %p385 = scmp.eq.s32.totalorder %s30, 0
      %p386 = por %p384, %p385
      %p387 = scmp.ne.s32.totalorder %s379, %s381
      %p388 = scmp.eq.s32.totalorder %s35, 1
      %p389 = por %p387, %p388
      %p390 = scmp.ne.s32.totalorder %s381, %s382
      %p391 = scmp.eq.s32.totalorder %s35, 0
      %p392 = por %p390, %p391
      %p393 = scmp.ne.s32.totalorder %s381, %s382
      %p394 = scmp.eq.s32.totalorder %s36, 1
      %p395 = por %p393, %p394
      %p397 = scmp.ne.s32.totalorder %s382, %s396
      %p398 = scmp.eq.s32.totalorder %s36, 0
      %p399 = por %p397, %p398
      %s401 = sadd.s32 %s400, 1
      %p404 = scmp.eq.s32.totalorder %s30, 1
      %p405 = scmp.ne.s32.totalorder %s400, %s402
      %p406 = scmp.eq.s32.totalorder %s30, 0
      %p407 = por %p405, %p406
      %p408 = scmp.ne.s32.totalorder %s400, %s402
      %p409 = scmp.eq.s32.totalorder %s35, 1
      %p410 = por %p408, %p409
      %p411 = scmp.ne.s32.totalorder %s402, %s403
      %p412 = scmp.eq.s32.totalorder %s35, 0
      %p413 = por %p411, %p412
      %p414 = scmp.ne.s32.totalorder %s402, %s403
      %p415 = scmp.eq.s32.totalorder %s36, 1
      %p416 = por %p414, %p415
      %p418 = scmp.ne.s32.totalorder %s403, %s417
      %p419 = scmp.eq.s32.totalorder %s36, 0
      %p420 = por %p418, %p419
      %s421 = ssub.s32 %s30, %s37
      %p422 = scmp.eq.s32.totalorder %s421, 0
      %s424 = sadd.s32 %s423, 1
      %s425 = scalar_select %p422, %s423, %s424
      %p428 = pneg %p422
      %p429 = scmp.eq.s32.totalorder %s30, 1
      %p430 = por %p428, %p429
      %p431 = scmp.ne.s32.totalorder %s423, %s426
      %p432 = scmp.eq.s32.totalorder %s30, 0
      %p433 = por %p431, %p432
      %p434 = scmp.ne.s32.totalorder %s423, %s426
      %p435 = scmp.eq.s32.totalorder %s35, 1
      %p436 = por %p434, %p435
      %p437 = scmp.ne.s32.totalorder %s426, %s427
      %p438 = scmp.eq.s32.totalorder %s35, 0
      %p439 = por %p437, %p438
      %p440 = scmp.ne.s32.totalorder %s426, %s427
      %p441 = scmp.eq.s32.totalorder %s36, 1
      %p442 = por %p440, %p441
      %p444 = scmp.ne.s32.totalorder %s427, %s443
      %p445 = scmp.eq.s32.totalorder %s36, 0
      %p446 = por %p444, %p445
      %s447 = ssub.s32 %s30, %s37
      %p448 = scmp.eq.s32.totalorder %s447, 0
      %s450 = sadd.s32 %s449, 1
      %s451 = scalar_select %p448, %s449, %s450
      %p454 = pneg %p448
      %p455 = scmp.eq.s32.totalorder %s30, 1
      %p456 = por %p454, %p455
      %p457 = scmp.ne.s32.totalorder %s449, %s452
      %p458 = scmp.eq.s32.totalorder %s30, 0
      %p459 = por %p457, %p458
      %p460 = scmp.ne.s32.totalorder %s449, %s452
      %p461 = scmp.eq.s32.totalorder %s35, 1
      %p462 = por %p460, %p461
      %p463 = scmp.ne.s32.totalorder %s452, %s453
      %p464 = scmp.eq.s32.totalorder %s35, 0
      %p465 = por %p463, %p464
      %p466 = scmp.ne.s32.totalorder %s452, %s453
      %p467 = scmp.eq.s32.totalorder %s36, 1
      %p468 = por %p466, %p467
      %p470 = scmp.ne.s32.totalorder %s453, %s469
      %p471 = scmp.eq.s32.totalorder %s36, 0
      %p472 = por %p470, %p471
      %p473 = scmp.le.s32.totalorder 1, %s30
      %p474 = scmp.lt.s32.totalorder %s30, 3
      %p475 = pnand %p473, %p474
      %p476 = pneg %p475
      // Predicated region
      $region9: #{eeg_inception_forward.1} parent=5 // pred_check
        _
      $region10: #{eeg_inception_forward.1} parent=5 // pred_check_branch
        %478 = sbr.rel (%p475) target = $region12
      $region11: #{eeg_inception_forward.1} parent=5 // pred_region
        %s479 = ssub.s32 %s30, 1
        // Predicated region
        $region13: #{eeg_inception_forward.1} parent=11 // pred_check
          %p480 = pneg %p77
        $region14: #{eeg_inception_forward.1} parent=11 // pred_check_branch
          %482 = sbr.rel (%p480) target = $region16
        $region15: #{eeg_inception_forward.1} parent=11 // pred_region
          %s484 = ssub.s32 31616, 31616
          %485 = vsyncadd [#allocation4], %s484
          %s486 = sshll.u32 [#allocation3], 4
          %s487 = int_to_ptr.vmem [resolvable:$true] %s486
          %492 = dma.hbm_to_vmem [thread:$0]  %s1, 31616, %s487, [#allocation4], 2432, 2432, 152
        $region16: #{eeg_inception_forward.1} parent=11 // pred_fallthru
          _
        // Predicated region
        $region17: #{eeg_inception_forward.1} parent=11 // pred_check
          %p493 = pneg %p98
        $region18: #{eeg_inception_forward.1} parent=11 // pred_check_branch
          %495 = sbr.rel (%p493) target = $region20
        $region19: #{eeg_inception_forward.1} parent=11 // pred_region
          _
        $region20: #{eeg_inception_forward.1} parent=11 // pred_fallthru
          _
        // Predicated region
        $region21: #{eeg_inception_forward.1} parent=11 // pred_check
          %p496 = pneg %p119
        $region22: #{eeg_inception_forward.1} parent=11 // pred_check_branch
          %498 = sbr.rel (%p496) target = $region24
        $region23: #{eeg_inception_forward.1} parent=11 // pred_region
          _
        $region24: #{eeg_inception_forward.1} parent=11 // pred_fallthru
          _
        // Predicated region
        $region25: #{eeg_inception_forward.1} parent=11 // pred_check
          %p499 = pneg %p140
        $region26: #{eeg_inception_forward.1} parent=11 // pred_check_branch
          %501 = sbr.rel (%p499) target = $region28
        $region27: #{eeg_inception_forward.1} parent=11 // pred_region
          _
        $region28: #{eeg_inception_forward.1} parent=11 // pred_fallthru
          _
        // Predicated region
        $region29: #{eeg_inception_forward.1} parent=11 // pred_check
          %p502 = pneg %p161
        $region30: #{eeg_inception_forward.1} parent=11 // pred_check_branch
          %504 = sbr.rel (%p502) target = $region32
        $region31: #{eeg_inception_forward.1} parent=11 // pred_region
          _
        $region32: #{eeg_inception_forward.1} parent=11 // pred_fallthru
          _
        // Predicated region
        $region33: #{eeg_inception_forward.1} parent=11 // pred_check
          %p505 = pneg %p182
        $region34: #{eeg_inception_forward.1} parent=11 // pred_check_branch
          %507 = sbr.rel (%p505) target = $region36
        $region35: #{eeg_inception_forward.1} parent=11 // pred_region
          _
        $region36: #{eeg_inception_forward.1} parent=11 // pred_fallthru
          _
        // Predicated region
        $region37: #{eeg_inception_forward.1} parent=11 // pred_check
          %p508 = pneg %p203
        $region38: #{eeg_inception_forward.1} parent=11 // pred_check_branch
          %510 = sbr.rel (%p508) target = $region40
        $region39: #{eeg_inception_forward.1} parent=11 // pred_region
          %s512 = ssub.s32 4608, 4608
          %513 = vsyncadd [#allocation6], %s512
          %s514 = sshll.u32 [#allocation5], 4
          %s515 = int_to_ptr.vmem [resolvable:$true] %s514
          %520 = dma.hbm_to_vmem [thread:$0]  %s7, 4608, %s515, [#allocation6], 1536, 1536, 96
        $region40: #{eeg_inception_forward.1} parent=11 // pred_fallthru
          _
        // Predicated region
        $region41: #{eeg_inception_forward.1} parent=11 // pred_check
          %p521 = pneg %p224
        $region42: #{eeg_inception_forward.1} parent=11 // pred_check_branch
          %523 = sbr.rel (%p521) target = $region44
        $region43: #{eeg_inception_forward.1} parent=11 // pred_region
          _
        $region44: #{eeg_inception_forward.1} parent=11 // pred_fallthru
          _
        // Predicated region
        $region45: #{eeg_inception_forward.1} parent=11 // pred_check
          %p524 = pneg %p245
        $region46: #{eeg_inception_forward.1} parent=11 // pred_check_branch
          %526 = sbr.rel (%p524) target = $region48
        $region47: #{eeg_inception_forward.1} parent=11 // pred_region
          _
        $region48: #{eeg_inception_forward.1} parent=11 // pred_fallthru
          _
        // Predicated region
        $region49: #{eeg_inception_forward.1} parent=11 // pred_check
          %p527 = pneg %p266
        $region50: #{eeg_inception_forward.1} parent=11 // pred_check_branch
          %529 = sbr.rel (%p527) target = $region52
        $region51: #{eeg_inception_forward.1} parent=11 // pred_region
          _
        $region52: #{eeg_inception_forward.1} parent=11 // pred_fallthru
          _
        // Predicated region
        $region53: #{eeg_inception_forward.1} parent=11 // pred_check
          %p530 = pneg %p287
        $region54: #{eeg_inception_forward.1} parent=11 // pred_check_branch
          %532 = sbr.rel (%p530) target = $region56
        $region55: #{eeg_inception_forward.1} parent=11 // pred_region
          _
        $region56: #{eeg_inception_forward.1} parent=11 // pred_fallthru
          _
        // Predicated region
        $region57: #{eeg_inception_forward.1} parent=11 // pred_check
          %p533 = pneg %p308
        $region58: #{eeg_inception_forward.1} parent=11 // pred_check_branch
          %535 = sbr.rel (%p533) target = $region60
        $region59: #{eeg_inception_forward.1} parent=11 // pred_region
          _
        $region60: #{eeg_inception_forward.1} parent=11 // pred_fallthru
          _
        // Predicated region
        $region61: #{eeg_inception_forward.1} parent=11 // pred_check
          %p536 = pneg %p329
        $region62: #{eeg_inception_forward.1} parent=11 // pred_check_branch
          %538 = sbr.rel (%p536) target = $region64
        $region63: #{eeg_inception_forward.1} parent=11 // pred_region
          _
        $region64: #{eeg_inception_forward.1} parent=11 // pred_fallthru
          _
        // Predicated region
        $region65: #{eeg_inception_forward.1} parent=11 // pred_check
          %p539 = pneg %p350
        $region66: #{eeg_inception_forward.1} parent=11 // pred_check_branch
          %541 = sbr.rel (%p539) target = $region68
        $region67: #{eeg_inception_forward.1} parent=11 // pred_region
          _
        $region68: #{eeg_inception_forward.1} parent=11 // pred_fallthru
          _
        // Predicated region
        $region69: #{eeg_inception_forward.1} parent=11 // pred_check
          %p542 = pneg %p371
        $region70: #{eeg_inception_forward.1} parent=11 // pred_check_branch
          %544 = sbr.rel (%p542) target = $region72
        $region71: #{eeg_inception_forward.1} parent=11 // pred_region
          _
        $region72: #{eeg_inception_forward.1} parent=11 // pred_fallthru
          _
        // Predicated region
        $region73: #{eeg_inception_forward.1} parent=11 // pred_check
          %p545 = pneg %p392
        $region74: #{eeg_inception_forward.1} parent=11 // pred_check_branch
          %547 = sbr.rel (%p545) target = $region76
        $region75: #{eeg_inception_forward.1} parent=11 // pred_region
          _
        $region76: #{eeg_inception_forward.1} parent=11 // pred_fallthru
          _
        // Predicated region
        $region77: #{eeg_inception_forward.1} parent=11 // pred_check
          %p548 = pneg %p413
        $region78: #{eeg_inception_forward.1} parent=11 // pred_check_branch
          %550 = sbr.rel (%p548) target = $region80
        $region79: #{eeg_inception_forward.1} parent=11 // pred_region
          _
        $region80: #{eeg_inception_forward.1} parent=11 // pred_fallthru
          _
      $region12: #{eeg_inception_forward.1} parent=5 // pred_fallthru
        _
      %p551 = scmp.lt.s32.totalorder %s30, 2
      // Predicated region
      $region81: #{eeg_inception_forward.1} parent=5 // pred_check
        %p552 = pneg %p551
      $region82: #{eeg_inception_forward.1} parent=5 // pred_check_branch
        %554 = sbr.rel (%p552) target = $region84
      $region83: #{eeg_inception_forward.1} parent=5 // pred_region
        // Predicated region
        $region85: #{eeg_inception_forward.1} parent=83 // pred_check
          %p555 = pneg %p50
        $region86: #{eeg_inception_forward.1} parent=83 // pred_check_branch
          %557 = sbr.rel (%p555) target = $region88
        $region87: #{eeg_inception_forward.1} parent=83 // pred_region
          %p558 = scmp.lt.s32.totalorder %s30, 1
          %s559 = scalar_select %p558, %s30, 1
          %s560 = smul.addr %s559, 8
          %s561 = scalar_lea.vmem %s0, %s560
        $region88: #{eeg_inception_forward.1} parent=83 // pred_fallthru
          _
      $region84: #{eeg_inception_forward.1} parent=5 // pred_fallthru
        _
      %p562 = scmp.le.s32.totalorder 1, %s30
      %p563 = scmp.lt.s32.totalorder %s30, 3
      %p564 = pnand %p562, %p563
      %p565 = pneg %p564
      // Predicated region
      $region89: #{eeg_inception_forward.1} parent=5 // pred_check
        _
      $region90: #{eeg_inception_forward.1} parent=5 // pred_check_branch
        %567 = sbr.rel (%p564) target = $region92
      $region91: #{eeg_inception_forward.1} parent=5 // pred_region
        %s568 = ssub.s32 %s30, 1
        // Predicated region
        $region93: #{eeg_inception_forward.1} parent=91 // pred_check
          %p569 = pneg %p77
        $region94: #{eeg_inception_forward.1} parent=91 // pred_check_branch
          %571 = sbr.rel (%p569) target = $region96
        $region95: #{eeg_inception_forward.1} parent=91 // pred_region
          %572 = dma.done [#allocation4], 31616
        $region96: #{eeg_inception_forward.1} parent=91 // pred_fallthru
          _
        // Predicated region
        $region97: #{eeg_inception_forward.1} parent=91 // pred_check
          %p573 = pneg %p203
        $region98: #{eeg_inception_forward.1} parent=91 // pred_check_branch
          %575 = sbr.rel (%p573) target = $region100
        $region99: #{eeg_inception_forward.1} parent=91 // pred_region
          %576 = dma.done [#allocation6], 4608
        $region100: #{eeg_inception_forward.1} parent=91 // pred_fallthru
          _
        %p577 = scmp.lt.s32.totalorder %s35, 1
        %s578 = scalar_select %p577, %s35, 1
        %s579 = smul.addr %s578, 8
        %s580 = scalar_lea.vmem %s0, %s579
        %p581 = pneg %p56
        %p582 = pneg %p53
        %p583 = pneg %p77
        %p584 = pneg %p74
        %p585 = pneg %p98
        %p586 = pneg %p95
        %p587 = pneg %p119
        %p588 = pneg %p116
        %p589 = pneg %p140
        %p590 = pneg %p137
        %p591 = pneg %p161
        %p592 = pneg %p158
        %p593 = pneg %p182
        %p594 = pneg %p179
        %p595 = pneg %p203
        %p596 = pneg %p200
        %p597 = pneg %p224
        %p598 = pneg %p221
        %p599 = pneg %p245
        %p600 = pneg %p242
        %p601 = pneg %p266
        %p602 = pneg %p263
        %p603 = pneg %p287
        %p604 = pneg %p284
        %p605 = pneg %p308
        %p606 = pneg %p305
        %p607 = pneg %p329
        %p608 = pneg %p326
        %p609 = pneg %p350
        %p610 = pneg %p347
        %p611 = pneg %p371
        %p612 = pneg %p368
        %p613 = pneg %p392
        %p614 = pneg %p389
        %p615 = pneg %p413
        %p616 = pneg %p410
        %p617 = pneg %p439
        %p618 = pneg %p436
        %p619 = scmp.lt.s32.totalorder %s35, 1
        %s620 = scalar_select %p619, %s35, 1
        %s621 = smul.addr %s620, 8
        %s622 = scalar_lea.vmem %s18, %s621
        %p623 = pneg %p465
        %p624 = pneg %p462
        %p625 = scmp.lt.s32.totalorder %s35, 1
        %s626 = scalar_select %p625, %s35, 1
        %s627 = scalar_lea.vmem %s19, %s626
        %p628 = scmp.lt.s32.totalorder %s35, 1
        %s629 = scalar_select %p628, %s35, 1
        %s630 = smul.addr %s629, 8
        %s631 = scalar_lea.vmem %s0, %s630
        %p632 = scmp.lt.s32.totalorder %s35, 1
        %s633 = scalar_select %p632, %s35, 1
        %s634 = smul.addr %s633, 8
        %s635 = scalar_lea.vmem %s18, %s634
        %p636 = scmp.lt.s32.totalorder %s35, 1
        %s637 = scalar_select %p636, %s35, 1
        %s638 = scalar_lea.vmem %s19, %s637
        %v639 = vld [vmem:[%s631] sm:$0xff]
        %v640 = vld [vmem:[#allocation3] sm:$0xff]
        %v641 = vld [vmem:[#allocation3 + $0x8] sm:$0xff]
        %v642 = vld [vmem:[#allocation3 + $0x10] sm:$0xff]
        %v643 = vld [vmem:[#allocation3 + $0x18] sm:$0xff]
        %v644 = vld [vmem:[#allocation3 + $0x20] sm:$0xff]
        %v645 = vld [vmem:[#allocation3 + $0x28] sm:$0xff]
        %v646 = vld [vmem:[#allocation3 + $0x30] sm:$0xff]
        %v647 = vld [vmem:[#allocation3 + $0x38] sm:$0xff]
        %v648 = vld [vmem:[#allocation3 + $0x40] sm:$0xff]
        %v649 = vld [vmem:[#allocation3 + $0x48] sm:$0xff]
        %v650 = vld [vmem:[#allocation3 + $0x50] sm:$0xff]
        %v651 = vld [vmem:[#allocation3 + $0x58] sm:$0xff]
        %v652 = vld [vmem:[#allocation3 + $0x60] sm:$0xff]
        %v653 = vld [vmem:[#allocation3 + $0x68] sm:$0xff]
        %v654 = vld [vmem:[#allocation3 + $0x70] sm:$0xff]
        %v655 = vld [vmem:[#allocation3 + $0x78] sm:$0xff]
        %v656 = vld [vmem:[#allocation3 + $0x80] sm:$0xff]
        %v657 = vld [vmem:[#allocation3 + $0x88] sm:$0xff]
        %v658 = vld [vmem:[#allocation3 + $0x90] sm:$0xff]
        %v659 = vld [vmem:[#allocation3 + $0x98] sm:$0xff]
        %v660 = vld [vmem:[#allocation3 + $0xa0] sm:$0xff]
        %v661 = vld [vmem:[#allocation3 + $0xa8] sm:$0xff]
        %v662 = vld [vmem:[#allocation3 + $0xb0] sm:$0xff]
        %v663 = vld [vmem:[#allocation3 + $0xb8] sm:$0xff]
        %v664 = vld [vmem:[#allocation3 + $0xc0] sm:$0xff]
        %v665 = vld [vmem:[#allocation3 + $0xc8] sm:$0xff]
        %v666 = vld [vmem:[#allocation3 + $0xd0] sm:$0xff]
        %v667 = vld [vmem:[#allocation3 + $0xd8] sm:$0xff]
        %v668 = vld [vmem:[#allocation3 + $0xe0] sm:$0xff]
        %v669 = vld [vmem:[#allocation3 + $0xe8] sm:$0xff]
        %v670 = vld [vmem:[#allocation3 + $0xf0] sm:$0xff]
        %v671 = vld [vmem:[#allocation3 + $0xf8] sm:$0xff]
        %v672 = vld [vmem:[#allocation3 + $0x100] sm:$0xff]
        %v673 = vld [vmem:[#allocation3 + $0x108] sm:$0xff]
        %v674 = vld [vmem:[#allocation3 + $0x110] sm:$0xff]
        %v675 = vld [vmem:[#allocation3 + $0x118] sm:$0xff]
        %v676 = vld [vmem:[#allocation3 + $0x120] sm:$0xff]
        %v677 = vld [vmem:[#allocation3 + $0x128] sm:$0xff]
        %v678 = vld [vmem:[#allocation3 + $0x130] sm:$0xff]
        %v679 = vld [vmem:[#allocation3 + $0x138] sm:$0xff]
        %v680 = vld [vmem:[#allocation3 + $0x140] sm:$0xff]
        %v681 = vld [vmem:[#allocation3 + $0x148] sm:$0xff]
        %v682 = vld [vmem:[#allocation3 + $0x150] sm:$0xff]
        %v683 = vld [vmem:[#allocation3 + $0x158] sm:$0xff]
        %v684 = vld [vmem:[#allocation3 + $0x160] sm:$0xff]
        %v685 = vld [vmem:[#allocation3 + $0x168] sm:$0xff]
        %v686 = vld [vmem:[#allocation3 + $0x170] sm:$0xff]
        %v687 = vld [vmem:[#allocation3 + $0x178] sm:$0xff]
        %v688 = vld [vmem:[#allocation3 + $0x180] sm:$0xff]
        %v689 = vld [vmem:[#allocation3 + $0x188] sm:$0xff]
        %v690 = vld [vmem:[#allocation3 + $0x190] sm:$0xff]
        %v691 = vld [vmem:[#allocation3 + $0x198] sm:$0xff]
        %v692 = vld [vmem:[#allocation3 + $0x1a0] sm:$0xff]
        %v693 = vld [vmem:[#allocation3 + $0x1a8] sm:$0xff]
        %v694 = vld [vmem:[#allocation3 + $0x1b0] sm:$0xff]
        %v695 = vld [vmem:[#allocation3 + $0x1b8] sm:$0xff]
        %v696 = vld [vmem:[#allocation3 + $0x1c0] sm:$0xff]
        %v697 = vld [vmem:[#allocation3 + $0x1c8] sm:$0xff]
        %v698 = vld [vmem:[#allocation3 + $0x1d0] sm:$0xff]
        %v699 = vld [vmem:[#allocation3 + $0x1d8] sm:$0xff]
        %v700 = vld [vmem:[#allocation3 + $0x1e0] sm:$0xff]
        %v701 = vld [vmem:[#allocation3 + $0x1e8] sm:$0xff]
        %v702 = vld [vmem:[#allocation3 + $0x1f0] sm:$0xff]
        %v703 = vld [vmem:[#allocation3 + $0x1f8] sm:$0xff]
        %v704 = vld [vmem:[#allocation3 + $0x200] sm:$0xff]
        %v705 = vld [vmem:[#allocation3 + $0x208] sm:$0xff]
        %v706 = vld [vmem:[#allocation3 + $0x210] sm:$0xff]
        %v707 = vld [vmem:[#allocation3 + $0x218] sm:$0xff]
        %v708 = vld [vmem:[#allocation3 + $0x220] sm:$0xff]
        %v709 = vld [vmem:[#allocation3 + $0x228] sm:$0xff]
        %v710 = vld [vmem:[#allocation3 + $0x230] sm:$0xff]
        %v711 = vld [vmem:[#allocation3 + $0x238] sm:$0xff]
        %v712 = vld [vmem:[#allocation3 + $0x240] sm:$0xff]
        %v713 = vld [vmem:[#allocation3 + $0x248] sm:$0xff]
        %v714 = vld [vmem:[#allocation3 + $0x250] sm:$0xff]
        %v715 = vld [vmem:[#allocation3 + $0x258] sm:$0xff]
        %v716 = vld [vmem:[#allocation3 + $0x260] sm:$0xff]
        %v717 = vld [vmem:[#allocation3 + $0x268] sm:$0xff]
        %v718 = vld [vmem:[#allocation3 + $0x270] sm:$0xff]
        %v719 = vld [vmem:[#allocation3 + $0x278] sm:$0xff]
        %v720 = vld [vmem:[#allocation3 + $0x280] sm:$0xff]
        %v721 = vld [vmem:[#allocation3 + $0x288] sm:$0xff]
        %v722 = vld [vmem:[#allocation3 + $0x290] sm:$0xff]
        %v723 = vld [vmem:[#allocation3 + $0x298] sm:$0xff]
        %v724 = vld [vmem:[#allocation3 + $0x2a0] sm:$0xff]
        %v725 = vld [vmem:[#allocation3 + $0x2a8] sm:$0xff]
        %v726 = vld [vmem:[#allocation3 + $0x2b0] sm:$0xff]
        %v727 = vld [vmem:[#allocation3 + $0x2b8] sm:$0xff]
        %v728 = vld [vmem:[#allocation3 + $0x2c0] sm:$0xff]
        %v729 = vld [vmem:[#allocation3 + $0x2c8] sm:$0xff]
        %v730 = vld [vmem:[#allocation3 + $0x2d0] sm:$0xff]
        %v731 = vld [vmem:[#allocation3 + $0x2d8] sm:$0xff]
        %v732 = vld [vmem:[#allocation3 + $0x2e0] sm:$0xff]
        %v733 = vld [vmem:[#allocation3 + $0x2e8] sm:$0xff]
        %v734 = vld [vmem:[#allocation3 + $0x2f0] sm:$0xff]
        %v735 = vld [vmem:[#allocation3 + $0x2f8] sm:$0xff]
        %v736 = vld [vmem:[#allocation3 + $0x300] sm:$0xff]
        %v737 = vld [vmem:[#allocation3 + $0x308] sm:$0xff]
        %v738 = vld [vmem:[#allocation3 + $0x310] sm:$0xff]
        %v739 = vld [vmem:[#allocation3 + $0x318] sm:$0xff]
        %v740 = vld [vmem:[#allocation3 + $0x320] sm:$0xff]
        %v741 = vld [vmem:[#allocation3 + $0x328] sm:$0xff]
        %v742 = vld [vmem:[#allocation3 + $0x330] sm:$0xff]
        %v743 = vld [vmem:[#allocation3 + $0x338] sm:$0xff]
        %v744 = vld [vmem:[#allocation3 + $0x340] sm:$0xff]
        %v745 = vld [vmem:[#allocation3 + $0x348] sm:$0xff]
        %v746 = vld [vmem:[#allocation3 + $0x350] sm:$0xff]
        %v747 = vld [vmem:[#allocation3 + $0x358] sm:$0xff]
        %v748 = vld [vmem:[#allocation3 + $0x360] sm:$0xff]
        %v749 = vld [vmem:[#allocation3 + $0x368] sm:$0xff]
        %v750 = vld [vmem:[#allocation3 + $0x370] sm:$0xff]
        %v751 = vld [vmem:[#allocation3 + $0x378] sm:$0xff]
        %v752 = vld [vmem:[#allocation3 + $0x380] sm:$0xff]
        %v753 = vld [vmem:[#allocation3 + $0x388] sm:$0xff]
        %v754 = vld [vmem:[#allocation3 + $0x390] sm:$0xff]
        %v755 = vld [vmem:[#allocation3 + $0x398] sm:$0xff]
        %v756 = vld [vmem:[#allocation3 + $0x3a0] sm:$0xff]
        %v757 = vld [vmem:[#allocation3 + $0x3a8] sm:$0xff]
        %v758 = vld [vmem:[#allocation3 + $0x3b0] sm:$0xff]
        %v759 = vld [vmem:[#allocation3 + $0x3b8] sm:$0xff]
        %v760 = vld [vmem:[#allocation3 + $0x3c0] sm:$0xff]
        %v761 = vld [vmem:[#allocation3 + $0x3c8] sm:$0xff]
        %v762 = vld [vmem:[#allocation3 + $0x3d0] sm:$0xff]
        %v763 = vld [vmem:[#allocation3 + $0x3d8] sm:$0xff]
        %v764 = vld [vmem:[#allocation3 + $0x3e0] sm:$0xff]
        %v765 = vld [vmem:[#allocation3 + $0x3e8] sm:$0xff]
        %v766 = vld [vmem:[#allocation3 + $0x3f0] sm:$0xff]
        %v767 = vld [vmem:[#allocation3 + $0x3f8] sm:$0xff]
        %v768 = vld [vmem:[#allocation3 + $0x400] sm:$0xff]
        %v769 = vld [vmem:[#allocation3 + $0x408] sm:$0xff]
        %v770 = vld [vmem:[#allocation3 + $0x410] sm:$0xff]
        %v771 = vld [vmem:[#allocation3 + $0x418] sm:$0xff]
        %v772 = vld [vmem:[#allocation3 + $0x420] sm:$0xff]
        %v773 = vld [vmem:[#allocation3 + $0x428] sm:$0xff]
        %v774 = vld [vmem:[#allocation3 + $0x430] sm:$0xff]
        %v775 = vld [vmem:[#allocation3 + $0x438] sm:$0xff]
        %v776 = vld [vmem:[#allocation3 + $0x440] sm:$0xff]
        %v777 = vld [vmem:[#allocation3 + $0x448] sm:$0xff]
        %v778 = vld [vmem:[#allocation3 + $0x450] sm:$0xff]
        %v779 = vld [vmem:[#allocation3 + $0x458] sm:$0xff]
        %v780 = vld [vmem:[#allocation3 + $0x460] sm:$0xff]
        %v781 = vld [vmem:[#allocation3 + $0x468] sm:$0xff]
        %v782 = vld [vmem:[#allocation3 + $0x470] sm:$0xff]
        %v783 = vld [vmem:[#allocation3 + $0x478] sm:$0xff]
        %v784 = vld [vmem:[#allocation3 + $0x480] sm:$0xff]
        %v785 = vld [vmem:[#allocation3 + $0x488] sm:$0xff]
        %v786 = vld [vmem:[#allocation3 + $0x490] sm:$0xff]
        %v787 = vld [vmem:[#allocation3 + $0x498] sm:$0xff]
        %v788 = vld [vmem:[#allocation3 + $0x4a0] sm:$0xff]
        %v789 = vld [vmem:[#allocation3 + $0x4a8] sm:$0xff]
        %v790 = vld [vmem:[#allocation3 + $0x4b0] sm:$0xff]
        %v791 = vld [vmem:[#allocation3 + $0x4b8] sm:$0xff]
        %v792 = vld [vmem:[#allocation3 + $0x4c0] sm:$0xff]
        %v793 = vld [vmem:[#allocation3 + $0x4c8] sm:$0xff]
        %v794 = vld [vmem:[#allocation3 + $0x4d0] sm:$0xff]
        %v795 = vld [vmem:[#allocation3 + $0x4d8] sm:$0xff]
        %v796 = vld [vmem:[#allocation3 + $0x4e0] sm:$0xff]
        %v797 = vld [vmem:[#allocation3 + $0x4e8] sm:$0xff]
        %v798 = vld [vmem:[#allocation3 + $0x4f0] sm:$0xff]
        %v799 = vld [vmem:[#allocation3 + $0x4f8] sm:$0xff]
        %v800 = vld [vmem:[#allocation3 + $0x500] sm:$0xff]
        %v801 = vld [vmem:[#allocation3 + $0x508] sm:$0xff]
        %v802 = vld [vmem:[#allocation3 + $0x510] sm:$0xff]
        %v803 = vld [vmem:[#allocation3 + $0x518] sm:$0xff]
        %v804 = vld [vmem:[#allocation3 + $0x520] sm:$0xff]
        %v805 = vld [vmem:[#allocation3 + $0x528] sm:$0xff]
        %v806 = vld [vmem:[#allocation3 + $0x530] sm:$0xff]
        %v807 = vld [vmem:[#allocation3 + $0x538] sm:$0xff]
        %v808 = vld [vmem:[#allocation3 + $0x540] sm:$0xff]
        %v809 = vld [vmem:[#allocation3 + $0x548] sm:$0xff]
        %v810 = vld [vmem:[#allocation3 + $0x550] sm:$0xff]
        %v811 = vld [vmem:[#allocation3 + $0x558] sm:$0xff]
        %v812 = vld [vmem:[#allocation3 + $0x560] sm:$0xff]
        %v813 = vld [vmem:[#allocation3 + $0x568] sm:$0xff]
        %v814 = vld [vmem:[#allocation3 + $0x570] sm:$0xff]
        %v815 = vld [vmem:[#allocation3 + $0x578] sm:$0xff]
        %v816 = vld [vmem:[#allocation3 + $0x580] sm:$0xff]
        %v817 = vld [vmem:[#allocation3 + $0x588] sm:$0xff]
        %v818 = vld [vmem:[#allocation3 + $0x590] sm:$0xff]
        %v819 = vld [vmem:[#allocation3 + $0x598] sm:$0xff]
        %v820 = vld [vmem:[#allocation3 + $0x5a0] sm:$0xff]
        %v821 = vld [vmem:[#allocation3 + $0x5a8] sm:$0xff]
        %v822 = vld [vmem:[#allocation3 + $0x5b0] sm:$0xff]
        %v823 = vld [vmem:[#allocation3 + $0x5b8] sm:$0xff]
        %v824 = vld [vmem:[#allocation3 + $0x5c0] sm:$0xff]
        %v825 = vld [vmem:[#allocation3 + $0x5c8] sm:$0xff]
        %v826 = vld [vmem:[#allocation3 + $0x5d0] sm:$0xff]
        %v827 = vld [vmem:[#allocation3 + $0x5d8] sm:$0xff]
        %v828 = vld [vmem:[#allocation3 + $0x5e0] sm:$0xff]
        %v829 = vld [vmem:[#allocation3 + $0x5e8] sm:$0xff]
        %v830 = vld [vmem:[#allocation3 + $0x5f0] sm:$0xff]
        %v831 = vld [vmem:[#allocation3 + $0x5f8] sm:$0xff]
        %v832 = vld [vmem:[#allocation3 + $0x600] sm:$0xff]
        %v833 = vld [vmem:[#allocation3 + $0x608] sm:$0xff]
        %v834 = vld [vmem:[#allocation3 + $0x610] sm:$0xff]
        %v835 = vld [vmem:[#allocation3 + $0x618] sm:$0xff]
        %v836 = vld [vmem:[#allocation3 + $0x620] sm:$0xff]
        %v837 = vld [vmem:[#allocation3 + $0x628] sm:$0xff]
        %v838 = vld [vmem:[#allocation3 + $0x630] sm:$0xff]
        %v839 = vld [vmem:[#allocation3 + $0x638] sm:$0xff]
        %v840 = vld [vmem:[#allocation3 + $0x640] sm:$0xff]
        %v841 = vld [vmem:[#allocation3 + $0x648] sm:$0xff]
        %v842 = vld [vmem:[#allocation3 + $0x650] sm:$0xff]
        %v843 = vld [vmem:[#allocation3 + $0x658] sm:$0xff]
        %v844 = vld [vmem:[#allocation3 + $0x660] sm:$0xff]
        %v845 = vld [vmem:[#allocation3 + $0x668] sm:$0xff]
        %v846 = vld [vmem:[#allocation3 + $0x670] sm:$0xff]
        %v847 = vld [vmem:[#allocation3 + $0x678] sm:$0xff]
        %v848 = vld [vmem:[#allocation3 + $0x680] sm:$0xff]
        %v849 = vld [vmem:[#allocation3 + $0x688] sm:$0xff]
        %v850 = vld [vmem:[#allocation3 + $0x690] sm:$0xff]
        %v851 = vld [vmem:[#allocation3 + $0x698] sm:$0xff]
        %v852 = vld [vmem:[#allocation3 + $0x6a0] sm:$0xff]
        %v853 = vld [vmem:[#allocation3 + $0x6a8] sm:$0xff]
        %v854 = vld [vmem:[#allocation3 + $0x6b0] sm:$0xff]
        %v855 = vld [vmem:[#allocation3 + $0x6b8] sm:$0xff]
        %v856 = vld [vmem:[#allocation3 + $0x6c0] sm:$0xff]
        %v857 = vld [vmem:[#allocation3 + $0x6c8] sm:$0xff]
        %v858 = vld [vmem:[#allocation3 + $0x6d0] sm:$0xff]
        %v859 = vld [vmem:[#allocation3 + $0x6d8] sm:$0xff]
        %v860 = vld [vmem:[#allocation3 + $0x6e0] sm:$0xff]
        %v861 = vld [vmem:[#allocation3 + $0x6e8] sm:$0xff]
        %v862 = vld [vmem:[#allocation3 + $0x6f0] sm:$0xff]
        %v863 = vld [vmem:[#allocation3 + $0x6f8] sm:$0xff]
        %v864 = vld [vmem:[#allocation3 + $0x700] sm:$0xff]
        %v865 = vld [vmem:[#allocation3 + $0x708] sm:$0xff]
        %v866 = vld [vmem:[#allocation3 + $0x710] sm:$0xff]
        %v867 = vld [vmem:[#allocation3 + $0x718] sm:$0xff]
        %v868 = vld [vmem:[#allocation3 + $0x720] sm:$0xf]
        %v869 = vld [vmem:[#allocation3 + $0x728] sm:$0xf]
        %v870 = vld [vmem:[#allocation3 + $0x730] sm:$0xf]
        %v871 = vld [vmem:[#allocation3 + $0x738] sm:$0xf]
        %v872 = vld [vmem:[#allocation3 + $0x740] sm:$0xf]
        %v873 = vld [vmem:[#allocation3 + $0x748] sm:$0xf]
        %v874 = vld [vmem:[#allocation3 + $0x750] sm:$0xf]
        %v875 = vld [vmem:[#allocation3 + $0x758] sm:$0xf]
        %v876 = vld [vmem:[#allocation3 + $0x760] sm:$0xf]
        %v877 = vld [vmem:[#allocation3 + $0x768] sm:$0xf]
        %v878 = vld [vmem:[#allocation3 + $0x770] sm:$0xf]
        %v879 = vld [vmem:[#allocation3 + $0x778] sm:$0xf]
        %v880 = vld [vmem:[#allocation3 + $0x780] sm:$0xf]
        %v881 = vld [vmem:[#allocation3 + $0x788] sm:$0xf]
        %v882 = vld [vmem:[#allocation3 + $0x790] sm:$0xf]
        %v883 = vld [vmem:[#allocation3 + $0x798] sm:$0xf]
        %v884 = vld [vmem:[#allocation3 + $0x7a0] sm:$0xf]
        %v885 = vld [vmem:[#allocation3 + $0x7a8] sm:$0xf]
        %v886 = vld [vmem:[#allocation3 + $0x7b0] sm:$0xf]
        %vm887 = vcmask 818176
        %v889 = vsel %vm887, %v639, 0
        %vm891 = vcmask 1043456
        %v893 = vsel %vm891, %v868, 0
        %v896 = vsel %vm891, %v869, 0
        %v899 = vsel %vm891, %v870, 0
        %v902 = vsel %vm891, %v871, 0
        %v905 = vsel %vm891, %v872, 0
        %v908 = vsel %vm891, %v873, 0
        %v911 = vsel %vm891, %v874, 0
        %v914 = vsel %vm891, %v875, 0
        %v917 = vsel %vm891, %v876, 0
        %v920 = vsel %vm891, %v877, 0
        %v923 = vsel %vm891, %v878, 0
        %v926 = vsel %vm891, %v879, 0
        %v929 = vsel %vm891, %v880, 0
        %v932 = vsel %vm891, %v881, 0
        %v935 = vsel %vm891, %v882, 0
        %v938 = vsel %vm891, %v883, 0
        %v941 = vsel %vm891, %v884, 0
        %v944 = vsel %vm891, %v885, 0
        %v947 = vsel %vm891, %v886, 0
        %949 = vmatprep.subr.mxu0 0.0
        %950 = vmatpush1.msra.mxu0 0.0
        %951 = vmatprep.subr.mxu0 0.0
        %952 = vmatpush1.msra.mxu0 0.0
        %953 = vmatprep.subr.mxu0 0.0
        %954 = vmatpush1.msra.mxu0 0.0
        %955 = vmatprep.subr.mxu0 %v896
        %956 = vmatpush1.msra.mxu0 %v893
        %957 = vmatprep.subr.mxu0 %v850
        %958 = vmatpush1.msra.mxu0 %v849
        %959 = vmatprep.subr.mxu0 %v831
        %960 = vmatpush1.msra.mxu0 %v830
        %961 = vmatprep.subr.mxu0 %v812
        %962 = vmatpush1.msra.mxu0 %v811
        %963 = vmatprep.subr.mxu0 %v793
        %964 = vmatpush1.msra.mxu0 %v792
        %965 = vmatprep.subr.mxu0 %v774
        %966 = vmatpush1.msra.mxu0 %v773
        %967 = vmatprep.subr.mxu0 %v755
        %968 = vmatpush1.msra.mxu0 %v754
        %969 = vmatprep.subr.mxu0 %v736
        %970 = vmatpush1.msra.mxu0 %v735
        %971 = vmatprep.subr.mxu0 %v717
        %972 = vmatpush1.msra.mxu0 %v716
        %973 = vmatprep.subr.mxu0 %v698
        %974 = vmatpush1.msra.mxu0 %v697
        %975 = vmatprep.subr.mxu0 %v679
        %976 = vmatpush1.msra.mxu0 %v678
        %977 = vmatprep.subr.mxu0 %v660
        %978 = vmatpush1.msra.mxu0 %v659
        %979 = vmatprep.subr.mxu0 %v641
        %980 = vmatpush1.msra.mxu0 %v640
        %981 = vmatprep.subr.mxu0 0.0
        %982 = vmatpush2.msra.mxu0 0.0
        %983 = vmatprep.subr.mxu0 0.0
        %984 = vmatpush2.msra.mxu0 0.0
        %985 = vmatprep.subr.mxu0 0.0
        %986 = vmatpush2.msra.mxu0 0.0
        %987 = vmatprep.subr.mxu0 0.0
        %988 = vmatpush2.msra.mxu0 0.0
        %989 = vmatprep.subr.mxu0 0.0
        %990 = vmatpush2.msra.mxu0 0.0
        %991 = vmatprep.subr.mxu0 0.0
        %992 = vmatpush2.msra.mxu0 0.0
        %993 = vmatprep.subr.mxu0 0.0
        %994 = vmatpush2.msra.mxu0 0.0
        %995 = vmatprep.subr.mxu0 0.0
        %996 = vmatpush2.msra.mxu0 0.0
        %997 = vmatprep.subr.mxu0 0.0
        %998 = vmatpush2.msra.mxu0 0.0
        %999 = vmatprep.subr.mxu0 0.0
        %1000 = vmatpush2.msra.mxu0 0.0
        %1001 = vmatprep.subr.mxu0 0.0
        %1002 = vmatpush2.msra.mxu0 0.0
        %1003 = vmatprep.subr.mxu0 0.0
        %1004 = vmatpush2.msra.mxu0 0.0
        %1005 = vmatprep.subr.mxu0 0.0
        %1006 = vmatpush2.msra.mxu0 0.0
        %1007 = vmatprep.subr.mxu0 0.0
        %1008 = vmatpush2.msra.mxu0 0.0
        %1009 = vmatprep.subr.mxu0 0.0
        %1010 = vmatpush2.msra.mxu0 0.0
        %1011 = vmatprep.subr.mxu0 0.0
        %1012 = vmatpush2.msra.mxu0 0.0
        %1013 = vmatprep.mubr.f32.mxu0 0.0
        %1014 = vmatmul.mubr.f32.gmra.mxu0 %v889
        %v1015 = vpop.f32.mrf.mxu0
        %v1016 = vadd.f32 0.0, %v1015
        %v1017 = vpop.f32.mrf.mxu0
        %v1018 = vadd.f32 0.0, %v1017
        %1019 = vdwg.mxu0
        %1020 = vmatprep.subr.mxu0 0.0
        %1021 = vmatpush1.msra.mxu0 0.0
        %1022 = vmatprep.subr.mxu0 0.0
        %1023 = vmatpush1.msra.mxu0 0.0
        %1024 = vmatprep.subr.mxu0 0.0
        %1025 = vmatpush1.msra.mxu0 0.0
        %1026 = vmatprep.subr.mxu0 %v902
        %1027 = vmatpush1.msra.mxu0 %v899
        %1028 = vmatprep.subr.mxu0 %v852
        %1029 = vmatpush1.msra.mxu0 %v851
        %1030 = vmatprep.subr.mxu0 %v833
        %1031 = vmatpush1.msra.mxu0 %v832
        %1032 = vmatprep.subr.mxu0 %v814
        %1033 = vmatpush1.msra.mxu0 %v813
        %1034 = vmatprep.subr.mxu0 %v795
        %1035 = vmatpush1.msra.mxu0 %v794
        %1036 = vmatprep.subr.mxu0 %v776
        %1037 = vmatpush1.msra.mxu0 %v775
        %1038 = vmatprep.subr.mxu0 %v757
        %1039 = vmatpush1.msra.mxu0 %v756
        %1040 = vmatprep.subr.mxu0 %v738
        %1041 = vmatpush1.msra.mxu0 %v737
        %1042 = vmatprep.subr.mxu0 %v719
        %1043 = vmatpush1.msra.mxu0 %v718
        %1044 = vmatprep.subr.mxu0 %v700
        %1045 = vmatpush1.msra.mxu0 %v699
        %1046 = vmatprep.subr.mxu0 %v681
        %1047 = vmatpush1.msra.mxu0 %v680
        %1048 = vmatprep.subr.mxu0 %v662
        %1049 = vmatpush1.msra.mxu0 %v661
        %1050 = vmatprep.subr.mxu0 %v643
        %1051 = vmatpush1.msra.mxu0 %v642
        %1052 = vmatprep.subr.mxu0 0.0
        %1053 = vmatpush2.msra.mxu0 0.0
        %1054 = vmatprep.subr.mxu0 0.0
        %1055 = vmatpush2.msra.mxu0 0.0
        %1056 = vmatprep.subr.mxu0 0.0
        %1057 = vmatpush2.msra.mxu0 0.0
        %1058 = vmatprep.subr.mxu0 0.0
        %1059 = vmatpush2.msra.mxu0 0.0
        %1060 = vmatprep.subr.mxu0 0.0
        %1061 = vmatpush2.msra.mxu0 0.0
        %1062 = vmatprep.subr.mxu0 0.0
        %1063 = vmatpush2.msra.mxu0 0.0
        %1064 = vmatprep.subr.mxu0 0.0
        %1065 = vmatpush2.msra.mxu0 0.0
        %1066 = vmatprep.subr.mxu0 0.0
        %1067 = vmatpush2.msra.mxu0 0.0
        %1068 = vmatprep.subr.mxu0 0.0
        %1069 = vmatpush2.msra.mxu0 0.0
        %1070 = vmatprep.subr.mxu0 0.0
        %1071 = vmatpush2.msra.mxu0 0.0
        %1072 = vmatprep.subr.mxu0 0.0
        %1073 = vmatpush2.msra.mxu0 0.0
        %1074 = vmatprep.subr.mxu0 0.0
        %1075 = vmatpush2.msra.mxu0 0.0
        %1076 = vmatprep.subr.mxu0 0.0
        %1077 = vmatpush2.msra.mxu0 0.0
        %1078 = vmatprep.subr.mxu0 0.0
        %1079 = vmatpush2.msra.mxu0 0.0
        %1080 = vmatprep.subr.mxu0 0.0
        %1081 = vmatpush2.msra.mxu0 0.0
        %1082 = vmatprep.subr.mxu0 0.0
        %1083 = vmatpush2.msra.mxu0 0.0
        %1084 = vmatprep.mubr.f32.mxu0 0.0
        %1085 = vmatmul.mubr.f32.gmra.mxu0 %v889
        %v1086 = vpop.f32.mrf.mxu0
        %v1087 = vadd.f32 0.0, %v1086
        %v1088 = vpop.f32.mrf.mxu0
        %v1089 = vadd.f32 0.0, %v1088
        %1090 = vdwg.mxu0
        %1091 = vmatprep.subr.mxu0 0.0
        %1092 = vmatpush1.msra.mxu0 0.0
        %1093 = vmatprep.subr.mxu0 0.0
        %1094 = vmatpush1.msra.mxu0 0.0
        %1095 = vmatprep.subr.mxu0 0.0
        %1096 = vmatpush1.msra.mxu0 0.0
        %1097 = vmatprep.subr.mxu0 %v908
        %1098 = vmatpush1.msra.mxu0 %v905
        %1099 = vmatprep.subr.mxu0 %v854
        %1100 = vmatpush1.msra.mxu0 %v853
        %1101 = vmatprep.subr.mxu0 %v835
        %1102 = vmatpush1.msra.mxu0 %v834
        %1103 = vmatprep.subr.mxu0 %v816
        %1104 = vmatpush1.msra.mxu0 %v815
        %1105 = vmatprep.subr.mxu0 %v797
        %1106 = vmatpush1.msra.mxu0 %v796
        %1107 = vmatprep.subr.mxu0 %v778
        %1108 = vmatpush1.msra.mxu0 %v777
        %1109 = vmatprep.subr.mxu0 %v759
        %1110 = vmatpush1.msra.mxu0 %v758
        %1111 = vmatprep.subr.mxu0 %v740
        %1112 = vmatpush1.msra.mxu0 %v739
        %1113 = vmatprep.subr.mxu0 %v721
        %1114 = vmatpush1.msra.mxu0 %v720
        %1115 = vmatprep.subr.mxu0 %v702
        %1116 = vmatpush1.msra.mxu0 %v701
        %1117 = vmatprep.subr.mxu0 %v683
        %1118 = vmatpush1.msra.mxu0 %v682
        %1119 = vmatprep.subr.mxu0 %v664
        %1120 = vmatpush1.msra.mxu0 %v663
        %1121 = vmatprep.subr.mxu0 %v645
        %1122 = vmatpush1.msra.mxu0 %v644
        %1123 = vmatprep.subr.mxu0 0.0
        %1124 = vmatpush2.msra.mxu0 0.0
        %1125 = vmatprep.subr.mxu0 0.0
        %1126 = vmatpush2.msra.mxu0 0.0
        %1127 = vmatprep.subr.mxu0 0.0
        %1128 = vmatpush2.msra.mxu0 0.0
        %1129 = vmatprep.subr.mxu0 0.0
        %1130 = vmatpush2.msra.mxu0 0.0
        %1131 = vmatprep.subr.mxu0 0.0
        %1132 = vmatpush2.msra.mxu0 0.0
        %1133 = vmatprep.subr.mxu0 0.0
        %1134 = vmatpush2.msra.mxu0 0.0
        %1135 = vmatprep.subr.mxu0 0.0
        %1136 = vmatpush2.msra.mxu0 0.0
        %1137 = vmatprep.subr.mxu0 0.0
        %1138 = vmatpush2.msra.mxu0 0.0
        %1139 = vmatprep.subr.mxu0 0.0
        %1140 = vmatpush2.msra.mxu0 0.0
        %1141 = vmatprep.subr.mxu0 0.0
        %1142 = vmatpush2.msra.mxu0 0.0
        %1143 = vmatprep.subr.mxu0 0.0
        %1144 = vmatpush2.msra.mxu0 0.0
        %1145 = vmatprep.subr.mxu0 0.0
        %1146 = vmatpush2.msra.mxu0 0.0
        %1147 = vmatprep.subr.mxu0 0.0
        %1148 = vmatpush2.msra.mxu0 0.0
        %1149 = vmatprep.subr.mxu0 0.0
        %1150 = vmatpush2.msra.mxu0 0.0
        %1151 = vmatprep.subr.mxu0 0.0
        %1152 = vmatpush2.msra.mxu0 0.0
        %1153 = vmatprep.subr.mxu0 0.0
        %1154 = vmatpush2.msra.mxu0 0.0
        %1155 = vmatprep.mubr.f32.mxu0 0.0
        %1156 = vmatmul.mubr.f32.gmra.mxu0 %v889
        %v1157 = vpop.f32.mrf.mxu0
        %v1158 = vadd.f32 0.0, %v1157
        %v1159 = vpop.f32.mrf.mxu0
        %v1160 = vadd.f32 0.0, %v1159
        %1161 = vdwg.mxu0
        %1162 = vmatprep.subr.mxu0 0.0
        %1163 = vmatpush1.msra.mxu0 0.0
        %1164 = vmatprep.subr.mxu0 0.0
        %1165 = vmatpush1.msra.mxu0 0.0
        %1166 = vmatprep.subr.mxu0 0.0
        %1167 = vmatpush1.msra.mxu0 0.0
        %1168 = vmatprep.subr.mxu0 %v914
        %1169 = vmatpush1.msra.mxu0 %v911
        %1170 = vmatprep.subr.mxu0 %v856
        %1171 = vmatpush1.msra.mxu0 %v855
        %1172 = vmatprep.subr.mxu0 %v837
        %1173 = vmatpush1.msra.mxu0 %v836
        %1174 = vmatprep.subr.mxu0 %v818
        %1175 = vmatpush1.msra.mxu0 %v817
        %1176 = vmatprep.subr.mxu0 %v799
        %1177 = vmatpush1.msra.mxu0 %v798
        %1178 = vmatprep.subr.mxu0 %v780
        %1179 = vmatpush1.msra.mxu0 %v779
        %1180 = vmatprep.subr.mxu0 %v761
        %1181 = vmatpush1.msra.mxu0 %v760
        %1182 = vmatprep.subr.mxu0 %v742
        %1183 = vmatpush1.msra.mxu0 %v741
        %1184 = vmatprep.subr.mxu0 %v723
        %1185 = vmatpush1.msra.mxu0 %v722
        %1186 = vmatprep.subr.mxu0 %v704
        %1187 = vmatpush1.msra.mxu0 %v703
        %1188 = vmatprep.subr.mxu0 %v685
        %1189 = vmatpush1.msra.mxu0 %v684
        %1190 = vmatprep.subr.mxu0 %v666
        %1191 = vmatpush1.msra.mxu0 %v665
        %1192 = vmatprep.subr.mxu0 %v647
        %1193 = vmatpush1.msra.mxu0 %v646
        %1194 = vmatprep.subr.mxu0 0.0
        %1195 = vmatpush2.msra.mxu0 0.0
        %1196 = vmatprep.subr.mxu0 0.0
        %1197 = vmatpush2.msra.mxu0 0.0
        %1198 = vmatprep.subr.mxu0 0.0
        %1199 = vmatpush2.msra.mxu0 0.0
        %1200 = vmatprep.subr.mxu0 0.0
        %1201 = vmatpush2.msra.mxu0 0.0
        %1202 = vmatprep.subr.mxu0 0.0
        %1203 = vmatpush2.msra.mxu0 0.0
        %1204 = vmatprep.subr.mxu0 0.0
        %1205 = vmatpush2.msra.mxu0 0.0
        %1206 = vmatprep.subr.mxu0 0.0
        %1207 = vmatpush2.msra.mxu0 0.0
        %1208 = vmatprep.subr.mxu0 0.0
        %1209 = vmatpush2.msra.mxu0 0.0
        %1210 = vmatprep.subr.mxu0 0.0
        %1211 = vmatpush2.msra.mxu0 0.0
        %1212 = vmatprep.subr.mxu0 0.0
        %1213 = vmatpush2.msra.mxu0 0.0
        %1214 = vmatprep.subr.mxu0 0.0
        %1215 = vmatpush2.msra.mxu0 0.0
        %1216 = vmatprep.subr.mxu0 0.0
        %1217 = vmatpush2.msra.mxu0 0.0
        %1218 = vmatprep.subr.mxu0 0.0
        %1219 = vmatpush2.msra.mxu0 0.0
        %1220 = vmatprep.subr.mxu0 0.0
        %1221 = vmatpush2.msra.mxu0 0.0
        %1222 = vmatprep.subr.mxu0 0.0
        %1223 = vmatpush2.msra.mxu0 0.0
        %1224 = vmatprep.subr.mxu0 0.0
        %1225 = vmatpush2.msra.mxu0 0.0
        %1226 = vmatprep.mubr.f32.mxu0 0.0
        %1227 = vmatmul.mubr.f32.gmra.mxu0 %v889
        %v1228 = vpop.f32.mrf.mxu0
        %v1229 = vadd.f32 0.0, %v1228
        %v1230 = vpop.f32.mrf.mxu0
        %v1231 = vadd.f32 0.0, %v1230
        %1232 = vdwg.mxu0
        %1233 = vmatprep.subr.mxu0 0.0
        %1234 = vmatpush1.msra.mxu0 0.0
        %1235 = vmatprep.subr.mxu0 0.0
        %1236 = vmatpush1.msra.mxu0 0.0
        %1237 = vmatprep.subr.mxu0 0.0
        %1238 = vmatpush1.msra.mxu0 0.0
        %1239 = vmatprep.subr.mxu0 %v920
        %1240 = vmatpush1.msra.mxu0 %v917
        %1241 = vmatprep.subr.mxu0 %v858
        %1242 = vmatpush1.msra.mxu0 %v857
        %1243 = vmatprep.subr.mxu0 %v839
        %1244 = vmatpush1.msra.mxu0 %v838
        %1245 = vmatprep.subr.mxu0 %v820
        %1246 = vmatpush1.msra.mxu0 %v819
        %1247 = vmatprep.subr.mxu0 %v801
        %1248 = vmatpush1.msra.mxu0 %v800
        %1249 = vmatprep.subr.mxu0 %v782
        %1250 = vmatpush1.msra.mxu0 %v781
        %1251 = vmatprep.subr.mxu0 %v763
        %1252 = vmatpush1.msra.mxu0 %v762
        %1253 = vmatprep.subr.mxu0 %v744
        %1254 = vmatpush1.msra.mxu0 %v743
        %1255 = vmatprep.subr.mxu0 %v725
        %1256 = vmatpush1.msra.mxu0 %v724
        %1257 = vmatprep.subr.mxu0 %v706
        %1258 = vmatpush1.msra.mxu0 %v705
        %1259 = vmatprep.subr.mxu0 %v687
        %1260 = vmatpush1.msra.mxu0 %v686
        %1261 = vmatprep.subr.mxu0 %v668
        %1262 = vmatpush1.msra.mxu0 %v667
        %1263 = vmatprep.subr.mxu0 %v649
        %1264 = vmatpush1.msra.mxu0 %v648
        %1265 = vmatprep.subr.mxu0 0.0
        %1266 = vmatpush2.msra.mxu0 0.0
        %1267 = vmatprep.subr.mxu0 0.0
        %1268 = vmatpush2.msra.mxu0 0.0
        %1269 = vmatprep.subr.mxu0 0.0
        %1270 = vmatpush2.msra.mxu0 0.0
        %1271 = vmatprep.subr.mxu0 0.0
        %1272 = vmatpush2.msra.mxu0 0.0
        %1273 = vmatprep.subr.mxu0 0.0
        %1274 = vmatpush2.msra.mxu0 0.0
        %1275 = vmatprep.subr.mxu0 0.0
        %1276 = vmatpush2.msra.mxu0 0.0
        %1277 = vmatprep.subr.mxu0 0.0
        %1278 = vmatpush2.msra.mxu0 0.0
        %1279 = vmatprep.subr.mxu0 0.0
        %1280 = vmatpush2.msra.mxu0 0.0
        %1281 = vmatprep.subr.mxu0 0.0
        %1282 = vmatpush2.msra.mxu0 0.0
        %1283 = vmatprep.subr.mxu0 0.0
        %1284 = vmatpush2.msra.mxu0 0.0
        %1285 = vmatprep.subr.mxu0 0.0
        %1286 = vmatpush2.msra.mxu0 0.0
        %1287 = vmatprep.subr.mxu0 0.0
        %1288 = vmatpush2.msra.mxu0 0.0
        %1289 = vmatprep.subr.mxu0 0.0
        %1290 = vmatpush2.msra.mxu0 0.0
        %1291 = vmatprep.subr.mxu0 0.0
        %1292 = vmatpush2.msra.mxu0 0.0
        %1293 = vmatprep.subr.mxu0 0.0
        %1294 = vmatpush2.msra.mxu0 0.0
        %1295 = vmatprep.subr.mxu0 0.0
        %1296 = vmatpush2.msra.mxu0 0.0
        %1297 = vmatprep.mubr.f32.mxu0 0.0
        %1298 = vmatmul.mubr.f32.gmra.mxu0 %v889
        %v1299 = vpop.f32.mrf.mxu0
        %v1300 = vadd.f32 0.0, %v1299
        %v1301 = vpop.f32.mrf.mxu0
        %v1302 = vadd.f32 0.0, %v1301
        %1303 = vdwg.mxu0
        %1304 = vmatprep.subr.mxu0 0.0
        %1305 = vmatpush1.msra.mxu0 0.0
        %1306 = vmatprep.subr.mxu0 0.0
        %1307 = vmatpush1.msra.mxu0 0.0
        %1308 = vmatprep.subr.mxu0 0.0
        %1309 = vmatpush1.msra.mxu0 0.0
        %1310 = vmatprep.subr.mxu0 %v926
        %1311 = vmatpush1.msra.mxu0 %v923
        %1312 = vmatprep.subr.mxu0 %v860
        %1313 = vmatpush1.msra.mxu0 %v859
        %1314 = vmatprep.subr.mxu0 %v841
        %1315 = vmatpush1.msra.mxu0 %v840
        %1316 = vmatprep.subr.mxu0 %v822
        %1317 = vmatpush1.msra.mxu0 %v821
        %1318 = vmatprep.subr.mxu0 %v803
        %1319 = vmatpush1.msra.mxu0 %v802
        %1320 = vmatprep.subr.mxu0 %v784
        %1321 = vmatpush1.msra.mxu0 %v783
        %1322 = vmatprep.subr.mxu0 %v765
        %1323 = vmatpush1.msra.mxu0 %v764
        %1324 = vmatprep.subr.mxu0 %v746
        %1325 = vmatpush1.msra.mxu0 %v745
        %1326 = vmatprep.subr.mxu0 %v727
        %1327 = vmatpush1.msra.mxu0 %v726
        %1328 = vmatprep.subr.mxu0 %v708
        %1329 = vmatpush1.msra.mxu0 %v707
        %1330 = vmatprep.subr.mxu0 %v689
        %1331 = vmatpush1.msra.mxu0 %v688
        %1332 = vmatprep.subr.mxu0 %v670
        %1333 = vmatpush1.msra.mxu0 %v669
        %1334 = vmatprep.subr.mxu0 %v651
        %1335 = vmatpush1.msra.mxu0 %v650
        %1336 = vmatprep.subr.mxu0 0.0
        %1337 = vmatpush2.msra.mxu0 0.0
        %1338 = vmatprep.subr.mxu0 0.0
        %1339 = vmatpush2.msra.mxu0 0.0
        %1340 = vmatprep.subr.mxu0 0.0
        %1341 = vmatpush2.msra.mxu0 0.0
        %1342 = vmatprep.subr.mxu0 0.0
        %1343 = vmatpush2.msra.mxu0 0.0
        %1344 = vmatprep.subr.mxu0 0.0
        %1345 = vmatpush2.msra.mxu0 0.0
        %1346 = vmatprep.subr.mxu0 0.0
        %1347 = vmatpush2.msra.mxu0 0.0
        %1348 = vmatprep.subr.mxu0 0.0
        %1349 = vmatpush2.msra.mxu0 0.0
        %1350 = vmatprep.subr.mxu0 0.0
        %1351 = vmatpush2.msra.mxu0 0.0
        %1352 = vmatprep.subr.mxu0 0.0
        %1353 = vmatpush2.msra.mxu0 0.0
        %1354 = vmatprep.subr.mxu0 0.0
        %1355 = vmatpush2.msra.mxu0 0.0
        %1356 = vmatprep.subr.mxu0 0.0
        %1357 = vmatpush2.msra.mxu0 0.0
        %1358 = vmatprep.subr.mxu0 0.0
        %1359 = vmatpush2.msra.mxu0 0.0
        %1360 = vmatprep.subr.mxu0 0.0
        %1361 = vmatpush2.msra.mxu0 0.0
        %1362 = vmatprep.subr.mxu0 0.0
        %1363 = vmatpush2.msra.mxu0 0.0
        %1364 = vmatprep.subr.mxu0 0.0
        %1365 = vmatpush2.msra.mxu0 0.0
        %1366 = vmatprep.subr.mxu0 0.0
        %1367 = vmatpush2.msra.mxu0 0.0
        %1368 = vmatprep.mubr.f32.mxu0 0.0
        %1369 = vmatmul.mubr.f32.gmra.mxu0 %v889
        %v1370 = vpop.f32.mrf.mxu0
        %v1371 = vadd.f32 0.0, %v1370
        %v1372 = vpop.f32.mrf.mxu0
        %v1373 = vadd.f32 0.0, %v1372
        %1374 = vdwg.mxu0
        %1375 = vmatprep.subr.mxu0 0.0
        %1376 = vmatpush1.msra.mxu0 0.0
        %1377 = vmatprep.subr.mxu0 0.0
        %1378 = vmatpush1.msra.mxu0 0.0
        %1379 = vmatprep.subr.mxu0 0.0
        %1380 = vmatpush1.msra.mxu0 0.0
        %1381 = vmatprep.subr.mxu0 %v932
        %1382 = vmatpush1.msra.mxu0 %v929
        %1383 = vmatprep.subr.mxu0 %v862
        %1384 = vmatpush1.msra.mxu0 %v861
        %1385 = vmatprep.subr.mxu0 %v843
        %1386 = vmatpush1.msra.mxu0 %v842
        %1387 = vmatprep.subr.mxu0 %v824
        %1388 = vmatpush1.msra.mxu0 %v823
        %1389 = vmatprep.subr.mxu0 %v805
        %1390 = vmatpush1.msra.mxu0 %v804
        %1391 = vmatprep.subr.mxu0 %v786
        %1392 = vmatpush1.msra.mxu0 %v785
        %1393 = vmatprep.subr.mxu0 %v767
        %1394 = vmatpush1.msra.mxu0 %v766
        %1395 = vmatprep.subr.mxu0 %v748
        %1396 = vmatpush1.msra.mxu0 %v747
        %1397 = vmatprep.subr.mxu0 %v729
        %1398 = vmatpush1.msra.mxu0 %v728
        %1399 = vmatprep.subr.mxu0 %v710
        %1400 = vmatpush1.msra.mxu0 %v709
        %1401 = vmatprep.subr.mxu0 %v691
        %1402 = vmatpush1.msra.mxu0 %v690
        %1403 = vmatprep.subr.mxu0 %v672
        %1404 = vmatpush1.msra.mxu0 %v671
        %1405 = vmatprep.subr.mxu0 %v653
        %1406 = vmatpush1.msra.mxu0 %v652
        %1407 = vmatprep.subr.mxu0 0.0
        %1408 = vmatpush2.msra.mxu0 0.0
        %1409 = vmatprep.subr.mxu0 0.0
        %1410 = vmatpush2.msra.mxu0 0.0
        %1411 = vmatprep.subr.mxu0 0.0
        %1412 = vmatpush2.msra.mxu0 0.0
        %1413 = vmatprep.subr.mxu0 0.0
        %1414 = vmatpush2.msra.mxu0 0.0
        %1415 = vmatprep.subr.mxu0 0.0
        %1416 = vmatpush2.msra.mxu0 0.0
        %1417 = vmatprep.subr.mxu0 0.0
        %1418 = vmatpush2.msra.mxu0 0.0
        %1419 = vmatprep.subr.mxu0 0.0
        %1420 = vmatpush2.msra.mxu0 0.0
        %1421 = vmatprep.subr.mxu0 0.0
        %1422 = vmatpush2.msra.mxu0 0.0
        %1423 = vmatprep.subr.mxu0 0.0
        %1424 = vmatpush2.msra.mxu0 0.0
        %1425 = vmatprep.subr.mxu0 0.0
        %1426 = vmatpush2.msra.mxu0 0.0
        %1427 = vmatprep.subr.mxu0 0.0
        %1428 = vmatpush2.msra.mxu0 0.0
        %1429 = vmatprep.subr.mxu0 0.0
        %1430 = vmatpush2.msra.mxu0 0.0
        %1431 = vmatprep.subr.mxu0 0.0
        %1432 = vmatpush2.msra.mxu0 0.0
        %1433 = vmatprep.subr.mxu0 0.0
        %1434 = vmatpush2.msra.mxu0 0.0
        %1435 = vmatprep.subr.mxu0 0.0
        %1436 = vmatpush2.msra.mxu0 0.0
        %1437 = vmatprep.subr.mxu0 0.0
        %1438 = vmatpush2.msra.mxu0 0.0
        %1439 = vmatprep.mubr.f32.mxu0 0.0
        %1440 = vmatmul.mubr.f32.gmra.mxu0 %v889
        %v1441 = vpop.f32.mrf.mxu0
        %v1442 = vadd.f32 0.0, %v1441
        %v1443 = vpop.f32.mrf.mxu0
        %v1444 = vadd.f32 0.0, %v1443
        %1445 = vdwg.mxu0
        %1446 = vmatprep.subr.mxu0 0.0
        %1447 = vmatpush1.msra.mxu0 0.0
        %1448 = vmatprep.subr.mxu0 0.0
        %1449 = vmatpush1.msra.mxu0 0.0
        %1450 = vmatprep.subr.mxu0 0.0
        %1451 = vmatpush1.msra.mxu0 0.0
        %1452 = vmatprep.subr.mxu0 %v938
        %1453 = vmatpush1.msra.mxu0 %v935
        %1454 = vmatprep.subr.mxu0 %v864
        %1455 = vmatpush1.msra.mxu0 %v863
        %1456 = vmatprep.subr.mxu0 %v845
        %1457 = vmatpush1.msra.mxu0 %v844
        %1458 = vmatprep.subr.mxu0 %v826
        %1459 = vmatpush1.msra.mxu0 %v825
        %1460 = vmatprep.subr.mxu0 %v807
        %1461 = vmatpush1.msra.mxu0 %v806
        %1462 = vmatprep.subr.mxu0 %v788
        %1463 = vmatpush1.msra.mxu0 %v787
        %1464 = vmatprep.subr.mxu0 %v769
        %1465 = vmatpush1.msra.mxu0 %v768
        %1466 = vmatprep.subr.mxu0 %v750
        %1467 = vmatpush1.msra.mxu0 %v749
        %1468 = vmatprep.subr.mxu0 %v731
        %1469 = vmatpush1.msra.mxu0 %v730
        %1470 = vmatprep.subr.mxu0 %v712
        %1471 = vmatpush1.msra.mxu0 %v711
        %1472 = vmatprep.subr.mxu0 %v693
        %1473 = vmatpush1.msra.mxu0 %v692
        %1474 = vmatprep.subr.mxu0 %v674
        %1475 = vmatpush1.msra.mxu0 %v673
        %1476 = vmatprep.subr.mxu0 %v655
        %1477 = vmatpush1.msra.mxu0 %v654
        %1478 = vmatprep.subr.mxu0 0.0
        %1479 = vmatpush2.msra.mxu0 0.0
        %1480 = vmatprep.subr.mxu0 0.0
        %1481 = vmatpush2.msra.mxu0 0.0
        %1482 = vmatprep.subr.mxu0 0.0
        %1483 = vmatpush2.msra.mxu0 0.0
        %1484 = vmatprep.subr.mxu0 0.0
        %1485 = vmatpush2.msra.mxu0 0.0
        %1486 = vmatprep.subr.mxu0 0.0
        %1487 = vmatpush2.msra.mxu0 0.0
        %1488 = vmatprep.subr.mxu0 0.0
        %1489 = vmatpush2.msra.mxu0 0.0
        %1490 = vmatprep.subr.mxu0 0.0
        %1491 = vmatpush2.msra.mxu0 0.0
        %1492 = vmatprep.subr.mxu0 0.0
        %1493 = vmatpush2.msra.mxu0 0.0
        %1494 = vmatprep.subr.mxu0 0.0
        %1495 = vmatpush2.msra.mxu0 0.0
        %1496 = vmatprep.subr.mxu0 0.0
        %1497 = vmatpush2.msra.mxu0 0.0
        %1498 = vmatprep.subr.mxu0 0.0
        %1499 = vmatpush2.msra.mxu0 0.0
        %1500 = vmatprep.subr.mxu0 0.0
        %1501 = vmatpush2.msra.mxu0 0.0
        %1502 = vmatprep.subr.mxu0 0.0
        %1503 = vmatpush2.msra.mxu0 0.0
        %1504 = vmatprep.subr.mxu0 0.0
        %1505 = vmatpush2.msra.mxu0 0.0
        %1506 = vmatprep.subr.mxu0 0.0
        %1507 = vmatpush2.msra.mxu0 0.0
        %1508 = vmatprep.subr.mxu0 0.0
        %1509 = vmatpush2.msra.mxu0 0.0
        %1510 = vmatprep.mubr.f32.mxu0 0.0
        %1511 = vmatmul.mubr.f32.gmra.mxu0 %v889
        %v1512 = vpop.f32.mrf.mxu0
        %v1513 = vadd.f32 0.0, %v1512
        %v1514 = vpop.f32.mrf.mxu0
        %v1515 = vadd.f32 0.0, %v1514
        %1516 = vdwg.mxu0
        %1517 = vmatprep.subr.mxu0 0.0
        %1518 = vmatpush1.msra.mxu0 0.0
        %1519 = vmatprep.subr.mxu0 0.0
        %1520 = vmatpush1.msra.mxu0 0.0
        %1521 = vmatprep.subr.mxu0 0.0
        %1522 = vmatpush1.msra.mxu0 0.0
        %1523 = vmatprep.subr.mxu0 %v944
        %1524 = vmatpush1.msra.mxu0 %v941
        %1525 = vmatprep.subr.mxu0 %v866
        %1526 = vmatpush1.msra.mxu0 %v865
        %1527 = vmatprep.subr.mxu0 %v847
        %1528 = vmatpush1.msra.mxu0 %v846
        %1529 = vmatprep.subr.mxu0 %v828
        %1530 = vmatpush1.msra.mxu0 %v827
        %1531 = vmatprep.subr.mxu0 %v809
        %1532 = vmatpush1.msra.mxu0 %v808
        %1533 = vmatprep.subr.mxu0 %v790
        %1534 = vmatpush1.msra.mxu0 %v789
        %1535 = vmatprep.subr.mxu0 %v771
        %1536 = vmatpush1.msra.mxu0 %v770
        %1537 = vmatprep.subr.mxu0 %v752
        %1538 = vmatpush1.msra.mxu0 %v751
        %1539 = vmatprep.subr.mxu0 %v733
        %1540 = vmatpush1.msra.mxu0 %v732
        %1541 = vmatprep.subr.mxu0 %v714
        %1542 = vmatpush1.msra.mxu0 %v713
        %1543 = vmatprep.subr.mxu0 %v695
        %1544 = vmatpush1.msra.mxu0 %v694
        %1545 = vmatprep.subr.mxu0 %v676
        %1546 = vmatpush1.msra.mxu0 %v675
        %1547 = vmatprep.subr.mxu0 %v657
        %1548 = vmatpush1.msra.mxu0 %v656
        %1549 = vmatprep.subr.mxu0 0.0
        %1550 = vmatpush2.msra.mxu0 0.0
        %1551 = vmatprep.subr.mxu0 0.0
        %1552 = vmatpush2.msra.mxu0 0.0
        %1553 = vmatprep.subr.mxu0 0.0
        %1554 = vmatpush2.msra.mxu0 0.0
        %1555 = vmatprep.subr.mxu0 0.0
        %1556 = vmatpush2.msra.mxu0 0.0
        %1557 = vmatprep.subr.mxu0 0.0
        %1558 = vmatpush2.msra.mxu0 0.0
        %1559 = vmatprep.subr.mxu0 0.0
        %1560 = vmatpush2.msra.mxu0 0.0
        %1561 = vmatprep.subr.mxu0 0.0
        %1562 = vmatpush2.msra.mxu0 0.0
        %1563 = vmatprep.subr.mxu0 0.0
        %1564 = vmatpush2.msra.mxu0 0.0
        %1565 = vmatprep.subr.mxu0 0.0
        %1566 = vmatpush2.msra.mxu0 0.0
        %1567 = vmatprep.subr.mxu0 0.0
        %1568 = vmatpush2.msra.mxu0 0.0
        %1569 = vmatprep.subr.mxu0 0.0
        %1570 = vmatpush2.msra.mxu0 0.0
        %1571 = vmatprep.subr.mxu0 0.0
        %1572 = vmatpush2.msra.mxu0 0.0
        %1573 = vmatprep.subr.mxu0 0.0
        %1574 = vmatpush2.msra.mxu0 0.0
        %1575 = vmatprep.subr.mxu0 0.0
        %1576 = vmatpush2.msra.mxu0 0.0
        %1577 = vmatprep.subr.mxu0 0.0
        %1578 = vmatpush2.msra.mxu0 0.0
        %1579 = vmatprep.subr.mxu0 0.0
        %1580 = vmatpush2.msra.mxu0 0.0
        %1581 = vmatprep.mubr.f32.mxu0 0.0
        %1582 = vmatmul.mubr.f32.gmra.mxu0 %v889
        %v1583 = vpop.f32.mrf.mxu0
        %v1584 = vadd.f32 0.0, %v1583
        %v1585 = vpop.f32.mrf.mxu0
        %v1586 = vadd.f32 0.0, %v1585
        %1587 = vdwg.mxu0
        %1588 = vmatprep.subr.mxu0 0.0
        %1589 = vmatpush1.msra.mxu0 0.0
        %1590 = vmatprep.subr.mxu0 0.0
        %1591 = vmatpush1.msra.mxu0 0.0
        %1592 = vmatprep.subr.mxu0 0.0
        %1593 = vmatpush1.msra.mxu0 0.0
        %1594 = vmatprep.subr.mxu0 0.0
        %1595 = vmatpush1.msra.mxu0 %v947
        %1596 = vmatprep.subr.mxu0 0.0
        %1597 = vmatpush1.msra.mxu0 %v867
        %1598 = vmatprep.subr.mxu0 0.0
        %1599 = vmatpush1.msra.mxu0 %v848
        %1600 = vmatprep.subr.mxu0 0.0
        %1601 = vmatpush1.msra.mxu0 %v829
        %1602 = vmatprep.subr.mxu0 0.0
        %1603 = vmatpush1.msra.mxu0 %v810
        %1604 = vmatprep.subr.mxu0 0.0
        %1605 = vmatpush1.msra.mxu0 %v791
        %1606 = vmatprep.subr.mxu0 0.0
        %1607 = vmatpush1.msra.mxu0 %v772
        %1608 = vmatprep.subr.mxu0 0.0
        %1609 = vmatpush1.msra.mxu0 %v753
        %1610 = vmatprep.subr.mxu0 0.0
        %1611 = vmatpush1.msra.mxu0 %v734
        %1612 = vmatprep.subr.mxu0 0.0
        %1613 = vmatpush1.msra.mxu0 %v715
        %1614 = vmatprep.subr.mxu0 0.0
        %1615 = vmatpush1.msra.mxu0 %v696
        %1616 = vmatprep.subr.mxu0 0.0
        %1617 = vmatpush1.msra.mxu0 %v677
        %1618 = vmatprep.subr.mxu0 0.0
        %1619 = vmatpush1.msra.mxu0 %v658
        %1620 = vmatprep.subr.mxu0 0.0
        %1621 = vmatpush2.msra.mxu0 0.0
        %1622 = vmatprep.subr.mxu0 0.0
        %1623 = vmatpush2.msra.mxu0 0.0
        %1624 = vmatprep.subr.mxu0 0.0
        %1625 = vmatpush2.msra.mxu0 0.0
        %1626 = vmatprep.subr.mxu0 0.0
        %1627 = vmatpush2.msra.mxu0 0.0
        %1628 = vmatprep.subr.mxu0 0.0
        %1629 = vmatpush2.msra.mxu0 0.0
        %1630 = vmatprep.subr.mxu0 0.0
        %1631 = vmatpush2.msra.mxu0 0.0
        %1632 = vmatprep.subr.mxu0 0.0
        %1633 = vmatpush2.msra.mxu0 0.0
        %1634 = vmatprep.subr.mxu0 0.0
        %1635 = vmatpush2.msra.mxu0 0.0
        %1636 = vmatprep.subr.mxu0 0.0
        %1637 = vmatpush2.msra.mxu0 0.0
        %1638 = vmatprep.subr.mxu0 0.0
        %1639 = vmatpush2.msra.mxu0 0.0
        %1640 = vmatprep.subr.mxu0 0.0
        %1641 = vmatpush2.msra.mxu0 0.0
        %1642 = vmatprep.subr.mxu0 0.0
        %1643 = vmatpush2.msra.mxu0 0.0
        %1644 = vmatprep.subr.mxu0 0.0
        %1645 = vmatpush2.msra.mxu0 0.0
        %1646 = vmatprep.subr.mxu0 0.0
        %1647 = vmatpush2.msra.mxu0 0.0
        %1648 = vmatprep.subr.mxu0 0.0
        %1649 = vmatpush2.msra.mxu0 0.0
        %1650 = vmatprep.subr.mxu0 0.0
        %1651 = vmatpush2.msra.mxu0 0.0
        %1652 = vmatprep.mubr.f32.mxu0 0.0
        %1653 = vmatmul.mubr.f32.gmra.mxu0 %v889
        %v1654 = vpop.f32.mrf.mxu0
        %v1655 = vadd.f32 0.0, %v1654
        %v1656 = vpop.f32.mrf.mxu0
        %1657 = vdwg.mxu0
        %v1658 = vld [vmem:[%s2] sm:$0xff]
        %v1659 = vld [vmem:[%s2 + $0x8] sm:$0xff]
        %v1660 = vld [vmem:[%s2 + $0x10] sm:$0x7]
        %v1664 = vlaneseq
        %v1665 = vshrl.u32 %v1664, 7
        %v1666 = vsub.s32 0, %v1665
        %v1667 = vrot.slane %v1658, %v1666
        %v1668 = vlaneseq
        %v1669 = vshrl.u32 %v1668, 7
        %v1670 = vsub.s32 1, %v1669
        %v1671 = vrot.slane %v1658, %v1670
        %v1672 = vlaneseq
        %v1673 = vshrl.u32 %v1672, 7
        %v1674 = vsub.s32 2, %v1673
        %v1675 = vrot.slane %v1658, %v1674
        %v1676 = vlaneseq
        %v1677 = vshrl.u32 %v1676, 7
        %v1678 = vsub.s32 3, %v1677
        %v1679 = vrot.slane %v1658, %v1678
        %v1680 = vlaneseq
        %v1681 = vshrl.u32 %v1680, 7
        %v1682 = vsub.s32 4, %v1681
        %v1683 = vrot.slane %v1658, %v1682
        %v1684 = vlaneseq
        %v1685 = vshrl.u32 %v1684, 7
        %v1686 = vsub.s32 5, %v1685
        %v1687 = vrot.slane %v1658, %v1686
        %v1688 = vlaneseq
        %v1689 = vshrl.u32 %v1688, 7
        %v1690 = vsub.s32 6, %v1689
        %v1691 = vrot.slane %v1658, %v1690
        %v1692 = vlaneseq
        %v1693 = vshrl.u32 %v1692, 7
        %v1694 = vsub.s32 7, %v1693
        %v1695 = vrot.slane %v1658, %v1694
        %v1696 = vlaneseq
        %v1697 = vshrl.u32 %v1696, 7
        %v1698 = vsub.s32 0, %v1697
        %v1699 = vrot.slane %v1659, %v1698
        %v1700 = vlaneseq
        %v1701 = vshrl.u32 %v1700, 7
        %v1702 = vsub.s32 1, %v1701
        %v1703 = vrot.slane %v1659, %v1702
        %v1704 = vlaneseq
        %v1705 = vshrl.u32 %v1704, 7
        %v1706 = vsub.s32 2, %v1705
        %v1707 = vrot.slane %v1659, %v1706
        %v1708 = vlaneseq
        %v1709 = vshrl.u32 %v1708, 7
        %v1710 = vsub.s32 3, %v1709
        %v1711 = vrot.slane %v1659, %v1710
        %v1712 = vlaneseq
        %v1713 = vshrl.u32 %v1712, 7
        %v1714 = vsub.s32 4, %v1713
        %v1715 = vrot.slane %v1659, %v1714
        %v1716 = vlaneseq
        %v1717 = vshrl.u32 %v1716, 7
        %v1718 = vsub.s32 5, %v1717
        %v1719 = vrot.slane %v1659, %v1718
        %v1720 = vlaneseq
        %v1721 = vshrl.u32 %v1720, 7
        %v1722 = vsub.s32 6, %v1721
        %v1723 = vrot.slane %v1659, %v1722
        %v1724 = vlaneseq
        %v1725 = vshrl.u32 %v1724, 7
        %v1726 = vsub.s32 7, %v1725
        %v1727 = vrot.slane %v1659, %v1726
        %v1728 = vlaneseq
        %v1729 = vshrl.u32 %v1728, 7
        %v1730 = vsub.s32 0, %v1729
        %v1731 = vrot.slane %v1660, %v1730
        %v1732 = vlaneseq
        %v1733 = vshrl.u32 %v1732, 7
        %v1734 = vsub.s32 1, %v1733
        %v1735 = vrot.slane %v1660, %v1734
        %v1736 = vlaneseq
        %v1737 = vshrl.u32 %v1736, 7
        %v1738 = vsub.s32 2, %v1737
        %v1739 = vrot.slane %v1660, %v1738
        %v1759 = vmul.f32 %v1016, %v1667
        %v1760 = vmul.f32 %v1018, %v1671
        %v1761 = vmul.f32 %v1087, %v1675
        %v1762 = vmul.f32 %v1089, %v1679
        %v1763 = vmul.f32 %v1158, %v1683
        %v1764 = vmul.f32 %v1160, %v1687
        %v1765 = vmul.f32 %v1229, %v1691
        %v1766 = vmul.f32 %v1231, %v1695
        %v1767 = vmul.f32 %v1300, %v1699
        %v1768 = vmul.f32 %v1302, %v1703
        %v1769 = vmul.f32 %v1371, %v1707
        %v1770 = vmul.f32 %v1373, %v1711
        %v1771 = vmul.f32 %v1442, %v1715
        %v1772 = vmul.f32 %v1444, %v1719
        %v1773 = vmul.f32 %v1513, %v1723
        %v1774 = vmul.f32 %v1515, %v1727
        %v1775 = vmul.f32 %v1584, %v1731
        %v1776 = vmul.f32 %v1586, %v1735
        %v1777 = vmul.f32 %v1655, %v1739
        %v1778 = vld [vmem:[%s3] sm:$0xff]
        %v1779 = vld [vmem:[%s3 + $0x8] sm:$0xff]
        %v1780 = vld [vmem:[%s3 + $0x10] sm:$0x7]
        %v1784 = vlaneseq
        %v1785 = vshrl.u32 %v1784, 7
        %v1786 = vsub.s32 0, %v1785
        %v1787 = vrot.slane %v1778, %v1786
        %v1788 = vlaneseq
        %v1789 = vshrl.u32 %v1788, 7
        %v1790 = vsub.s32 1, %v1789
        %v1791 = vrot.slane %v1778, %v1790
        %v1792 = vlaneseq
        %v1793 = vshrl.u32 %v1792, 7
        %v1794 = vsub.s32 2, %v1793
        %v1795 = vrot.slane %v1778, %v1794
        %v1796 = vlaneseq
        %v1797 = vshrl.u32 %v1796, 7
        %v1798 = vsub.s32 3, %v1797
        %v1799 = vrot.slane %v1778, %v1798
        %v1800 = vlaneseq
        %v1801 = vshrl.u32 %v1800, 7
        %v1802 = vsub.s32 4, %v1801
        %v1803 = vrot.slane %v1778, %v1802
        %v1804 = vlaneseq
        %v1805 = vshrl.u32 %v1804, 7
        %v1806 = vsub.s32 5, %v1805
        %v1807 = vrot.slane %v1778, %v1806
        %v1808 = vlaneseq
        %v1809 = vshrl.u32 %v1808, 7
        %v1810 = vsub.s32 6, %v1809
        %v1811 = vrot.slane %v1778, %v1810
        %v1812 = vlaneseq
        %v1813 = vshrl.u32 %v1812, 7
        %v1814 = vsub.s32 7, %v1813
        %v1815 = vrot.slane %v1778, %v1814
        %v1816 = vlaneseq
        %v1817 = vshrl.u32 %v1816, 7
        %v1818 = vsub.s32 0, %v1817
        %v1819 = vrot.slane %v1779, %v1818
        %v1820 = vlaneseq
        %v1821 = vshrl.u32 %v1820, 7
        %v1822 = vsub.s32 1, %v1821
        %v1823 = vrot.slane %v1779, %v1822
        %v1824 = vlaneseq
        %v1825 = vshrl.u32 %v1824, 7
        %v1826 = vsub.s32 2, %v1825
        %v1827 = vrot.slane %v1779, %v1826
        %v1828 = vlaneseq
        %v1829 = vshrl.u32 %v1828, 7
        %v1830 = vsub.s32 3, %v1829
        %v1831 = vrot.slane %v1779, %v1830
        %v1832 = vlaneseq
        %v1833 = vshrl.u32 %v1832, 7
        %v1834 = vsub.s32 4, %v1833
        %v1835 = vrot.slane %v1779, %v1834
        %v1836 = vlaneseq
        %v1837 = vshrl.u32 %v1836, 7
        %v1838 = vsub.s32 5, %v1837
        %v1839 = vrot.slane %v1779, %v1838
        %v1840 = vlaneseq
        %v1841 = vshrl.u32 %v1840, 7
        %v1842 = vsub.s32 6, %v1841
        %v1843 = vrot.slane %v1779, %v1842
        %v1844 = vlaneseq
        %v1845 = vshrl.u32 %v1844, 7
        %v1846 = vsub.s32 7, %v1845
        %v1847 = vrot.slane %v1779, %v1846
        %v1848 = vlaneseq
        %v1849 = vshrl.u32 %v1848, 7
        %v1850 = vsub.s32 0, %v1849
        %v1851 = vrot.slane %v1780, %v1850
        %v1852 = vlaneseq
        %v1853 = vshrl.u32 %v1852, 7
        %v1854 = vsub.s32 1, %v1853
        %v1855 = vrot.slane %v1780, %v1854
        %v1856 = vlaneseq
        %v1857 = vshrl.u32 %v1856, 7
        %v1858 = vsub.s32 2, %v1857
        %v1859 = vrot.slane %v1780, %v1858
        %v1879 = vadd.f32 %v1759, %v1787
        %v1880 = vadd.f32 %v1760, %v1791
        %v1881 = vadd.f32 %v1761, %v1795
        %v1882 = vadd.f32 %v1762, %v1799
        %v1883 = vadd.f32 %v1763, %v1803
        %v1884 = vadd.f32 %v1764, %v1807
        %v1885 = vadd.f32 %v1765, %v1811
        %v1886 = vadd.f32 %v1766, %v1815
        %v1887 = vadd.f32 %v1767, %v1819
        %v1888 = vadd.f32 %v1768, %v1823
        %v1889 = vadd.f32 %v1769, %v1827
        %v1890 = vadd.f32 %v1770, %v1831
        %v1891 = vadd.f32 %v1771, %v1835
        %v1892 = vadd.f32 %v1772, %v1839
        %v1893 = vadd.f32 %v1773, %v1843
        %v1894 = vadd.f32 %v1774, %v1847
        %v1895 = vadd.f32 %v1775, %v1851
        %v1896 = vadd.f32 %v1776, %v1855
        %v1897 = vadd.f32 %v1777, %v1859
        %vm1898 = vcmp.gt.f32.partialorder %v1879, 0.0
        %vm1899 = vcmp.gt.f32.partialorder %v1880, 0.0
        %vm1900 = vcmp.gt.f32.partialorder %v1881, 0.0
        %vm1901 = vcmp.gt.f32.partialorder %v1882, 0.0
        %vm1902 = vcmp.gt.f32.partialorder %v1883, 0.0
        %vm1903 = vcmp.gt.f32.partialorder %v1884, 0.0
        %vm1904 = vcmp.gt.f32.partialorder %v1885, 0.0
        %vm1905 = vcmp.gt.f32.partialorder %v1886, 0.0
        %vm1906 = vcmp.gt.f32.partialorder %v1887, 0.0
        %vm1907 = vcmp.gt.f32.partialorder %v1888, 0.0
        %vm1908 = vcmp.gt.f32.partialorder %v1889, 0.0
        %vm1909 = vcmp.gt.f32.partialorder %v1890, 0.0
        %vm1910 = vcmp.gt.f32.partialorder %v1891, 0.0
        %vm1911 = vcmp.gt.f32.partialorder %v1892, 0.0
        %vm1912 = vcmp.gt.f32.partialorder %v1893, 0.0
        %vm1913 = vcmp.gt.f32.partialorder %v1894, 0.0
        %vm1914 = vcmp.gt.f32.partialorder %v1895, 0.0
        %vm1915 = vcmp.gt.f32.partialorder %v1896, 0.0
        %vm1916 = vcmp.gt.f32.partialorder %v1897, 0.0
        %v1917 = vmin.f32 %v1879, 0.0
        %v1918 = vmin.f32 %v1880, 0.0
        %v1919 = vmin.f32 %v1881, 0.0
        %v1920 = vmin.f32 %v1882, 0.0
        %v1921 = vmin.f32 %v1883, 0.0
        %v1922 = vmin.f32 %v1884, 0.0
        %v1923 = vmin.f32 %v1885, 0.0
        %v1924 = vmin.f32 %v1886, 0.0
        %v1925 = vmin.f32 %v1887, 0.0
        %v1926 = vmin.f32 %v1888, 0.0
        %v1927 = vmin.f32 %v1889, 0.0
        %v1928 = vmin.f32 %v1890, 0.0
        %v1929 = vmin.f32 %v1891, 0.0
        %v1930 = vmin.f32 %v1892, 0.0
        %v1931 = vmin.f32 %v1893, 0.0
        %v1932 = vmin.f32 %v1894, 0.0
        %v1933 = vmin.f32 %v1895, 0.0
        %v1934 = vmin.f32 %v1896, 0.0
        %v1935 = vmin.f32 %v1897, 0.0
        %v1936 = vmul.f32 %v1917, 1.442695
        %v1937 = vpow.pop %v1936
        %v1938 = vmul.f32 %v1918, 1.442695
        %v1939 = vpow.pop %v1938
        %v1940 = vmul.f32 %v1919, 1.442695
        %v1941 = vpow.pop %v1940
        %v1942 = vmul.f32 %v1920, 1.442695
        %v1943 = vpow.pop %v1942
        %v1944 = vmul.f32 %v1921, 1.442695
        %v1945 = vpow.pop %v1944
        %v1946 = vmul.f32 %v1922, 1.442695
        %v1947 = vpow.pop %v1946
        %v1948 = vmul.f32 %v1923, 1.442695
        %v1949 = vpow.pop %v1948
        %v1950 = vmul.f32 %v1924, 1.442695
        %v1951 = vpow.pop %v1950
        %v1952 = vmul.f32 %v1925, 1.442695
        %v1953 = vpow.pop %v1952
        %v1954 = vmul.f32 %v1926, 1.442695
        %v1955 = vpow.pop %v1954
        %v1956 = vmul.f32 %v1927, 1.442695
        %v1957 = vpow.pop %v1956
        %v1958 = vmul.f32 %v1928, 1.442695
        %v1959 = vpow.pop %v1958
        %v1960 = vmul.f32 %v1929, 1.442695
        %v1961 = vpow.pop %v1960
        %v1962 = vmul.f32 %v1930, 1.442695
        %v1963 = vpow.pop %v1962
        %v1964 = vmul.f32 %v1931, 1.442695
        %v1965 = vpow.pop %v1964
        %v1966 = vmul.f32 %v1932, 1.442695
        %v1967 = vpow.pop %v1966
        %v1968 = vmul.f32 %v1933, 1.442695
        %v1969 = vpow.pop %v1968
        %v1970 = vmul.f32 %v1934, 1.442695
        %v1971 = vpow.pop %v1970
        %v1972 = vmul.f32 %v1935, 1.442695
        %v1973 = vpow.pop %v1972
        %v1974 = vsub.f32 %v1937, 1.0
        %v1975 = vsub.f32 %v1939, 1.0
        %v1976 = vsub.f32 %v1941, 1.0
        %v1977 = vsub.f32 %v1943, 1.0
        %v1978 = vsub.f32 %v1945, 1.0
        %v1979 = vsub.f32 %v1947, 1.0
        %v1980 = vsub.f32 %v1949, 1.0
        %v1981 = vsub.f32 %v1951, 1.0
        %v1982 = vsub.f32 %v1953, 1.0
        %v1983 = vsub.f32 %v1955, 1.0
        %v1984 = vsub.f32 %v1957, 1.0
        %v1985 = vsub.f32 %v1959, 1.0
        %v1986 = vsub.f32 %v1961, 1.0
        %v1987 = vsub.f32 %v1963, 1.0
        %v1988 = vsub.f32 %v1965, 1.0
        %v1989 = vsub.f32 %v1967, 1.0
        %v1990 = vsub.f32 %v1969, 1.0
        %v1991 = vsub.f32 %v1971, 1.0
        %v1992 = vsub.f32 %v1973, 1.0
        %v1993 = vsel %vm1898, %v1879, %v1974
        %v1994 = vsel %vm1899, %v1880, %v1975
        %v1995 = vsel %vm1900, %v1881, %v1976
        %v1996 = vsel %vm1901, %v1882, %v1977
        %v1997 = vsel %vm1902, %v1883, %v1978
        %v1998 = vsel %vm1903, %v1884, %v1979
        %v1999 = vsel %vm1904, %v1885, %v1980
        %v2000 = vsel %vm1905, %v1886, %v1981
        %v2001 = vsel %vm1906, %v1887, %v1982
        %v2002 = vsel %vm1907, %v1888, %v1983
        %v2003 = vsel %vm1908, %v1889, %v1984
        %v2004 = vsel %vm1909, %v1890, %v1985
        %v2005 = vsel %vm1910, %v1891, %v1986
        %v2006 = vsel %vm1911, %v1892, %v1987
        %v2007 = vsel %vm1912, %v1893, %v1988
        %v2008 = vsel %vm1913, %v1894, %v1989
        %v2009 = vsel %vm1914, %v1895, %v1990
        %v2010 = vsel %vm1915, %v1896, %v1991
        %v2011 = vsel %vm1916, %v1897, %v1992
        %v2012 = vld [vmem:[%s4] sm:$0xff]
        %2014 = vset.pattern.permute.xlu0 0
        %2015 = vperm.xlu0 %2014, %v2012
        %v2016 = vpop.permute.xlu0 %2015
        %v2018 = vmul.f32 %v1993, %v2016
        %v2019 = vsel %vm887, %v2018, 0.0
        %v2020 = vrot.slane %v2019, 4
        %v2021 = vadd.f32 %v2019, %v2020
        %v2022 = vrot.slane %v2021, 2
        %v2023 = vadd.f32 %v2021, %v2022
        %v2024 = vrot.slane %v2023, 1
        %v2025 = vadd.f32 %v2023, %v2024
        %2026 = vset.pattern.permute.xlu0 24
        %2027 = vperm.xlu0 %2026, %v2012
        %v2028 = vpop.permute.xlu0 %2027
        %v2030 = vmul.f32 %v1993, %v2028
        %v2031 = vsel %vm887, %v2030, 0.0
        %v2032 = vrot.slane %v2031, 4
        %v2033 = vadd.f32 %v2031, %v2032
        %v2034 = vrot.slane %v2033, 2
        %v2035 = vadd.f32 %v2033, %v2034
        %v2036 = vrot.slane %v2035, 1
        %v2037 = vadd.f32 %v2035, %v2036
        %2038 = vset.pattern.permute.xlu0 1
        %2039 = vperm.xlu0 %2038, %v2012
        %v2040 = vpop.permute.xlu0 %2039
        %v2042 = vmul.f32 %v1993, %v2040
        %v2043 = vmul.f32 %v1994, %v2040
        %vm2044 = vcmask 1048352
        %v2045 = vsel %vm2044, %v2042, 0.0
        %v2046 = vrot.slane %v2045, 4
        %v2047 = vadd.f32 %v2045, %v2046
        %v2048 = vrot.slane %v2047, 2
        %v2049 = vadd.f32 %v2047, %v2048
        %v2050 = vrot.slane %v2049, 1
        %v2051 = vadd.f32 %v2049, %v2050
        %vm2052 = vcmask 588800
        %v2053 = vsel %vm2052, %v2043, 0.0
        %v2054 = vrot.slane %v2053, 4
        %v2055 = vadd.f32 %v2053, %v2054
        %v2056 = vrot.slane %v2055, 2
        %v2057 = vadd.f32 %v2055, %v2056
        %v2058 = vrot.slane %v2057, 1
        %v2059 = vadd.f32 %v2057, %v2058
        %2060 = vset.pattern.permute.xlu0 25
        %2061 = vperm.xlu0 %2060, %v2012
        %v2062 = vpop.permute.xlu0 %2061
        %v2064 = vmul.f32 %v1993, %v2062
        %v2065 = vmul.f32 %v1994, %v2062
        %v2066 = vsel %vm2044, %v2064, 0.0
        %v2067 = vrot.slane %v2066, 4
        %v2068 = vadd.f32 %v2066, %v2067
        %v2069 = vrot.slane %v2068, 2
        %v2070 = vadd.f32 %v2068, %v2069
        %v2071 = vrot.slane %v2070, 1
        %v2072 = vadd.f32 %v2070, %v2071
        %v2073 = vsel %vm2052, %v2065, 0.0
        %v2074 = vrot.slane %v2073, 4
        %v2075 = vadd.f32 %v2073, %v2074
        %v2076 = vrot.slane %v2075, 2
        %v2077 = vadd.f32 %v2075, %v2076
        %v2078 = vrot.slane %v2077, 1
        %v2079 = vadd.f32 %v2077, %v2078
        %2080 = vset.pattern.permute.xlu0 2
        %2081 = vperm.xlu0 %2080, %v2012
        %v2082 = vpop.permute.xlu0 %2081
        %v2084 = vmul.f32 %v1994, %v2082
        %v2085 = vmul.f32 %v1995, %v2082
        %vm2086 = vcmask 1048128
        %v2087 = vsel %vm2086, %v2084, 0.0
        %v2088 = vrot.slane %v2087, 4
        %v2089 = vadd.f32 %v2087, %v2088
        %v2090 = vrot.slane %v2089, 2
        %v2091 = vadd.f32 %v2089, %v2090
        %v2092 = vrot.slane %v2091, 1
        %v2093 = vadd.f32 %v2091, %v2092
        %vm2094 = vcmask 359424
        %v2095 = vsel %vm2094, %v2085, 0.0
        %v2096 = vrot.slane %v2095, 4
        %v2097 = vadd.f32 %v2095, %v2096
        %v2098 = vrot.slane %v2097, 2
        %v2099 = vadd.f32 %v2097, %v2098
        %v2100 = vrot.slane %v2099, 1
        %v2101 = vadd.f32 %v2099, %v2100
        %2102 = vset.pattern.permute.xlu0 26
        %2103 = vperm.xlu0 %2102, %v2012
        %v2104 = vpop.permute.xlu0 %2103
        %v2106 = vmul.f32 %v1994, %v2104
        %v2107 = vmul.f32 %v1995, %v2104
        %v2108 = vsel %vm2086, %v2106, 0.0
        %v2109 = vrot.slane %v2108, 4
        %v2110 = vadd.f32 %v2108, %v2109
        %v2111 = vrot.slane %v2110, 2
        %v2112 = vadd.f32 %v2110, %v2111
        %v2113 = vrot.slane %v2112, 1
        %v2114 = vadd.f32 %v2112, %v2113
        %v2115 = vsel %vm2094, %v2107, 0.0
        %v2116 = vrot.slane %v2115, 4
        %v2117 = vadd.f32 %v2115, %v2116
        %v2118 = vrot.slane %v2117, 2
        %v2119 = vadd.f32 %v2117, %v2118
        %v2120 = vrot.slane %v2119, 1
        %v2121 = vadd.f32 %v2119, %v2120
        %2122 = vset.pattern.permute.xlu0 3
        %2123 = vperm.xlu0 %2122, %v2012
        %v2124 = vpop.permute.xlu0 %2123
        %v2126 = vmul.f32 %v1995, %v2124
        %v2127 = vmul.f32 %v1996, %v2124
        %vm2128 = vcmask 1047904
        %v2129 = vsel %vm2128, %v2126, 0.0
        %v2130 = vrot.slane %v2129, 4
        %v2131 = vadd.f32 %v2129, %v2130
        %v2132 = vrot.slane %v2131, 2
        %v2133 = vadd.f32 %v2131, %v2132
        %v2134 = vrot.slane %v2133, 1
        %v2135 = vadd.f32 %v2133, %v2134
        %vm2136 = vcmask 130048
        %v2137 = vsel %vm2136, %v2127, 0.0
        %v2138 = vrot.slane %v2137, 4
        %v2139 = vadd.f32 %v2137, %v2138
        %v2140 = vrot.slane %v2139, 2
        %v2141 = vadd.f32 %v2139, %v2140
        %v2142 = vrot.slane %v2141, 1
        %v2143 = vadd.f32 %v2141, %v2142
        %2144 = vset.pattern.permute.xlu0 27
        %2145 = vperm.xlu0 %2144, %v2012
        %v2146 = vpop.permute.xlu0 %2145
        %v2148 = vmul.f32 %v1995, %v2146
        %v2149 = vmul.f32 %v1996, %v2146
        %v2150 = vsel %vm2128, %v2148, 0.0
        %v2151 = vrot.slane %v2150, 4
        %v2152 = vadd.f32 %v2150, %v2151
        %v2153 = vrot.slane %v2152, 2
        %v2154 = vadd.f32 %v2152, %v2153
        %v2155 = vrot.slane %v2154, 1
        %v2156 = vadd.f32 %v2154, %v2155
        %v2157 = vsel %vm2136, %v2149, 0.0
        %v2158 = vrot.slane %v2157, 4
        %v2159 = vadd.f32 %v2157, %v2158
        %v2160 = vrot.slane %v2159, 2
        %v2161 = vadd.f32 %v2159, %v2160
        %v2162 = vrot.slane %v2161, 1
        %v2163 = vadd.f32 %v2161, %v2162
        %2164 = vset.pattern.permute.xlu0 4
        %2165 = vperm.xlu0 %2164, %v2012
        %v2166 = vpop.permute.xlu0 %2165
        %v2168 = vmul.f32 %v1996, %v2166
        %vm2169 = vcmask 949376
        %v2170 = vsel %vm2169, %v2168, 0.0
        %v2171 = vrot.slane %v2170, 4
        %v2172 = vadd.f32 %v2170, %v2171
        %v2173 = vrot.slane %v2172, 2
        %v2174 = vadd.f32 %v2172, %v2173
        %v2175 = vrot.slane %v2174, 1
        %v2176 = vadd.f32 %v2174, %v2175
        %2177 = vset.pattern.permute.xlu0 28
        %2178 = vperm.xlu0 %2177, %v2012
        %v2179 = vpop.permute.xlu0 %2178
        %v2181 = vmul.f32 %v1996, %v2179
        %v2182 = vsel %vm2169, %v2181, 0.0
        %v2183 = vrot.slane %v2182, 4
        %v2184 = vadd.f32 %v2182, %v2183
        %v2185 = vrot.slane %v2184, 2
        %v2186 = vadd.f32 %v2184, %v2185
        %v2187 = vrot.slane %v2186, 1
        %v2188 = vadd.f32 %v2186, %v2187
        %2189 = vset.pattern.permute.xlu0 5
        %2190 = vperm.xlu0 %2189, %v2012
        %v2191 = vpop.permute.xlu0 %2190
        %v2193 = vmul.f32 %v1996, %v2191
        %v2194 = vmul.f32 %v1997, %v2191
        %vm2195 = vcmask 1048480
        %v2196 = vsel %vm2195, %v2193, 0.0
        %v2197 = vrot.slane %v2196, 4
        %v2198 = vadd.f32 %v2196, %v2197
        %v2199 = vrot.slane %v2198, 2
        %v2200 = vadd.f32 %v2198, %v2199
        %v2201 = vrot.slane %v2200, 1
        %v2202 = vadd.f32 %v2200, %v2201
        %vm2203 = vcmask 719872
        %v2204 = vsel %vm2203, %v2194, 0.0
        %v2205 = vrot.slane %v2204, 4
        %v2206 = vadd.f32 %v2204, %v2205
        %v2207 = vrot.slane %v2206, 2
        %v2208 = vadd.f32 %v2206, %v2207
        %v2209 = vrot.slane %v2208, 1
        %v2210 = vadd.f32 %v2208, %v2209
        %2211 = vset.pattern.permute.xlu0 29
        %2212 = vperm.xlu0 %2211, %v2012
        %v2213 = vpop.permute.xlu0 %2212
        %v2215 = vmul.f32 %v1996, %v2213
        %v2216 = vmul.f32 %v1997, %v2213
        %v2217 = vsel %vm2195, %v2215, 0.0
        %v2218 = vrot.slane %v2217, 4
        %v2219 = vadd.f32 %v2217, %v2218
        %v2220 = vrot.slane %v2219, 2
        %v2221 = vadd.f32 %v2219, %v2220
        %v2222 = vrot.slane %v2221, 1
        %v2223 = vadd.f32 %v2221, %v2222
        %v2224 = vsel %vm2203, %v2216, 0.0
        %v2225 = vrot.slane %v2224, 4
        %v2226 = vadd.f32 %v2224, %v2225
        %v2227 = vrot.slane %v2226, 2
        %v2228 = vadd.f32 %v2226, %v2227
        %v2229 = vrot.slane %v2228, 1
        %v2230 = vadd.f32 %v2228, %v2229
        %2231 = vset.pattern.permute.xlu0 6
        %2232 = vperm.xlu0 %2231, %v2012
        %v2233 = vpop.permute.xlu0 %2232
        %v2235 = vmul.f32 %v1997, %v2233
        %v2236 = vmul.f32 %v1998, %v2233
        %vm2237 = vcmask 1048256
        %v2238 = vsel %vm2237, %v2235, 0.0
        %v2239 = vrot.slane %v2238, 4
        %v2240 = vadd.f32 %v2238, %v2239
        %v2241 = vrot.slane %v2240, 2
        %v2242 = vadd.f32 %v2240, %v2241
        %v2243 = vrot.slane %v2242, 1
        %v2244 = vadd.f32 %v2242, %v2243
        %vm2245 = vcmask 490496
        %v2246 = vsel %vm2245, %v2236, 0.0
        %v2247 = vrot.slane %v2246, 4
        %v2248 = vadd.f32 %v2246, %v2247
        %v2249 = vrot.slane %v2248, 2
        %v2250 = vadd.f32 %v2248, %v2249
        %v2251 = vrot.slane %v2250, 1
        %v2252 = vadd.f32 %v2250, %v2251
        %2253 = vset.pattern.permute.xlu0 30
        %2254 = vperm.xlu0 %2253, %v2012
        %v2255 = vpop.permute.xlu0 %2254
        %v2257 = vmul.f32 %v1997, %v2255
        %v2258 = vmul.f32 %v1998, %v2255
        %v2259 = vsel %vm2237, %v2257, 0.0
        %v2260 = vrot.slane %v2259, 4
        %v2261 = vadd.f32 %v2259, %v2260
        %v2262 = vrot.slane %v2261, 2
        %v2263 = vadd.f32 %v2261, %v2262
        %v2264 = vrot.slane %v2263, 1
        %v2265 = vadd.f32 %v2263, %v2264
        %v2266 = vsel %vm2245, %v2258, 0.0
        %v2267 = vrot.slane %v2266, 4
        %v2268 = vadd.f32 %v2266, %v2267
        %v2269 = vrot.slane %v2268, 2
        %v2270 = vadd.f32 %v2268, %v2269
        %v2271 = vrot.slane %v2270, 1
        %v2272 = vadd.f32 %v2270, %v2271
        %2273 = vset.pattern.permute.xlu0 7
        %2274 = vperm.xlu0 %2273, %v2012
        %v2275 = vpop.permute.xlu0 %2274
        %v2277 = vmul.f32 %v1998, %v2275
        %v2278 = vmul.f32 %v1999, %v2275
        %vm2279 = vcmask 1048032
        %v2280 = vsel %vm2279, %v2277, 0.0
        %v2281 = vrot.slane %v2280, 4
        %v2282 = vadd.f32 %v2280, %v2281
        %v2283 = vrot.slane %v2282, 2
        %v2284 = vadd.f32 %v2282, %v2283
        %v2285 = vrot.slane %v2284, 1
        %v2286 = vadd.f32 %v2284, %v2285
        %vm2287 = vcmask 261120
        %v2288 = vsel %vm2287, %v2278, 0.0
        %v2289 = vrot.slane %v2288, 4
        %v2290 = vadd.f32 %v2288, %v2289
        %v2291 = vrot.slane %v2290, 2
        %v2292 = vadd.f32 %v2290, %v2291
        %v2293 = vrot.slane %v2292, 1
        %v2294 = vadd.f32 %v2292, %v2293
        %2295 = vset.pattern.permute.xlu0 31
        %2296 = vperm.xlu0 %2295, %v2012
        %v2297 = vpop.permute.xlu0 %2296
        %v2299 = vmul.f32 %v1998, %v2297
        %v2300 = vmul.f32 %v1999, %v2297
        %v2301 = vsel %vm2279, %v2299, 0.0
        %v2302 = vrot.slane %v2301, 4
        %v2303 = vadd.f32 %v2301, %v2302
        %v2304 = vrot.slane %v2303, 2
        %v2305 = vadd.f32 %v2303, %v2304
        %v2306 = vrot.slane %v2305, 1
        %v2307 = vadd.f32 %v2305, %v2306
        %v2308 = vsel %vm2287, %v2300, 0.0
        %v2309 = vrot.slane %v2308, 4
        %v2310 = vadd.f32 %v2308, %v2309
        %v2311 = vrot.slane %v2310, 2
        %v2312 = vadd.f32 %v2310, %v2311
        %v2313 = vrot.slane %v2312, 1
        %v2314 = vadd.f32 %v2312, %v2313
        %2315 = vset.pattern.permute.xlu0 8
        %2316 = vperm.xlu0 %2315, %v2012
        %v2317 = vpop.permute.xlu0 %2316
        %v2319 = vmul.f32 %v1999, %v2317
        %v2320 = vmul.f32 %v2000, %v2317
        %vm2321 = vcmask 1047808
        %v2322 = vsel %vm2321, %v2319, 0.0
        %v2323 = vrot.slane %v2322, 4
        %v2324 = vadd.f32 %v2322, %v2323
        %v2325 = vrot.slane %v2324, 2
        %v2326 = vadd.f32 %v2324, %v2325
        %v2327 = vrot.slane %v2326, 1
        %v2328 = vadd.f32 %v2326, %v2327
        %vm2329 = vcmask 31744
        %v2330 = vsel %vm2329, %v2320, 0.0
        %v2331 = vrot.slane %v2330, 4
        %v2332 = vadd.f32 %v2330, %v2331
        %v2333 = vrot.slane %v2332, 2
        %v2334 = vadd.f32 %v2332, %v2333
        %v2335 = vrot.slane %v2334, 1
        %v2336 = vadd.f32 %v2334, %v2335
        %2337 = vset.pattern.permute.xlu0 32
        %2338 = vperm.xlu0 %2337, %v2012
        %v2339 = vpop.permute.xlu0 %2338
        %v2341 = vmul.f32 %v1999, %v2339
        %v2342 = vmul.f32 %v2000, %v2339
        %v2343 = vsel %vm2321, %v2341, 0.0
        %v2344 = vrot.slane %v2343, 4
        %v2345 = vadd.f32 %v2343, %v2344
        %v2346 = vrot.slane %v2345, 2
        %v2347 = vadd.f32 %v2345, %v2346
        %v2348 = vrot.slane %v2347, 1
        %v2349 = vadd.f32 %v2347, %v2348
        %v2350 = vsel %vm2329, %v2342, 0.0
        %v2351 = vrot.slane %v2350, 4
        %v2352 = vadd.f32 %v2350, %v2351
        %v2353 = vrot.slane %v2352, 2
        %v2354 = vadd.f32 %v2352, %v2353
        %v2355 = vrot.slane %v2354, 1
        %v2356 = vadd.f32 %v2354, %v2355
        %2357 = vset.pattern.permute.xlu0 9
        %2358 = vperm.xlu0 %2357, %v2012
        %v2359 = vpop.permute.xlu0 %2358
        %v2361 = vmul.f32 %v2000, %v2359
        %vm2362 = vcmask 850976
        %v2363 = vsel %vm2362, %v2361, 0.0
        %v2364 = vrot.slane %v2363, 4
        %v2365 = vadd.f32 %v2363, %v2364
        %v2366 = vrot.slane %v2365, 2
        %v2367 = vadd.f32 %v2365, %v2366
        %v2368 = vrot.slane %v2367, 1
        %v2369 = vadd.f32 %v2367, %v2368
        %2370 = vset.pattern.permute.xlu0 33
        %2371 = vperm.xlu0 %2370, %v2012
        %v2372 = vpop.permute.xlu0 %2371
        %v2374 = vmul.f32 %v2000, %v2372
        %v2375 = vsel %vm2362, %v2374, 0.0
        %v2376 = vrot.slane %v2375, 4
        %v2377 = vadd.f32 %v2375, %v2376
        %v2378 = vrot.slane %v2377, 2
        %v2379 = vadd.f32 %v2377, %v2378
        %v2380 = vrot.slane %v2379, 1
        %v2381 = vadd.f32 %v2379, %v2380
        %2382 = vset.pattern.permute.xlu0 10
        %2383 = vperm.xlu0 %2382, %v2012
        %v2384 = vpop.permute.xlu0 %2383
        %v2386 = vmul.f32 %v2000, %v2384
        %v2387 = vmul.f32 %v2001, %v2384
        %vm2388 = vcmask 1048384
        %v2389 = vsel %vm2388, %v2386, 0.0
        %v2390 = vrot.slane %v2389, 4
        %v2391 = vadd.f32 %v2389, %v2390
        %v2392 = vrot.slane %v2391, 2
        %v2393 = vadd.f32 %v2391, %v2392
        %v2394 = vrot.slane %v2393, 1
        %v2395 = vadd.f32 %v2393, %v2394
        %vm2396 = vcmask 621568
        %v2397 = vsel %vm2396, %v2387, 0.0
        %v2398 = vrot.slane %v2397, 4
        %v2399 = vadd.f32 %v2397, %v2398
        %v2400 = vrot.slane %v2399, 2
        %v2401 = vadd.f32 %v2399, %v2400
        %v2402 = vrot.slane %v2401, 1
        %v2403 = vadd.f32 %v2401, %v2402
        %2404 = vset.pattern.permute.xlu0 34
        %2405 = vperm.xlu0 %2404, %v2012
        %v2406 = vpop.permute.xlu0 %2405
        %v2408 = vmul.f32 %v2000, %v2406
        %v2409 = vmul.f32 %v2001, %v2406
        %v2410 = vsel %vm2388, %v2408, 0.0
        %v2411 = vrot.slane %v2410, 4
        %v2412 = vadd.f32 %v2410, %v2411
        %v2413 = vrot.slane %v2412, 2
        %v2414 = vadd.f32 %v2412, %v2413
        %v2415 = vrot.slane %v2414, 1
        %v2416 = vadd.f32 %v2414, %v2415
        %v2417 = vsel %vm2396, %v2409, 0.0
        %v2418 = vrot.slane %v2417, 4
        %v2419 = vadd.f32 %v2417, %v2418
        %v2420 = vrot.slane %v2419, 2
        %v2421 = vadd.f32 %v2419, %v2420
        %v2422 = vrot.slane %v2421, 1
        %v2423 = vadd.f32 %v2421, %v2422
        %2424 = vset.pattern.permute.xlu0 11
        %2425 = vperm.xlu0 %2424, %v2012
        %v2426 = vpop.permute.xlu0 %2425
        %v2428 = vmul.f32 %v2001, %v2426
        %v2429 = vmul.f32 %v2002, %v2426
        %vm2430 = vcmask 1048160
        %v2431 = vsel %vm2430, %v2428, 0.0
        %v2432 = vrot.slane %v2431, 4
        %v2433 = vadd.f32 %v2431, %v2432
        %v2434 = vrot.slane %v2433, 2
        %v2435 = vadd.f32 %v2433, %v2434
        %v2436 = vrot.slane %v2435, 1
        %v2437 = vadd.f32 %v2435, %v2436
        %vm2438 = vcmask 392192
        %v2439 = vsel %vm2438, %v2429, 0.0
        %v2440 = vrot.slane %v2439, 4
        %v2441 = vadd.f32 %v2439, %v2440
        %v2442 = vrot.slane %v2441, 2
        %v2443 = vadd.f32 %v2441, %v2442
        %v2444 = vrot.slane %v2443, 1
        %v2445 = vadd.f32 %v2443, %v2444
        %2446 = vset.pattern.permute.xlu0 35
        %2447 = vperm.xlu0 %2446, %v2012
        %v2448 = vpop.permute.xlu0 %2447
        %v2450 = vmul.f32 %v2001, %v2448
        %v2451 = vmul.f32 %v2002, %v2448
        %v2452 = vsel %vm2430, %v2450, 0.0
        %v2453 = vrot.slane %v2452, 4
        %v2454 = vadd.f32 %v2452, %v2453
        %v2455 = vrot.slane %v2454, 2
        %v2456 = vadd.f32 %v2454, %v2455
        %v2457 = vrot.slane %v2456, 1
        %v2458 = vadd.f32 %v2456, %v2457
        %v2459 = vsel %vm2438, %v2451, 0.0
        %v2460 = vrot.slane %v2459, 4
        %v2461 = vadd.f32 %v2459, %v2460
        %v2462 = vrot.slane %v2461, 2
        %v2463 = vadd.f32 %v2461, %v2462
        %v2464 = vrot.slane %v2463, 1
        %v2465 = vadd.f32 %v2463, %v2464
        %2466 = vset.pattern.permute.xlu0 12
        %2467 = vperm.xlu0 %2466, %v2012
        %v2468 = vpop.permute.xlu0 %2467
        %v2470 = vmul.f32 %v2002, %v2468
        %v2471 = vmul.f32 %v2003, %v2468
        %vm2472 = vcmask 1047936
        %v2473 = vsel %vm2472, %v2470, 0.0
        %v2474 = vrot.slane %v2473, 4
        %v2475 = vadd.f32 %v2473, %v2474
        %v2476 = vrot.slane %v2475, 2
        %v2477 = vadd.f32 %v2475, %v2476
        %v2478 = vrot.slane %v2477, 1
        %v2479 = vadd.f32 %v2477, %v2478
        %vm2480 = vcmask 162816
        %v2481 = vsel %vm2480, %v2471, 0.0
        %v2482 = vrot.slane %v2481, 4
        %v2483 = vadd.f32 %v2481, %v2482
        %v2484 = vrot.slane %v2483, 2
        %v2485 = vadd.f32 %v2483, %v2484
        %v2486 = vrot.slane %v2485, 1
        %v2487 = vadd.f32 %v2485, %v2486
        %2488 = vset.pattern.permute.xlu0 36
        %2489 = vperm.xlu0 %2488, %v2012
        %v2490 = vpop.permute.xlu0 %2489
        %v2492 = vmul.f32 %v2002, %v2490
        %v2493 = vmul.f32 %v2003, %v2490
        %v2494 = vsel %vm2472, %v2492, 0.0
        %v2495 = vrot.slane %v2494, 4
        %v2496 = vadd.f32 %v2494, %v2495
        %v2497 = vrot.slane %v2496, 2
        %v2498 = vadd.f32 %v2496, %v2497
        %v2499 = vrot.slane %v2498, 1
        %v2500 = vadd.f32 %v2498, %v2499
        %v2501 = vsel %vm2480, %v2493, 0.0
        %v2502 = vrot.slane %v2501, 4
        %v2503 = vadd.f32 %v2501, %v2502
        %v2504 = vrot.slane %v2503, 2
        %v2505 = vadd.f32 %v2503, %v2504
        %v2506 = vrot.slane %v2505, 1
        %v2507 = vadd.f32 %v2505, %v2506
        %2508 = vset.pattern.permute.xlu0 13
        %2509 = vperm.xlu0 %2508, %v2012
        %v2510 = vpop.permute.xlu0 %2509
        %v2512 = vmul.f32 %v2003, %v2510
        %vm2513 = vcmask 982176
        %v2514 = vsel %vm2513, %v2512, 0.0
        %v2515 = vrot.slane %v2514, 4
        %v2516 = vadd.f32 %v2514, %v2515
        %v2517 = vrot.slane %v2516, 2
        %v2518 = vadd.f32 %v2516, %v2517
        %v2519 = vrot.slane %v2518, 1
        %v2520 = vadd.f32 %v2518, %v2519
        %2521 = vset.pattern.permute.xlu0 37
        %2522 = vperm.xlu0 %2521, %v2012
        %v2523 = vpop.permute.xlu0 %2522
        %v2525 = vmul.f32 %v2003, %v2523
        %v2526 = vsel %vm2513, %v2525, 0.0
        %v2527 = vrot.slane %v2526, 4
        %v2528 = vadd.f32 %v2526, %v2527
        %v2529 = vrot.slane %v2528, 2
        %v2530 = vadd.f32 %v2528, %v2529
        %v2531 = vrot.slane %v2530, 1
        %v2532 = vadd.f32 %v2530, %v2531
        %2533 = vset.pattern.permute.xlu0 14
        %2534 = vperm.xlu0 %2533, %v2012
        %v2535 = vpop.permute.xlu0 %2534
        %v2537 = vmul.f32 %v2003, %v2535
        %v2538 = vmul.f32 %v2004, %v2535
        %vm2539 = vcmask 1048512
        %v2540 = vsel %vm2539, %v2537, 0.0
        %v2541 = vrot.slane %v2540, 4
        %v2542 = vadd.f32 %v2540, %v2541
        %v2543 = vrot.slane %v2542, 2
        %v2544 = vadd.f32 %v2542, %v2543
        %v2545 = vrot.slane %v2544, 1
        %v2546 = vadd.f32 %v2544, %v2545
        %vm2547 = vcmask 752640
        %v2548 = vsel %vm2547, %v2538, 0.0
        %v2549 = vrot.slane %v2548, 4
        %v2550 = vadd.f32 %v2548, %v2549
        %v2551 = vrot.slane %v2550, 2
        %v2552 = vadd.f32 %v2550, %v2551
        %v2553 = vrot.slane %v2552, 1
        %v2554 = vadd.f32 %v2552, %v2553
        %2555 = vset.pattern.permute.xlu0 38
        %2556 = vperm.xlu0 %2555, %v2012
        %v2557 = vpop.permute.xlu0 %2556
        %v2559 = vmul.f32 %v2003, %v2557
        %v2560 = vmul.f32 %v2004, %v2557
        %v2561 = vsel %vm2539, %v2559, 0.0
        %v2562 = vrot.slane %v2561, 4
        %v2563 = vadd.f32 %v2561, %v2562
        %v2564 = vrot.slane %v2563, 2
        %v2565 = vadd.f32 %v2563, %v2564
        %v2566 = vrot.slane %v2565, 1
        %v2567 = vadd.f32 %v2565, %v2566
        %v2568 = vsel %vm2547, %v2560, 0.0
        %v2569 = vrot.slane %v2568, 4
        %v2570 = vadd.f32 %v2568, %v2569
        %v2571 = vrot.slane %v2570, 2
        %v2572 = vadd.f32 %v2570, %v2571
        %v2573 = vrot.slane %v2572, 1
        %v2574 = vadd.f32 %v2572, %v2573
        %2575 = vset.pattern.permute.xlu0 15
        %2576 = vperm.xlu0 %2575, %v2012
        %v2577 = vpop.permute.xlu0 %2576
        %v2579 = vmul.f32 %v2004, %v2577
        %v2580 = vmul.f32 %v2005, %v2577
        %vm2581 = vcmask 1048288
        %v2582 = vsel %vm2581, %v2579, 0.0
        %v2583 = vrot.slane %v2582, 4
        %v2584 = vadd.f32 %v2582, %v2583
        %v2585 = vrot.slane %v2584, 2
        %v2586 = vadd.f32 %v2584, %v2585
        %v2587 = vrot.slane %v2586, 1
        %v2588 = vadd.f32 %v2586, %v2587
        %vm2589 = vcmask 523264
        %v2590 = vsel %vm2589, %v2580, 0.0
        %v2591 = vrot.slane %v2590, 4
        %v2592 = vadd.f32 %v2590, %v2591
        %v2593 = vrot.slane %v2592, 2
        %v2594 = vadd.f32 %v2592, %v2593
        %v2595 = vrot.slane %v2594, 1
        %v2596 = vadd.f32 %v2594, %v2595
        %2597 = vset.pattern.permute.xlu0 39
        %2598 = vperm.xlu0 %2597, %v2012
        %v2599 = vpop.permute.xlu0 %2598
        %v2601 = vmul.f32 %v2004, %v2599
        %v2602 = vmul.f32 %v2005, %v2599
        %v2603 = vsel %vm2581, %v2601, 0.0
        %v2604 = vrot.slane %v2603, 4
        %v2605 = vadd.f32 %v2603, %v2604
        %v2606 = vrot.slane %v2605, 2
        %v2607 = vadd.f32 %v2605, %v2606
        %v2608 = vrot.slane %v2607, 1
        %v2609 = vadd.f32 %v2607, %v2608
        %v2610 = vsel %vm2589, %v2602, 0.0
        %v2611 = vrot.slane %v2610, 4
        %v2612 = vadd.f32 %v2610, %v2611
        %v2613 = vrot.slane %v2612, 2
        %v2614 = vadd.f32 %v2612, %v2613
        %v2615 = vrot.slane %v2614, 1
        %v2616 = vadd.f32 %v2614, %v2615
        %2617 = vset.pattern.permute.xlu0 16
        %2618 = vperm.xlu0 %2617, %v2012
        %v2619 = vpop.permute.xlu0 %2618
        %v2621 = vmul.f32 %v2005, %v2619
        %v2622 = vmul.f32 %v2006, %v2619
        %vm2623 = vcmask 1048064
        %v2624 = vsel %vm2623, %v2621, 0.0
        %v2625 = vrot.slane %v2624, 4
        %v2626 = vadd.f32 %v2624, %v2625
        %v2627 = vrot.slane %v2626, 2
        %v2628 = vadd.f32 %v2626, %v2627
        %v2629 = vrot.slane %v2628, 1
        %v2630 = vadd.f32 %v2628, %v2629
        %vm2631 = vcmask 293888
        %v2632 = vsel %vm2631, %v2622, 0.0
        %v2633 = vrot.slane %v2632, 4
        %v2634 = vadd.f32 %v2632, %v2633
        %v2635 = vrot.slane %v2634, 2
        %v2636 = vadd.f32 %v2634, %v2635
        %v2637 = vrot.slane %v2636, 1
        %v2638 = vadd.f32 %v2636, %v2637
        %2639 = vset.pattern.permute.xlu0 40
        %2640 = vperm.xlu0 %2639, %v2012
        %v2641 = vpop.permute.xlu0 %2640
        %v2643 = vmul.f32 %v2005, %v2641
        %v2644 = vmul.f32 %v2006, %v2641
        %v2645 = vsel %vm2623, %v2643, 0.0
        %v2646 = vrot.slane %v2645, 4
        %v2647 = vadd.f32 %v2645, %v2646
        %v2648 = vrot.slane %v2647, 2
        %v2649 = vadd.f32 %v2647, %v2648
        %v2650 = vrot.slane %v2649, 1
        %v2651 = vadd.f32 %v2649, %v2650
        %v2652 = vsel %vm2631, %v2644, 0.0
        %v2653 = vrot.slane %v2652, 4
        %v2654 = vadd.f32 %v2652, %v2653
        %v2655 = vrot.slane %v2654, 2
        %v2656 = vadd.f32 %v2654, %v2655
        %v2657 = vrot.slane %v2656, 1
        %v2658 = vadd.f32 %v2656, %v2657
        %2659 = vset.pattern.permute.xlu0 17
        %2660 = vperm.xlu0 %2659, %v2012
        %v2661 = vpop.permute.xlu0 %2660
        %v2663 = vmul.f32 %v2006, %v2661
        %v2664 = vmul.f32 %v2007, %v2661
        %vm2665 = vcmask 1047840
        %v2666 = vsel %vm2665, %v2663, 0.0
        %v2667 = vrot.slane %v2666, 4
        %v2668 = vadd.f32 %v2666, %v2667
        %v2669 = vrot.slane %v2668, 2
        %v2670 = vadd.f32 %v2668, %v2669
        %v2671 = vrot.slane %v2670, 1
        %v2672 = vadd.f32 %v2670, %v2671
        %vm2673 = vcmask 64512
        %v2674 = vsel %vm2673, %v2664, 0.0
        %v2675 = vrot.slane %v2674, 4
        %v2676 = vadd.f32 %v2674, %v2675
        %v2677 = vrot.slane %v2676, 2
        %v2678 = vadd.f32 %v2676, %v2677
        %v2679 = vrot.slane %v2678, 1
        %v2680 = vadd.f32 %v2678, %v2679
        %2681 = vset.pattern.permute.xlu0 41
        %2682 = vperm.xlu0 %2681, %v2012
        %v2683 = vpop.permute.xlu0 %2682
        %v2685 = vmul.f32 %v2006, %v2683
        %v2686 = vmul.f32 %v2007, %v2683
        %v2687 = vsel %vm2665, %v2685, 0.0
        %v2688 = vrot.slane %v2687, 4
        %v2689 = vadd.f32 %v2687, %v2688
        %v2690 = vrot.slane %v2689, 2
        %v2691 = vadd.f32 %v2689, %v2690
        %v2692 = vrot.slane %v2691, 1
        %v2693 = vadd.f32 %v2691, %v2692
        %v2694 = vsel %vm2673, %v2686, 0.0
        %v2695 = vrot.slane %v2694, 4
        %v2696 = vadd.f32 %v2694, %v2695
        %v2697 = vrot.slane %v2696, 2
        %v2698 = vadd.f32 %v2696, %v2697
        %v2699 = vrot.slane %v2698, 1
        %v2700 = vadd.f32 %v2698, %v2699
        %2701 = vset.pattern.permute.xlu0 18
        %2702 = vperm.xlu0 %2701, %v2012
        %v2703 = vpop.permute.xlu0 %2702
        %v2705 = vmul.f32 %v2007, %v2703
        %vm2706 = vcmask 883776
        %v2707 = vsel %vm2706, %v2705, 0.0
        %v2708 = vrot.slane %v2707, 4
        %v2709 = vadd.f32 %v2707, %v2708
        %v2710 = vrot.slane %v2709, 2
        %v2711 = vadd.f32 %v2709, %v2710
        %v2712 = vrot.slane %v2711, 1
        %v2713 = vadd.f32 %v2711, %v2712
        %2714 = vset.pattern.permute.xlu0 42
        %2715 = vperm.xlu0 %2714, %v2012
        %v2716 = vpop.permute.xlu0 %2715
        %v2718 = vmul.f32 %v2007, %v2716
        %v2719 = vsel %vm2706, %v2718, 0.0
        %v2720 = vrot.slane %v2719, 4
        %v2721 = vadd.f32 %v2719, %v2720
        %v2722 = vrot.slane %v2721, 2
        %v2723 = vadd.f32 %v2721, %v2722
        %v2724 = vrot.slane %v2723, 1
        %v2725 = vadd.f32 %v2723, %v2724
        %2726 = vset.pattern.permute.xlu0 19
        %2727 = vperm.xlu0 %2726, %v2012
        %v2728 = vpop.permute.xlu0 %2727
        %v2730 = vmul.f32 %v2007, %v2728
        %v2731 = vmul.f32 %v2008, %v2728
        %vm2732 = vcmask 1048416
        %v2733 = vsel %vm2732, %v2730, 0.0
        %v2734 = vrot.slane %v2733, 4
        %v2735 = vadd.f32 %v2733, %v2734
        %v2736 = vrot.slane %v2735, 2
        %v2737 = vadd.f32 %v2735, %v2736
        %v2738 = vrot.slane %v2737, 1
        %v2739 = vadd.f32 %v2737, %v2738
        %vm2740 = vcmask 654336
        %v2741 = vsel %vm2740, %v2731, 0.0
        %v2742 = vrot.slane %v2741, 4
        %v2743 = vadd.f32 %v2741, %v2742
        %v2744 = vrot.slane %v2743, 2
        %v2745 = vadd.f32 %v2743, %v2744
        %v2746 = vrot.slane %v2745, 1
        %v2747 = vadd.f32 %v2745, %v2746
        %2748 = vset.pattern.permute.xlu0 43
        %2749 = vperm.xlu0 %2748, %v2012
        %v2750 = vpop.permute.xlu0 %2749
        %v2752 = vmul.f32 %v2007, %v2750
        %v2753 = vmul.f32 %v2008, %v2750
        %v2754 = vsel %vm2732, %v2752, 0.0
        %v2755 = vrot.slane %v2754, 4
        %v2756 = vadd.f32 %v2754, %v2755
        %v2757 = vrot.slane %v2756, 2
        %v2758 = vadd.f32 %v2756, %v2757
        %v2759 = vrot.slane %v2758, 1
        %v2760 = vadd.f32 %v2758, %v2759
        %v2761 = vsel %vm2740, %v2753, 0.0
        %v2762 = vrot.slane %v2761, 4
        %v2763 = vadd.f32 %v2761, %v2762
        %v2764 = vrot.slane %v2763, 2
        %v2765 = vadd.f32 %v2763, %v2764
        %v2766 = vrot.slane %v2765, 1
        %v2767 = vadd.f32 %v2765, %v2766
        %2768 = vset.pattern.permute.xlu0 20
        %2769 = vperm.xlu0 %2768, %v2012
        %v2770 = vpop.permute.xlu0 %2769
        %v2772 = vmul.f32 %v2008, %v2770
        %v2773 = vmul.f32 %v2009, %v2770
        %vm2774 = vcmask 1048192
        %v2775 = vsel %vm2774, %v2772, 0.0
        %v2776 = vrot.slane %v2775, 4
        %v2777 = vadd.f32 %v2775, %v2776
        %v2778 = vrot.slane %v2777, 2
        %v2779 = vadd.f32 %v2777, %v2778
        %v2780 = vrot.slane %v2779, 1
        %v2781 = vadd.f32 %v2779, %v2780
        %vm2782 = vcmask 424960
        %v2783 = vsel %vm2782, %v2773, 0.0
        %v2784 = vrot.slane %v2783, 4
        %v2785 = vadd.f32 %v2783, %v2784
        %v2786 = vrot.slane %v2785, 2
        %v2787 = vadd.f32 %v2785, %v2786
        %v2788 = vrot.slane %v2787, 1
        %v2789 = vadd.f32 %v2787, %v2788
        %2790 = vset.pattern.permute.xlu0 44
        %2791 = vperm.xlu0 %2790, %v2012
        %v2792 = vpop.permute.xlu0 %2791
        %v2794 = vmul.f32 %v2008, %v2792
        %v2795 = vmul.f32 %v2009, %v2792
        %v2796 = vsel %vm2774, %v2794, 0.0
        %v2797 = vrot.slane %v2796, 4
        %v2798 = vadd.f32 %v2796, %v2797
        %v2799 = vrot.slane %v2798, 2
        %v2800 = vadd.f32 %v2798, %v2799
        %v2801 = vrot.slane %v2800, 1
        %v2802 = vadd.f32 %v2800, %v2801
        %v2803 = vsel %vm2782, %v2795, 0.0
        %v2804 = vrot.slane %v2803, 4
        %v2805 = vadd.f32 %v2803, %v2804
        %v2806 = vrot.slane %v2805, 2
        %v2807 = vadd.f32 %v2805, %v2806
        %v2808 = vrot.slane %v2807, 1
        %v2809 = vadd.f32 %v2807, %v2808
        %2810 = vset.pattern.permute.xlu0 21
        %2811 = vperm.xlu0 %2810, %v2012
        %v2812 = vpop.permute.xlu0 %2811
        %v2814 = vmul.f32 %v2009, %v2812
        %v2815 = vmul.f32 %v2010, %v2812
        %vm2816 = vcmask 1047968
        %v2817 = vsel %vm2816, %v2814, 0.0
        %v2818 = vrot.slane %v2817, 4
        %v2819 = vadd.f32 %v2817, %v2818
        %v2820 = vrot.slane %v2819, 2
        %v2821 = vadd.f32 %v2819, %v2820
        %v2822 = vrot.slane %v2821, 1
        %v2823 = vadd.f32 %v2821, %v2822
        %vm2824 = vcmask 195584
        %v2825 = vsel %vm2824, %v2815, 0.0
        %v2826 = vrot.slane %v2825, 4
        %v2827 = vadd.f32 %v2825, %v2826
        %v2828 = vrot.slane %v2827, 2
        %v2829 = vadd.f32 %v2827, %v2828
        %v2830 = vrot.slane %v2829, 1
        %v2831 = vadd.f32 %v2829, %v2830
        %2832 = vset.pattern.permute.xlu0 45
        %2833 = vperm.xlu0 %2832, %v2012
        %v2834 = vpop.permute.xlu0 %2833
        %v2836 = vmul.f32 %v2009, %v2834
        %v2837 = vmul.f32 %v2010, %v2834
        %v2838 = vsel %vm2816, %v2836, 0.0
        %v2839 = vrot.slane %v2838, 4
        %v2840 = vadd.f32 %v2838, %v2839
        %v2841 = vrot.slane %v2840, 2
        %v2842 = vadd.f32 %v2840, %v2841
        %v2843 = vrot.slane %v2842, 1
        %v2844 = vadd.f32 %v2842, %v2843
        %v2845 = vsel %vm2824, %v2837, 0.0
        %v2846 = vrot.slane %v2845, 4
        %v2847 = vadd.f32 %v2845, %v2846
        %v2848 = vrot.slane %v2847, 2
        %v2849 = vadd.f32 %v2847, %v2848
        %v2850 = vrot.slane %v2849, 1
        %v2851 = vadd.f32 %v2849, %v2850
        %2852 = vset.pattern.permute.xlu0 22
        %2853 = vperm.xlu0 %2852, %v2012
        %v2854 = vpop.permute.xlu0 %2853
        %v2856 = vmul.f32 %v2010, %v2854
        %vm2857 = vcmask 1014976
        %v2858 = vsel %vm2857, %v2856, 0.0
        %v2859 = vrot.slane %v2858, 4
        %v2860 = vadd.f32 %v2858, %v2859
        %v2861 = vrot.slane %v2860, 2
        %v2862 = vadd.f32 %v2860, %v2861
        %v2863 = vrot.slane %v2862, 1
        %v2864 = vadd.f32 %v2862, %v2863
        %2865 = vset.pattern.permute.xlu0 46
        %2866 = vperm.xlu0 %2865, %v2012
        %v2867 = vpop.permute.xlu0 %2866
        %v2869 = vmul.f32 %v2010, %v2867
        %v2870 = vsel %vm2857, %v2869, 0.0
        %v2871 = vrot.slane %v2870, 4
        %v2872 = vadd.f32 %v2870, %v2871
        %v2873 = vrot.slane %v2872, 2
        %v2874 = vadd.f32 %v2872, %v2873
        %v2875 = vrot.slane %v2874, 1
        %v2876 = vadd.f32 %v2874, %v2875
        %2877 = vset.pattern.permute.xlu0 23
        %2878 = vperm.xlu0 %2877, %v2012
        %v2879 = vpop.permute.xlu0 %2878
        %v2881 = vmul.f32 %v2010, %v2879
        %v2882 = vmul.f32 %v2011, %v2879
        %vm2883 = vcmask 1048544
        %v2884 = vsel %vm2883, %v2881, 0.0
        %v2885 = vrot.slane %v2884, 4
        %v2886 = vadd.f32 %v2884, %v2885
        %v2887 = vrot.slane %v2886, 2
        %v2888 = vadd.f32 %v2886, %v2887
        %v2889 = vrot.slane %v2888, 1
        %v2890 = vadd.f32 %v2888, %v2889
        %vm2891 = vcmask 785408
        %v2892 = vsel %vm2891, %v2882, 0.0
        %v2893 = vrot.slane %v2892, 4
        %v2894 = vadd.f32 %v2892, %v2893
        %v2895 = vrot.slane %v2894, 2
        %v2896 = vadd.f32 %v2894, %v2895
        %v2897 = vrot.slane %v2896, 1
        %v2898 = vadd.f32 %v2896, %v2897
        %2899 = vset.pattern.permute.xlu0 47
        %2900 = vperm.xlu0 %2899, %v2012
        %v2901 = vpop.permute.xlu0 %2900
        %v2903 = vmul.f32 %v2010, %v2901
        %v2904 = vmul.f32 %v2011, %v2901
        %v2905 = vsel %vm2883, %v2903, 0.0
        %v2906 = vrot.slane %v2905, 4
        %v2907 = vadd.f32 %v2905, %v2906
        %v2908 = vrot.slane %v2907, 2
        %v2909 = vadd.f32 %v2907, %v2908
        %v2910 = vrot.slane %v2909, 1
        %v2911 = vadd.f32 %v2909, %v2910
        %v2912 = vsel %vm2891, %v2904, 0.0
        %v2913 = vrot.slane %v2912, 4
        %v2914 = vadd.f32 %v2912, %v2913
        %v2915 = vrot.slane %v2914, 2
        %v2916 = vadd.f32 %v2914, %v2915
        %v2917 = vrot.slane %v2916, 1
        %v2918 = vadd.f32 %v2916, %v2917
        %2921 = vrot.lane.b32.xlu0 %v2051, 28
        %v2922 = vpop.permute.xlu0 %2921
        %2923 = vrot.lane.b32.xlu0 %v2059, 28
        %v2924 = vpop.permute.xlu0 %2923
        %vm2925 = vcmask 228352
        %v2926 = vsel %vm2925, %v2922, %v2924
        %2930 = vrot.lane.b32.xlu0 %v2093, 56
        %v2931 = vpop.permute.xlu0 %2930
        %2932 = vrot.lane.b32.xlu0 %v2101, 56
        %v2933 = vpop.permute.xlu0 %2932
        %vm2934 = vcmask 457728
        %v2935 = vsel %vm2934, %v2931, %v2933
        %2939 = vrot.lane.b32.xlu0 %v2135, 84
        %v2940 = vpop.permute.xlu0 %2939
        %2941 = vrot.lane.b32.xlu0 %v2143, 84
        %v2942 = vpop.permute.xlu0 %2941
        %vm2943 = vcmask 687104
        %v2944 = vsel %vm2943, %v2940, %v2942
        %2947 = vrot.lane.b32.xlu0 %v2176, 112
        %v2948 = vpop.permute.xlu0 %2947
        %2952 = vrot.lane.b32.xlu0 %v2202, 12
        %v2953 = vpop.permute.xlu0 %2952
        %2954 = vrot.lane.b32.xlu0 %v2210, 12
        %v2955 = vpop.permute.xlu0 %2954
        %vm2956 = vcmask 97280
        %v2957 = vsel %vm2956, %v2953, %v2955
        %2961 = vrot.lane.b32.xlu0 %v2244, 40
        %v2962 = vpop.permute.xlu0 %2961
        %2963 = vrot.lane.b32.xlu0 %v2252, 40
        %v2964 = vpop.permute.xlu0 %2963
        %vm2965 = vcmask 326656
        %v2966 = vsel %vm2965, %v2962, %v2964
        %2970 = vrot.lane.b32.xlu0 %v2286, 68
        %v2971 = vpop.permute.xlu0 %2970
        %2972 = vrot.lane.b32.xlu0 %v2294, 68
        %v2973 = vpop.permute.xlu0 %2972
        %vm2974 = vcmask 556032
        %v2975 = vsel %vm2974, %v2971, %v2973
        %2979 = vrot.lane.b32.xlu0 %v2328, 96
        %v2980 = vpop.permute.xlu0 %2979
        %2981 = vrot.lane.b32.xlu0 %v2336, 96
        %v2982 = vpop.permute.xlu0 %2981
        %v2983 = vsel %vm2891, %v2980, %v2982
        %2986 = vrot.lane.b32.xlu0 %v2369, 124
        %v2987 = vpop.permute.xlu0 %2986
        %2991 = vrot.lane.b32.xlu0 %v2395, 24
        %v2992 = vpop.permute.xlu0 %2991
        %2993 = vrot.lane.b32.xlu0 %v2403, 24
        %v2994 = vpop.permute.xlu0 %2993
        %v2995 = vsel %vm2824, %v2992, %v2994
        %2999 = vrot.lane.b32.xlu0 %v2437, 52
        %v3000 = vpop.permute.xlu0 %2999
        %3001 = vrot.lane.b32.xlu0 %v2445, 52
        %v3002 = vpop.permute.xlu0 %3001
        %v3003 = vsel %vm2782, %v3000, %v3002
        %3007 = vrot.lane.b32.xlu0 %v2479, 80
        %v3008 = vpop.permute.xlu0 %3007
        %3009 = vrot.lane.b32.xlu0 %v2487, 80
        %v3010 = vpop.permute.xlu0 %3009
        %v3011 = vsel %vm2740, %v3008, %v3010
        %3014 = vrot.lane.b32.xlu0 %v2520, 108
        %v3015 = vpop.permute.xlu0 %3014
        %3019 = vrot.lane.b32.xlu0 %v2546, 8
        %v3020 = vpop.permute.xlu0 %3019
        %3021 = vrot.lane.b32.xlu0 %v2554, 8
        %v3022 = vpop.permute.xlu0 %3021
        %v3023 = vsel %vm2673, %v3020, %v3022
        %3027 = vrot.lane.b32.xlu0 %v2588, 36
        %v3028 = vpop.permute.xlu0 %3027
        %3029 = vrot.lane.b32.xlu0 %v2596, 36
        %v3030 = vpop.permute.xlu0 %3029
        %v3031 = vsel %vm2631, %v3028, %v3030
        %vm3033 = vcmask 1040384
        %v3034 = vsel %vm3033, %v2025, %v2926
        %vm3035 = vcmask 1041408
        %v3036 = vsel %vm3035, %v3034, %v2935
        %vm3037 = vcmask 1042432
        %v3038 = vsel %vm3037, %v3036, %v2944
        %v3039 = vsel %vm891, %v3038, %v2948
        %vm3040 = vcmask 1044480
        %v3041 = vsel %vm3040, %v3039, %v2957
        %vm3042 = vcmask 1045504
        %v3043 = vsel %vm3042, %v3041, %v2966
        %vm3044 = vcmask 1046528
        %v3045 = vsel %vm3044, %v3043, %v2975
        %v3046 = vsel %vm3033, %v2983, %v2987
        %v3047 = vsel %vm3035, %v3046, %v2995
        %v3048 = vsel %vm3037, %v3047, %v3003
        %v3049 = vsel %vm891, %v3048, %v3011
        %v3050 = vsel %vm3040, %v3049, %v3015
        %v3051 = vsel %vm3042, %v3050, %v3023
        %v3052 = vsel %vm3044, %v3051, %v3031
        %3055 = vrot.lane.b32.xlu0 %v2672, 28
        %v3056 = vpop.permute.xlu0 %3055
        %3057 = vrot.lane.b32.xlu0 %v2680, 28
        %v3058 = vpop.permute.xlu0 %3057
        %v3059 = vsel %vm2925, %v3056, %v3058
        %3063 = vrot.lane.b32.xlu0 %v2713, 56
        %v3064 = vpop.permute.xlu0 %3063
        %3068 = vrot.lane.b32.xlu0 %v2739, 84
        %v3069 = vpop.permute.xlu0 %3068
        %3070 = vrot.lane.b32.xlu0 %v2747, 84
        %v3071 = vpop.permute.xlu0 %3070
        %v3072 = vsel %vm2943, %v3069, %v3071
        %3077 = vrot.lane.b32.xlu0 %v2781, 112
        %v3078 = vpop.permute.xlu0 %3077
        %3079 = vrot.lane.b32.xlu0 %v2789, 112
        %v3080 = vpop.permute.xlu0 %3079
        %vm3081 = vcmask 916480
        %v3082 = vsel %vm3081, %v3078, %v3080
        %3087 = vrot.lane.b32.xlu0 %v2823, 12
        %v3088 = vpop.permute.xlu0 %3087
        %3089 = vrot.lane.b32.xlu0 %v2831, 12
        %v3090 = vpop.permute.xlu0 %3089
        %v3091 = vsel %vm2956, %v3088, %v3090
        %3095 = vrot.lane.b32.xlu0 %v2864, 40
        %v3096 = vpop.permute.xlu0 %3095
        %3100 = vrot.lane.b32.xlu0 %v2890, 68
        %v3101 = vpop.permute.xlu0 %3100
        %3102 = vrot.lane.b32.xlu0 %v2898, 68
        %v3103 = vpop.permute.xlu0 %3102
        %v3104 = vsel %vm2974, %v3101, %v3103
        %3108 = vrot.lane.b32.xlu0 %v2037, 64
        %v3109 = vpop.permute.xlu0 %3108
        %3113 = vrot.lane.b32.xlu0 %v2072, 92
        %v3114 = vpop.permute.xlu0 %3113
        %3115 = vrot.lane.b32.xlu0 %v2079, 92
        %v3116 = vpop.permute.xlu0 %3115
        %v3117 = vsel %vm2547, %v3114, %v3116
        %3122 = vrot.lane.b32.xlu0 %v2114, 120
        %v3123 = vpop.permute.xlu0 %3122
        %3124 = vrot.lane.b32.xlu0 %v2121, 120
        %v3125 = vpop.permute.xlu0 %3124
        %vm3126 = vcmask 982016
        %v3127 = vsel %vm3126, %v3123, %v3125
        %3132 = vrot.lane.b32.xlu0 %v2156, 20
        %v3133 = vpop.permute.xlu0 %3132
        %3134 = vrot.lane.b32.xlu0 %v2163, 20
        %v3135 = vpop.permute.xlu0 %3134
        %v3136 = vsel %vm2480, %v3133, %v3135
        %3140 = vrot.lane.b32.xlu0 %v2188, 48
        %v3141 = vpop.permute.xlu0 %3140
        %3145 = vrot.lane.b32.xlu0 %v2223, 76
        %v3146 = vpop.permute.xlu0 %3145
        %3147 = vrot.lane.b32.xlu0 %v2230, 76
        %v3148 = vpop.permute.xlu0 %3147
        %v3149 = vsel %vm2396, %v3146, %v3148
        %3154 = vrot.lane.b32.xlu0 %v2265, 104
        %v3155 = vpop.permute.xlu0 %3154
        %3156 = vrot.lane.b32.xlu0 %v2272, 104
        %v3157 = vpop.permute.xlu0 %3156
        %vm3158 = vcmask 850944
        %v3159 = vsel %vm3158, %v3155, %v3157
        %3164 = vrot.lane.b32.xlu0 %v2307, 4
        %v3165 = vpop.permute.xlu0 %3164
        %3166 = vrot.lane.b32.xlu0 %v2314, 4
        %v3167 = vpop.permute.xlu0 %3166
        %v3168 = vsel %vm2329, %v3165, %v3167
        %v3171 = vsel %vm3033, %v2630, %v3056
        %v3172 = vsel %vm3033, %v2638, %v3059
        %v3173 = vsel %vm3035, %v3171, %v3064
        %v3174 = vsel %vm3035, %v3172, %v3064
        %v3175 = vsel %vm3037, %v3173, %v3072
        %v3176 = vsel %vm3037, %v3174, %v3071
        %v3177 = vsel %vm891, %v3175, %v3082
        %v3178 = vsel %vm891, %v3176, %v3080
        %v3179 = vsel %vm3040, %v3177, %v3088
        %v3180 = vsel %vm3040, %v3178, %v3091
        %v3181 = vsel %vm3042, %v3179, %v3096
        %v3182 = vsel %vm3042, %v3180, %v3096
        %v3183 = vsel %vm3044, %v3181, %v3104
        %v3184 = vsel %vm3044, %v3182, %v3103
        %v3185 = vsel %vm3033, %v3109, %v3117
        %v3186 = vsel %vm3033, %v3109, %v3116
        %v3187 = vsel %vm3035, %v3185, %v3127
        %v3188 = vsel %vm3035, %v3186, %v3125
        %v3189 = vsel %vm3037, %v3187, %v3133
        %v3190 = vsel %vm3037, %v3188, %v3136
        %v3191 = vsel %vm891, %v3189, %v3141
        %v3192 = vsel %vm891, %v3190, %v3141
        %v3193 = vsel %vm3040, %v3191, %v3149
        %v3194 = vsel %vm3040, %v3192, %v3148
        %v3195 = vsel %vm3042, %v3193, %v3159
        %v3196 = vsel %vm3042, %v3194, %v3157
        %v3197 = vsel %vm3044, %v3195, %v3165
        %v3198 = vsel %vm3044, %v3196, %v3168
        %3200 = vrot.lane.b32.xlu0 %v2381, 28
        %v3201 = vpop.permute.xlu0 %3200
        %3205 = vrot.lane.b32.xlu0 %v2416, 56
        %v3206 = vpop.permute.xlu0 %3205
        %3207 = vrot.lane.b32.xlu0 %v2423, 56
        %v3208 = vpop.permute.xlu0 %3207
        %v3209 = vsel %vm2934, %v3206, %v3208
        %3214 = vrot.lane.b32.xlu0 %v2458, 84
        %v3215 = vpop.permute.xlu0 %3214
        %3216 = vrot.lane.b32.xlu0 %v2465, 84
        %v3217 = vpop.permute.xlu0 %3216
        %v3218 = vsel %vm2943, %v3215, %v3217
        %3223 = vrot.lane.b32.xlu0 %v2500, 112
        %v3224 = vpop.permute.xlu0 %3223
        %3225 = vrot.lane.b32.xlu0 %v2507, 112
        %v3226 = vpop.permute.xlu0 %3225
        %v3227 = vsel %vm3081, %v3224, %v3226
        %3231 = vrot.lane.b32.xlu0 %v2532, 12
        %v3232 = vpop.permute.xlu0 %3231
        %3236 = vrot.lane.b32.xlu0 %v2567, 40
        %v3237 = vpop.permute.xlu0 %3236
        %3238 = vrot.lane.b32.xlu0 %v2574, 40
        %v3239 = vpop.permute.xlu0 %3238
        %v3240 = vsel %vm2965, %v3237, %v3239
        %3245 = vrot.lane.b32.xlu0 %v2609, 68
        %v3246 = vpop.permute.xlu0 %3245
        %3247 = vrot.lane.b32.xlu0 %v2616, 68
        %v3248 = vpop.permute.xlu0 %3247
        %v3249 = vsel %vm2974, %v3246, %v3248
        %3254 = vrot.lane.b32.xlu0 %v2651, 96
        %v3255 = vpop.permute.xlu0 %3254
        %3256 = vrot.lane.b32.xlu0 %v2658, 96
        %v3257 = vpop.permute.xlu0 %3256
        %v3258 = vsel %vm2891, %v3255, %v3257
        %3263 = vrot.lane.b32.xlu0 %v2693, 124
        %v3264 = vpop.permute.xlu0 %3263
        %3265 = vrot.lane.b32.xlu0 %v2700, 124
        %v3266 = vpop.permute.xlu0 %3265
        %vm3267 = vcmask 1014784
        %v3268 = vsel %vm3267, %v3264, %v3266
        %3272 = vrot.lane.b32.xlu0 %v2725, 24
        %v3273 = vpop.permute.xlu0 %3272
        %3277 = vrot.lane.b32.xlu0 %v2760, 52
        %v3278 = vpop.permute.xlu0 %3277
        %3279 = vrot.lane.b32.xlu0 %v2767, 52
        %v3280 = vpop.permute.xlu0 %3279
        %v3281 = vsel %vm2782, %v3278, %v3280
        %3286 = vrot.lane.b32.xlu0 %v2802, 80
        %v3287 = vpop.permute.xlu0 %3286
        %3288 = vrot.lane.b32.xlu0 %v2809, 80
        %v3289 = vpop.permute.xlu0 %3288
        %v3290 = vsel %vm2740, %v3287, %v3289
        %3295 = vrot.lane.b32.xlu0 %v2844, 108
        %v3296 = vpop.permute.xlu0 %3295
        %3297 = vrot.lane.b32.xlu0 %v2851, 108
        %v3298 = vpop.permute.xlu0 %3297
        %vm3299 = vcmask 883712
        %v3300 = vsel %vm3299, %v3296, %v3298
        %3304 = vrot.lane.b32.xlu0 %v2876, 8
        %v3305 = vpop.permute.xlu0 %3304
        %3309 = vrot.lane.b32.xlu0 %v2911, 36
        %v3310 = vpop.permute.xlu0 %3309
        %3311 = vrot.lane.b32.xlu0 %v2918, 36
        %v3312 = vpop.permute.xlu0 %3311
        %v3313 = vsel %vm2631, %v3310, %v3312
        %v3316 = vsel %vm3033, %v2349, %v3201
        %v3317 = vsel %vm3033, %v2356, %v3201
        %v3318 = vsel %vm3035, %v3316, %v3209
        %v3319 = vsel %vm3035, %v3317, %v3208
        %v3320 = vsel %vm3037, %v3318, %v3218
        %v3321 = vsel %vm3037, %v3319, %v3217
        %v3322 = vsel %vm891, %v3320, %v3227
        %v3323 = vsel %vm891, %v3321, %v3226
        %v3324 = vsel %vm3040, %v3322, %v3232
        %v3325 = vsel %vm3040, %v3323, %v3232
        %v3326 = vsel %vm3042, %v3324, %v3240
        %v3327 = vsel %vm3042, %v3325, %v3239
        %v3328 = vsel %vm3044, %v3326, %v3249
        %v3329 = vsel %vm3044, %v3327, %v3248
        %v3330 = vsel %vm3033, %v3258, %v3268
        %v3331 = vsel %vm3033, %v3257, %v3266
        %v3332 = vsel %vm3035, %v3330, %v3273
        %v3333 = vsel %vm3035, %v3331, %v3273
        %v3334 = vsel %vm3037, %v3332, %v3281
        %v3335 = vsel %vm3037, %v3333, %v3280
        %v3336 = vsel %vm891, %v3334, %v3290
        %v3337 = vsel %vm891, %v3335, %v3289
        %v3338 = vsel %vm3040, %v3336, %v3300
        %v3339 = vsel %vm3040, %v3337, %v3298
        %v3340 = vsel %vm3042, %v3338, %v3305
        %v3341 = vsel %vm3042, %v3339, %v3305
        %v3342 = vsel %vm3044, %v3340, %v3313
        %v3343 = vsel %vm3044, %v3341, %v3312
        %3348 = vrot.lane.b32.xlu0 %v3183, 64
        %v3349 = vpop.permute.xlu0 %3348
        %3350 = vrot.lane.b32.xlu0 %v3184, 64
        %v3351 = vpop.permute.xlu0 %3350
        %3352 = vrot.lane.b32.xlu0 %v3197, 64
        %v3353 = vpop.permute.xlu0 %3352
        %3354 = vrot.lane.b32.xlu0 %v3198, 64
        %v3355 = vpop.permute.xlu0 %3354
        %v3356 = vsel %vm2589, %v3349, %v3351
        %v3357 = vsel %vm2589, %v3353, %v3355
        %3364 = vrot.lane.b32.xlu0 %v3328, 96
        %v3365 = vpop.permute.xlu0 %3364
        %3366 = vrot.lane.b32.xlu0 %v3329, 96
        %v3367 = vpop.permute.xlu0 %3366
        %3368 = vrot.lane.b32.xlu0 %v3342, 96
        %v3369 = vpop.permute.xlu0 %3368
        %3370 = vrot.lane.b32.xlu0 %v3343, 96
        %v3371 = vpop.permute.xlu0 %3370
        %v3372 = vsel %vm2891, %v3365, %v3367
        %v3373 = vsel %vm2891, %v3369, %v3371
        %v3376 = vld [vmem:[%s5] sm:$0xff]
        %v3377 = vld [vmem:[%s5 + $0x8] sm:$0xff]
        %v3378 = vld [vmem:[%s5 + $0x10] sm:$0xff]
        %v3379 = vld [vmem:[%s5 + $0x18] sm:$0xff]
        %v3380 = vld [vmem:[%s5 + $0x20] sm:$0xff]
        %v3381 = vld [vmem:[%s5 + $0x28] sm:$0xff]
        %3383 = vset.pattern.permute.xlu0 0
        %3384 = vperm.xlu0 %3383, %v3376
        %v3385 = vpop.permute.xlu0 %3384
        %3388 = vset.pattern.permute.xlu0 0
        %3389 = vperm.xlu0 %3388, %v3377
        %v3390 = vpop.permute.xlu0 %3389
        %3393 = vset.pattern.permute.xlu0 0
        %3394 = vperm.xlu0 %3393, %v3378
        %v3395 = vpop.permute.xlu0 %3394
        %3398 = vset.pattern.permute.xlu0 0
        %3399 = vperm.xlu0 %3398, %v3379
        %v3400 = vpop.permute.xlu0 %3399
        %3403 = vset.pattern.permute.xlu0 0
        %3404 = vperm.xlu0 %3403, %v3380
        %v3405 = vpop.permute.xlu0 %3404
        %3408 = vset.pattern.permute.xlu0 0
        %3409 = vperm.xlu0 %3408, %v3381
        %v3410 = vpop.permute.xlu0 %3409
        %v3412 = vmul.f32 %v3045, %v3385
        %v3413 = vmul.f32 %v3052, %v3390
        %v3414 = vmul.f32 %v3356, %v3395
        %v3415 = vmul.f32 %v3357, %v3400
        %v3416 = vmul.f32 %v3372, %v3405
        %v3417 = vmul.f32 %v3373, %v3410
        %v3418 = vld [vmem:[%s6] sm:$0xff]
        %v3419 = vld [vmem:[%s6 + $0x8] sm:$0xff]
        %v3420 = vld [vmem:[%s6 + $0x10] sm:$0xff]
        %v3421 = vld [vmem:[%s6 + $0x18] sm:$0xff]
        %v3422 = vld [vmem:[%s6 + $0x20] sm:$0xff]
        %v3423 = vld [vmem:[%s6 + $0x28] sm:$0xff]
        %3425 = vset.pattern.permute.xlu0 0
        %3426 = vperm.xlu0 %3425, %v3418
        %v3427 = vpop.permute.xlu0 %3426
        %3430 = vset.pattern.permute.xlu0 0
        %3431 = vperm.xlu0 %3430, %v3419
        %v3432 = vpop.permute.xlu0 %3431
        %3435 = vset.pattern.permute.xlu0 0
        %3436 = vperm.xlu0 %3435, %v3420
        %v3437 = vpop.permute.xlu0 %3436
        %3440 = vset.pattern.permute.xlu0 0
        %3441 = vperm.xlu0 %3440, %v3421
        %v3442 = vpop.permute.xlu0 %3441
        %3445 = vset.pattern.permute.xlu0 0
        %3446 = vperm.xlu0 %3445, %v3422
        %v3447 = vpop.permute.xlu0 %3446
        %3450 = vset.pattern.permute.xlu0 0
        %3451 = vperm.xlu0 %3450, %v3423
        %v3452 = vpop.permute.xlu0 %3451
        %v3454 = vadd.f32 %v3412, %v3427
        %v3455 = vadd.f32 %v3413, %v3432
        %v3456 = vadd.f32 %v3414, %v3437
        %v3457 = vadd.f32 %v3415, %v3442
        %v3458 = vadd.f32 %v3416, %v3447
        %v3459 = vadd.f32 %v3417, %v3452
        %vm3460 = vcmp.gt.f32.partialorder %v3454, 0.0
        %vm3461 = vcmp.gt.f32.partialorder %v3455, 0.0
        %vm3462 = vcmp.gt.f32.partialorder %v3456, 0.0
        %vm3463 = vcmp.gt.f32.partialorder %v3457, 0.0
        %vm3464 = vcmp.gt.f32.partialorder %v3458, 0.0
        %vm3465 = vcmp.gt.f32.partialorder %v3459, 0.0
        %v3466 = vmin.f32 %v3454, 0.0
        %v3467 = vmin.f32 %v3455, 0.0
        %v3468 = vmin.f32 %v3456, 0.0
        %v3469 = vmin.f32 %v3457, 0.0
        %v3470 = vmin.f32 %v3458, 0.0
        %v3471 = vmin.f32 %v3459, 0.0
        %v3472 = vmul.f32 %v3466, 1.442695
        %v3473 = vpow.pop %v3472
        %v3474 = vmul.f32 %v3467, 1.442695
        %v3475 = vpow.pop %v3474
        %v3476 = vmul.f32 %v3468, 1.442695
        %v3477 = vpow.pop %v3476
        %v3478 = vmul.f32 %v3469, 1.442695
        %v3479 = vpow.pop %v3478
        %v3480 = vmul.f32 %v3470, 1.442695
        %v3481 = vpow.pop %v3480
        %v3482 = vmul.f32 %v3471, 1.442695
        %v3483 = vpow.pop %v3482
        %v3484 = vsub.f32 %v3473, 1.0
        %v3485 = vsub.f32 %v3475, 1.0
        %v3486 = vsub.f32 %v3477, 1.0
        %v3487 = vsub.f32 %v3479, 1.0
        %v3488 = vsub.f32 %v3481, 1.0
        %v3489 = vsub.f32 %v3483, 1.0
        %v3490 = vsel %vm3460, %v3454, %v3484
        %v3491 = vsel %vm3461, %v3455, %v3485
        %v3492 = vsel %vm3462, %v3456, %v3486
        %v3493 = vsel %vm3463, %v3457, %v3487
        %v3494 = vsel %vm3464, %v3458, %v3488
        %v3495 = vsel %vm3465, %v3459, %v3489
        %v3496 = vld [vmem:[#allocation5] sm:$0xff]
        %v3497 = vld [vmem:[#allocation5 + $0x8] sm:$0xff]
        %v3498 = vld [vmem:[#allocation5 + $0x10] sm:$0xff]
        %v3499 = vld [vmem:[#allocation5 + $0x18] sm:$0xff]
        %v3500 = vld [vmem:[#allocation5 + $0x20] sm:$0xff]
        %v3501 = vld [vmem:[#allocation5 + $0x28] sm:$0xff]
        %v3502 = vld [vmem:[#allocation5 + $0x30] sm:$0xff]
        %v3503 = vld [vmem:[#allocation5 + $0x38] sm:$0xff]
        %v3504 = vld [vmem:[#allocation5 + $0x40] sm:$0xff]
        %v3505 = vld [vmem:[#allocation5 + $0x48] sm:$0xff]
        %v3506 = vld [vmem:[#allocation5 + $0x50] sm:$0xff]
        %v3507 = vld [vmem:[#allocation5 + $0x58] sm:$0xff]
        %v3508 = vld [vmem:[#allocation5 + $0x60] sm:$0xff]
        %v3509 = vld [vmem:[#allocation5 + $0x68] sm:$0xff]
        %v3510 = vld [vmem:[#allocation5 + $0x70] sm:$0xff]
        %v3511 = vld [vmem:[#allocation5 + $0x78] sm:$0xff]
        %v3512 = vld [vmem:[#allocation5 + $0x80] sm:$0xff]
        %v3513 = vld [vmem:[#allocation5 + $0x88] sm:$0xff]
        %v3514 = vld [vmem:[#allocation5 + $0x90] sm:$0xff]
        %v3515 = vld [vmem:[#allocation5 + $0x98] sm:$0xff]
        %v3516 = vld [vmem:[#allocation5 + $0xa0] sm:$0xff]
        %v3517 = vld [vmem:[#allocation5 + $0xa8] sm:$0xff]
        %v3518 = vld [vmem:[#allocation5 + $0xb0] sm:$0xff]
        %v3519 = vld [vmem:[#allocation5 + $0xb8] sm:$0xff]
        %v3520 = vld [vmem:[#allocation5 + $0xc0] sm:$0xff]
        %v3521 = vld [vmem:[#allocation5 + $0xc8] sm:$0xff]
        %v3522 = vld [vmem:[#allocation5 + $0xd0] sm:$0xff]
        %v3523 = vld [vmem:[#allocation5 + $0xd8] sm:$0xff]
        %v3524 = vld [vmem:[#allocation5 + $0xe0] sm:$0xff]
        %v3525 = vld [vmem:[#allocation5 + $0xe8] sm:$0xff]
        %v3526 = vld [vmem:[#allocation5 + $0xf0] sm:$0xff]
        %v3527 = vld [vmem:[#allocation5 + $0xf8] sm:$0xff]
        %v3528 = vld [vmem:[#allocation5 + $0x100] sm:$0xff]
        %v3529 = vld [vmem:[#allocation5 + $0x108] sm:$0xff]
        %v3530 = vld [vmem:[#allocation5 + $0x110] sm:$0xff]
        %v3531 = vld [vmem:[#allocation5 + $0x118] sm:$0xff]
        %v3532 = vld [vmem:[%s8] sm:$0xff]
        %v3533 = vld [vmem:[%s8 + $0x8] sm:$0xff]
        %v3534 = vld [vmem:[%s8 + $0x10] sm:$0xff]
        %v3535 = vld [vmem:[%s9] sm:$0xff]
        %v3536 = vld [vmem:[%s9 + $0x8] sm:$0xff]
        %v3537 = vld [vmem:[%s9 + $0x10] sm:$0xff]
        %3544 = vrot.lane.b32.xlu0 %v3490, 15
        %v3545 = vpop.permute.xlu0 %3544
        %3546 = vrot.lane.b32.xlu0 %v3491, 15
        %v3547 = vpop.permute.xlu0 %3546
        %3548 = vrot.lane.b32.xlu0 %v3492, 15
        %v3549 = vpop.permute.xlu0 %3548
        %3550 = vrot.lane.b32.xlu0 %v3493, 15
        %v3551 = vpop.permute.xlu0 %3550
        %3552 = vrot.lane.b32.xlu0 %v3494, 15
        %v3553 = vpop.permute.xlu0 %3552
        %3554 = vrot.lane.b32.xlu0 %v3495, 15
        %v3555 = vpop.permute.xlu0 %3554
        %vm3562 = vcmask 121856
        %v3563 = vsel %vm3562, 0.0, %v3545
        %v3564 = vsel %vm3562, 0.0, %v3547
        %v3565 = vsel %vm3562, 0.0, %v3549
        %v3566 = vsel %vm3562, 0.0, %v3551
        %v3567 = vsel %vm3562, 0.0, %v3553
        %v3568 = vsel %vm3562, 0.0, %v3555
        %vm3569 = vcmask 941056
        %v3570 = vsel %vm3569, %v3563, 0.0
        %v3571 = vsel %vm3569, %v3564, 0.0
        %v3572 = vsel %vm3569, %v3565, 0.0
        %v3573 = vsel %vm3569, %v3566, 0.0
        %v3574 = vsel %vm3569, %v3567, 0.0
        %v3575 = vsel %vm3569, %v3568, 0.0
        %3582 = vrot.lane.b32.xlu0 %v3570, 127
        %v3583 = vpop.permute.xlu0 %3582
        %3584 = vrot.lane.b32.xlu0 %v3571, 127
        %v3585 = vpop.permute.xlu0 %3584
        %3586 = vrot.lane.b32.xlu0 %v3572, 127
        %v3587 = vpop.permute.xlu0 %3586
        %3588 = vrot.lane.b32.xlu0 %v3573, 127
        %v3589 = vpop.permute.xlu0 %3588
        %3590 = vrot.lane.b32.xlu0 %v3574, 127
        %v3591 = vpop.permute.xlu0 %3590
        %3592 = vrot.lane.b32.xlu0 %v3575, 127
        %v3593 = vpop.permute.xlu0 %3592
        %3600 = vrot.lane.b32.xlu0 %v3570, 126
        %v3601 = vpop.permute.xlu0 %3600
        %3602 = vrot.lane.b32.xlu0 %v3571, 126
        %v3603 = vpop.permute.xlu0 %3602
        %3604 = vrot.lane.b32.xlu0 %v3572, 126
        %v3605 = vpop.permute.xlu0 %3604
        %3606 = vrot.lane.b32.xlu0 %v3573, 126
        %v3607 = vpop.permute.xlu0 %3606
        %3608 = vrot.lane.b32.xlu0 %v3574, 126
        %v3609 = vpop.permute.xlu0 %3608
        %3610 = vrot.lane.b32.xlu0 %v3575, 126
        %v3611 = vpop.permute.xlu0 %3610
        %3618 = vrot.lane.b32.xlu0 %v3570, 125
        %v3619 = vpop.permute.xlu0 %3618
        %3620 = vrot.lane.b32.xlu0 %v3571, 125
        %v3621 = vpop.permute.xlu0 %3620
        %3622 = vrot.lane.b32.xlu0 %v3572, 125
        %v3623 = vpop.permute.xlu0 %3622
        %3624 = vrot.lane.b32.xlu0 %v3573, 125
        %v3625 = vpop.permute.xlu0 %3624
        %3626 = vrot.lane.b32.xlu0 %v3574, 125
        %v3627 = vpop.permute.xlu0 %3626
        %3628 = vrot.lane.b32.xlu0 %v3575, 125
        %v3629 = vpop.permute.xlu0 %3628
        %3636 = vrot.lane.b32.xlu0 %v3570, 124
        %v3637 = vpop.permute.xlu0 %3636
        %3638 = vrot.lane.b32.xlu0 %v3571, 124
        %v3639 = vpop.permute.xlu0 %3638
        %3640 = vrot.lane.b32.xlu0 %v3572, 124
        %v3641 = vpop.permute.xlu0 %3640
        %3642 = vrot.lane.b32.xlu0 %v3573, 124
        %v3643 = vpop.permute.xlu0 %3642
        %3644 = vrot.lane.b32.xlu0 %v3574, 124
        %v3645 = vpop.permute.xlu0 %3644
        %3646 = vrot.lane.b32.xlu0 %v3575, 124
        %v3647 = vpop.permute.xlu0 %3646
        %3654 = vrot.lane.b32.xlu0 %v3570, 123
        %v3655 = vpop.permute.xlu0 %3654
        %3656 = vrot.lane.b32.xlu0 %v3571, 123
        %v3657 = vpop.permute.xlu0 %3656
        %3658 = vrot.lane.b32.xlu0 %v3572, 123
        %v3659 = vpop.permute.xlu0 %3658
        %3660 = vrot.lane.b32.xlu0 %v3573, 123
        %v3661 = vpop.permute.xlu0 %3660
        %3662 = vrot.lane.b32.xlu0 %v3574, 123
        %v3663 = vpop.permute.xlu0 %3662
        %3664 = vrot.lane.b32.xlu0 %v3575, 123
        %v3665 = vpop.permute.xlu0 %3664
        %3672 = vrot.lane.b32.xlu0 %v3570, 122
        %v3673 = vpop.permute.xlu0 %3672
        %3674 = vrot.lane.b32.xlu0 %v3571, 122
        %v3675 = vpop.permute.xlu0 %3674
        %3676 = vrot.lane.b32.xlu0 %v3572, 122
        %v3677 = vpop.permute.xlu0 %3676
        %3678 = vrot.lane.b32.xlu0 %v3573, 122
        %v3679 = vpop.permute.xlu0 %3678
        %3680 = vrot.lane.b32.xlu0 %v3574, 122
        %v3681 = vpop.permute.xlu0 %3680
        %3682 = vrot.lane.b32.xlu0 %v3575, 122
        %v3683 = vpop.permute.xlu0 %3682
        %3690 = vrot.lane.b32.xlu0 %v3570, 121
        %v3691 = vpop.permute.xlu0 %3690
        %3692 = vrot.lane.b32.xlu0 %v3571, 121
        %v3693 = vpop.permute.xlu0 %3692
        %3694 = vrot.lane.b32.xlu0 %v3572, 121
        %v3695 = vpop.permute.xlu0 %3694
        %3696 = vrot.lane.b32.xlu0 %v3573, 121
        %v3697 = vpop.permute.xlu0 %3696
        %3698 = vrot.lane.b32.xlu0 %v3574, 121
        %v3699 = vpop.permute.xlu0 %3698
        %3700 = vrot.lane.b32.xlu0 %v3575, 121
        %v3701 = vpop.permute.xlu0 %3700
        %3708 = vrot.lane.b32.xlu0 %v3570, 120
        %v3709 = vpop.permute.xlu0 %3708
        %3710 = vrot.lane.b32.xlu0 %v3571, 120
        %v3711 = vpop.permute.xlu0 %3710
        %3712 = vrot.lane.b32.xlu0 %v3572, 120
        %v3713 = vpop.permute.xlu0 %3712
        %3714 = vrot.lane.b32.xlu0 %v3573, 120
        %v3715 = vpop.permute.xlu0 %3714
        %3716 = vrot.lane.b32.xlu0 %v3574, 120
        %v3717 = vpop.permute.xlu0 %3716
        %3718 = vrot.lane.b32.xlu0 %v3575, 120
        %v3719 = vpop.permute.xlu0 %3718
        %3726 = vrot.lane.b32.xlu0 %v3570, 119
        %v3727 = vpop.permute.xlu0 %3726
        %3728 = vrot.lane.b32.xlu0 %v3571, 119
        %v3729 = vpop.permute.xlu0 %3728
        %3730 = vrot.lane.b32.xlu0 %v3572, 119
        %v3731 = vpop.permute.xlu0 %3730
        %3732 = vrot.lane.b32.xlu0 %v3573, 119
        %v3733 = vpop.permute.xlu0 %3732
        %3734 = vrot.lane.b32.xlu0 %v3574, 119
        %v3735 = vpop.permute.xlu0 %3734
        %3736 = vrot.lane.b32.xlu0 %v3575, 119
        %v3737 = vpop.permute.xlu0 %3736
        %3744 = vrot.lane.b32.xlu0 %v3570, 118
        %v3745 = vpop.permute.xlu0 %3744
        %3746 = vrot.lane.b32.xlu0 %v3571, 118
        %v3747 = vpop.permute.xlu0 %3746
        %3748 = vrot.lane.b32.xlu0 %v3572, 118
        %v3749 = vpop.permute.xlu0 %3748
        %3750 = vrot.lane.b32.xlu0 %v3573, 118
        %v3751 = vpop.permute.xlu0 %3750
        %3752 = vrot.lane.b32.xlu0 %v3574, 118
        %v3753 = vpop.permute.xlu0 %3752
        %3754 = vrot.lane.b32.xlu0 %v3575, 118
        %v3755 = vpop.permute.xlu0 %3754
        %3762 = vrot.lane.b32.xlu0 %v3570, 117
        %v3763 = vpop.permute.xlu0 %3762
        %3764 = vrot.lane.b32.xlu0 %v3571, 117
        %v3765 = vpop.permute.xlu0 %3764
        %3766 = vrot.lane.b32.xlu0 %v3572, 117
        %v3767 = vpop.permute.xlu0 %3766
        %3768 = vrot.lane.b32.xlu0 %v3573, 117
        %v3769 = vpop.permute.xlu0 %3768
        %3770 = vrot.lane.b32.xlu0 %v3574, 117
        %v3771 = vpop.permute.xlu0 %3770
        %3772 = vrot.lane.b32.xlu0 %v3575, 117
        %v3773 = vpop.permute.xlu0 %3772
        %3780 = vrot.lane.b32.xlu0 %v3570, 116
        %v3781 = vpop.permute.xlu0 %3780
        %3782 = vrot.lane.b32.xlu0 %v3571, 116
        %v3783 = vpop.permute.xlu0 %3782
        %3784 = vrot.lane.b32.xlu0 %v3572, 116
        %v3785 = vpop.permute.xlu0 %3784
        %3786 = vrot.lane.b32.xlu0 %v3573, 116
        %v3787 = vpop.permute.xlu0 %3786
        %3788 = vrot.lane.b32.xlu0 %v3574, 116
        %v3789 = vpop.permute.xlu0 %3788
        %3790 = vrot.lane.b32.xlu0 %v3575, 116
        %v3791 = vpop.permute.xlu0 %3790
        %3798 = vrot.lane.b32.xlu0 %v3570, 115
        %v3799 = vpop.permute.xlu0 %3798
        %3800 = vrot.lane.b32.xlu0 %v3571, 115
        %v3801 = vpop.permute.xlu0 %3800
        %3802 = vrot.lane.b32.xlu0 %v3572, 115
        %v3803 = vpop.permute.xlu0 %3802
        %3804 = vrot.lane.b32.xlu0 %v3573, 115
        %v3805 = vpop.permute.xlu0 %3804
        %3806 = vrot.lane.b32.xlu0 %v3574, 115
        %v3807 = vpop.permute.xlu0 %3806
        %3808 = vrot.lane.b32.xlu0 %v3575, 115
        %v3809 = vpop.permute.xlu0 %3808
        %3816 = vrot.lane.b32.xlu0 %v3570, 114
        %v3817 = vpop.permute.xlu0 %3816
        %3818 = vrot.lane.b32.xlu0 %v3571, 114
        %v3819 = vpop.permute.xlu0 %3818
        %3820 = vrot.lane.b32.xlu0 %v3572, 114
        %v3821 = vpop.permute.xlu0 %3820
        %3822 = vrot.lane.b32.xlu0 %v3573, 114
        %v3823 = vpop.permute.xlu0 %3822
        %3824 = vrot.lane.b32.xlu0 %v3574, 114
        %v3825 = vpop.permute.xlu0 %3824
        %3826 = vrot.lane.b32.xlu0 %v3575, 114
        %v3827 = vpop.permute.xlu0 %3826
        %3834 = vrot.lane.b32.xlu0 %v3570, 113
        %v3835 = vpop.permute.xlu0 %3834
        %3836 = vrot.lane.b32.xlu0 %v3571, 113
        %v3837 = vpop.permute.xlu0 %3836
        %3838 = vrot.lane.b32.xlu0 %v3572, 113
        %v3839 = vpop.permute.xlu0 %3838
        %3840 = vrot.lane.b32.xlu0 %v3573, 113
        %v3841 = vpop.permute.xlu0 %3840
        %3842 = vrot.lane.b32.xlu0 %v3574, 113
        %v3843 = vpop.permute.xlu0 %3842
        %3844 = vrot.lane.b32.xlu0 %v3575, 113
        %v3845 = vpop.permute.xlu0 %3844
        %3853 = vrot.lane.b32.xlu0 0.0, 115
        %v3854 = vpop.permute.xlu0 %3853
        %v3855 = vsel %vm3569, %v3799, %v3854
        %v3856 = vsel %vm3569, %v3801, %v3854
        %v3857 = vsel %vm3569, %v3803, %v3854
        %v3858 = vsel %vm3569, %v3805, %v3854
        %v3859 = vsel %vm3569, %v3807, %v3854
        %v3860 = vsel %vm3569, %v3809, %v3854
        %3861 = vrot.lane.b32.xlu0 0.0, 114
        %v3862 = vpop.permute.xlu0 %3861
        %vm3863 = vcmask 932864
        %v3864 = vsel %vm3863, %v3817, %v3862
        %v3865 = vsel %vm3863, %v3819, %v3862
        %v3866 = vsel %vm3863, %v3821, %v3862
        %v3867 = vsel %vm3863, %v3823, %v3862
        %v3868 = vsel %vm3863, %v3825, %v3862
        %v3869 = vsel %vm3863, %v3827, %v3862
        %3870 = vrot.lane.b32.xlu0 0.0, 113
        %v3871 = vpop.permute.xlu0 %3870
        %vm3872 = vcmask 924672
        %v3873 = vsel %vm3872, %v3835, %v3871
        %v3874 = vsel %vm3872, %v3837, %v3871
        %v3875 = vsel %vm3872, %v3839, %v3871
        %v3876 = vsel %vm3872, %v3841, %v3871
        %v3877 = vsel %vm3872, %v3843, %v3871
        %v3878 = vsel %vm3872, %v3845, %v3871
        %3879 = vrot.lane.b32.xlu0 %v3570, 112
        %v3880 = vpop.permute.xlu0 %3879
        %3881 = vrot.lane.b32.xlu0 %v3571, 112
        %v3882 = vpop.permute.xlu0 %3881
        %3883 = vrot.lane.b32.xlu0 %v3572, 112
        %v3884 = vpop.permute.xlu0 %3883
        %3885 = vrot.lane.b32.xlu0 %v3573, 112
        %v3886 = vpop.permute.xlu0 %3885
        %3887 = vrot.lane.b32.xlu0 %v3574, 112
        %v3888 = vpop.permute.xlu0 %3887
        %3889 = vrot.lane.b32.xlu0 %v3575, 112
        %v3890 = vpop.permute.xlu0 %3889
        %3891 = vrot.lane.b32.xlu0 %v3583, 112
        %v3892 = vpop.permute.xlu0 %3891
        %3893 = vrot.lane.b32.xlu0 %v3585, 112
        %v3894 = vpop.permute.xlu0 %3893
        %3895 = vrot.lane.b32.xlu0 %v3587, 112
        %v3896 = vpop.permute.xlu0 %3895
        %3897 = vrot.lane.b32.xlu0 %v3589, 112
        %v3898 = vpop.permute.xlu0 %3897
        %3899 = vrot.lane.b32.xlu0 %v3591, 112
        %v3900 = vpop.permute.xlu0 %3899
        %3901 = vrot.lane.b32.xlu0 %v3593, 112
        %v3902 = vpop.permute.xlu0 %3901
        %3903 = vrot.lane.b32.xlu0 %v3601, 112
        %v3904 = vpop.permute.xlu0 %3903
        %3905 = vrot.lane.b32.xlu0 %v3603, 112
        %v3906 = vpop.permute.xlu0 %3905
        %3907 = vrot.lane.b32.xlu0 %v3605, 112
        %v3908 = vpop.permute.xlu0 %3907
        %3909 = vrot.lane.b32.xlu0 %v3607, 112
        %v3910 = vpop.permute.xlu0 %3909
        %3911 = vrot.lane.b32.xlu0 %v3609, 112
        %v3912 = vpop.permute.xlu0 %3911
        %3913 = vrot.lane.b32.xlu0 %v3611, 112
        %v3914 = vpop.permute.xlu0 %3913
        %3915 = vrot.lane.b32.xlu0 %v3619, 112
        %v3916 = vpop.permute.xlu0 %3915
        %3917 = vrot.lane.b32.xlu0 %v3621, 112
        %v3918 = vpop.permute.xlu0 %3917
        %3919 = vrot.lane.b32.xlu0 %v3623, 112
        %v3920 = vpop.permute.xlu0 %3919
        %3921 = vrot.lane.b32.xlu0 %v3625, 112
        %v3922 = vpop.permute.xlu0 %3921
        %3923 = vrot.lane.b32.xlu0 %v3627, 112
        %v3924 = vpop.permute.xlu0 %3923
        %3925 = vrot.lane.b32.xlu0 %v3629, 112
        %v3926 = vpop.permute.xlu0 %3925
        %3927 = vrot.lane.b32.xlu0 %v3637, 112
        %v3928 = vpop.permute.xlu0 %3927
        %3929 = vrot.lane.b32.xlu0 %v3639, 112
        %v3930 = vpop.permute.xlu0 %3929
        %3931 = vrot.lane.b32.xlu0 %v3641, 112
        %v3932 = vpop.permute.xlu0 %3931
        %3933 = vrot.lane.b32.xlu0 %v3643, 112
        %v3934 = vpop.permute.xlu0 %3933
        %3935 = vrot.lane.b32.xlu0 %v3645, 112
        %v3936 = vpop.permute.xlu0 %3935
        %3937 = vrot.lane.b32.xlu0 %v3647, 112
        %v3938 = vpop.permute.xlu0 %3937
        %3939 = vrot.lane.b32.xlu0 %v3655, 112
        %v3940 = vpop.permute.xlu0 %3939
        %3941 = vrot.lane.b32.xlu0 %v3657, 112
        %v3942 = vpop.permute.xlu0 %3941
        %3943 = vrot.lane.b32.xlu0 %v3659, 112
        %v3944 = vpop.permute.xlu0 %3943
        %3945 = vrot.lane.b32.xlu0 %v3661, 112
        %v3946 = vpop.permute.xlu0 %3945
        %3947 = vrot.lane.b32.xlu0 %v3663, 112
        %v3948 = vpop.permute.xlu0 %3947
        %3949 = vrot.lane.b32.xlu0 %v3665, 112
        %v3950 = vpop.permute.xlu0 %3949
        %3951 = vrot.lane.b32.xlu0 %v3673, 112
        %v3952 = vpop.permute.xlu0 %3951
        %3953 = vrot.lane.b32.xlu0 %v3675, 112
        %v3954 = vpop.permute.xlu0 %3953
        %3955 = vrot.lane.b32.xlu0 %v3677, 112
        %v3956 = vpop.permute.xlu0 %3955
        %3957 = vrot.lane.b32.xlu0 %v3679, 112
        %v3958 = vpop.permute.xlu0 %3957
        %3959 = vrot.lane.b32.xlu0 %v3681, 112
        %v3960 = vpop.permute.xlu0 %3959
        %3961 = vrot.lane.b32.xlu0 %v3683, 112
        %v3962 = vpop.permute.xlu0 %3961
        %3963 = vrot.lane.b32.xlu0 %v3691, 112
        %v3964 = vpop.permute.xlu0 %3963
        %3965 = vrot.lane.b32.xlu0 %v3693, 112
        %v3966 = vpop.permute.xlu0 %3965
        %3967 = vrot.lane.b32.xlu0 %v3695, 112
        %v3968 = vpop.permute.xlu0 %3967
        %3969 = vrot.lane.b32.xlu0 %v3697, 112
        %v3970 = vpop.permute.xlu0 %3969
        %3971 = vrot.lane.b32.xlu0 %v3699, 112
        %v3972 = vpop.permute.xlu0 %3971
        %3973 = vrot.lane.b32.xlu0 %v3701, 112
        %v3974 = vpop.permute.xlu0 %3973
        %3975 = vrot.lane.b32.xlu0 %v3709, 112
        %v3976 = vpop.permute.xlu0 %3975
        %3977 = vrot.lane.b32.xlu0 %v3711, 112
        %v3978 = vpop.permute.xlu0 %3977
        %3979 = vrot.lane.b32.xlu0 %v3713, 112
        %v3980 = vpop.permute.xlu0 %3979
        %3981 = vrot.lane.b32.xlu0 %v3715, 112
        %v3982 = vpop.permute.xlu0 %3981
        %3983 = vrot.lane.b32.xlu0 %v3717, 112
        %v3984 = vpop.permute.xlu0 %3983
        %3985 = vrot.lane.b32.xlu0 %v3719, 112
        %v3986 = vpop.permute.xlu0 %3985
        %3987 = vrot.lane.b32.xlu0 %v3727, 112
        %v3988 = vpop.permute.xlu0 %3987
        %3989 = vrot.lane.b32.xlu0 %v3729, 112
        %v3990 = vpop.permute.xlu0 %3989
        %3991 = vrot.lane.b32.xlu0 %v3731, 112
        %v3992 = vpop.permute.xlu0 %3991
        %3993 = vrot.lane.b32.xlu0 %v3733, 112
        %v3994 = vpop.permute.xlu0 %3993
        %3995 = vrot.lane.b32.xlu0 %v3735, 112
        %v3996 = vpop.permute.xlu0 %3995
        %3997 = vrot.lane.b32.xlu0 %v3737, 112
        %v3998 = vpop.permute.xlu0 %3997
        %3999 = vrot.lane.b32.xlu0 %v3745, 112
        %v4000 = vpop.permute.xlu0 %3999
        %4001 = vrot.lane.b32.xlu0 %v3747, 112
        %v4002 = vpop.permute.xlu0 %4001
        %4003 = vrot.lane.b32.xlu0 %v3749, 112
        %v4004 = vpop.permute.xlu0 %4003
        %4005 = vrot.lane.b32.xlu0 %v3751, 112
        %v4006 = vpop.permute.xlu0 %4005
        %4007 = vrot.lane.b32.xlu0 %v3753, 112
        %v4008 = vpop.permute.xlu0 %4007
        %4009 = vrot.lane.b32.xlu0 %v3755, 112
        %v4010 = vpop.permute.xlu0 %4009
        %4011 = vrot.lane.b32.xlu0 %v3763, 112
        %v4012 = vpop.permute.xlu0 %4011
        %4013 = vrot.lane.b32.xlu0 %v3765, 112
        %v4014 = vpop.permute.xlu0 %4013
        %4015 = vrot.lane.b32.xlu0 %v3767, 112
        %v4016 = vpop.permute.xlu0 %4015
        %4017 = vrot.lane.b32.xlu0 %v3769, 112
        %v4018 = vpop.permute.xlu0 %4017
        %4019 = vrot.lane.b32.xlu0 %v3771, 112
        %v4020 = vpop.permute.xlu0 %4019
        %4021 = vrot.lane.b32.xlu0 %v3773, 112
        %v4022 = vpop.permute.xlu0 %4021
        %4023 = vrot.lane.b32.xlu0 %v3781, 112
        %v4024 = vpop.permute.xlu0 %4023
        %4025 = vrot.lane.b32.xlu0 %v3783, 112
        %v4026 = vpop.permute.xlu0 %4025
        %4027 = vrot.lane.b32.xlu0 %v3785, 112
        %v4028 = vpop.permute.xlu0 %4027
        %4029 = vrot.lane.b32.xlu0 %v3787, 112
        %v4030 = vpop.permute.xlu0 %4029
        %4031 = vrot.lane.b32.xlu0 %v3789, 112
        %v4032 = vpop.permute.xlu0 %4031
        %4033 = vrot.lane.b32.xlu0 %v3791, 112
        %v4034 = vpop.permute.xlu0 %4033
        %4035 = vrot.lane.b32.xlu0 %v3855, 112
        %v4036 = vpop.permute.xlu0 %4035
        %4037 = vrot.lane.b32.xlu0 %v3856, 112
        %v4038 = vpop.permute.xlu0 %4037
        %4039 = vrot.lane.b32.xlu0 %v3857, 112
        %v4040 = vpop.permute.xlu0 %4039
        %4041 = vrot.lane.b32.xlu0 %v3858, 112
        %v4042 = vpop.permute.xlu0 %4041
        %4043 = vrot.lane.b32.xlu0 %v3859, 112
        %v4044 = vpop.permute.xlu0 %4043
        %4045 = vrot.lane.b32.xlu0 %v3860, 112
        %v4046 = vpop.permute.xlu0 %4045
        %4047 = vrot.lane.b32.xlu0 %v3864, 112
        %v4048 = vpop.permute.xlu0 %4047
        %4049 = vrot.lane.b32.xlu0 %v3865, 112
        %v4050 = vpop.permute.xlu0 %4049
        %4051 = vrot.lane.b32.xlu0 %v3866, 112
        %v4052 = vpop.permute.xlu0 %4051
        %4053 = vrot.lane.b32.xlu0 %v3867, 112
        %v4054 = vpop.permute.xlu0 %4053
        %4055 = vrot.lane.b32.xlu0 %v3868, 112
        %v4056 = vpop.permute.xlu0 %4055
        %4057 = vrot.lane.b32.xlu0 %v3869, 112
        %v4058 = vpop.permute.xlu0 %4057
        %4059 = vrot.lane.b32.xlu0 %v3873, 112
        %v4060 = vpop.permute.xlu0 %4059
        %4061 = vrot.lane.b32.xlu0 %v3874, 112
        %v4062 = vpop.permute.xlu0 %4061
        %4063 = vrot.lane.b32.xlu0 %v3875, 112
        %v4064 = vpop.permute.xlu0 %4063
        %4065 = vrot.lane.b32.xlu0 %v3876, 112
        %v4066 = vpop.permute.xlu0 %4065
        %4067 = vrot.lane.b32.xlu0 %v3877, 112
        %v4068 = vpop.permute.xlu0 %4067
        %4069 = vrot.lane.b32.xlu0 %v3878, 112
        %v4070 = vpop.permute.xlu0 %4069
        %4167 = vmatprep.subr.mxu0 0.0
        %4168 = vmatpush1.msra.mxu0 %v3607
        %4169 = vmatprep.subr.mxu0 0.0
        %4170 = vmatpush1.msra.mxu0 %v3605
        %4171 = vmatprep.subr.mxu0 0.0
        %4172 = vmatpush1.msra.mxu0 %v3603
        %4173 = vmatprep.subr.mxu0 0.0
        %4174 = vmatpush1.msra.mxu0 %v3601
        %4175 = vmatprep.subr.mxu0 0.0
        %4176 = vmatpush1.msra.mxu0 %v3593
        %4177 = vmatprep.subr.mxu0 0.0
        %4178 = vmatpush1.msra.mxu0 %v3591
        %4179 = vmatprep.subr.mxu0 0.0
        %4180 = vmatpush1.msra.mxu0 %v3589
        %4181 = vmatprep.subr.mxu0 0.0
        %4182 = vmatpush1.msra.mxu0 %v3587
        %4183 = vmatprep.subr.mxu0 0.0
        %4184 = vmatpush1.msra.mxu0 %v3585
        %4185 = vmatprep.subr.mxu0 0.0
        %4186 = vmatpush1.msra.mxu0 %v3583
        %4187 = vmatprep.subr.mxu0 0.0
        %4188 = vmatpush1.msra.mxu0 %v3575
        %4189 = vmatprep.subr.mxu0 0.0
        %4190 = vmatpush1.msra.mxu0 %v3574
        %4191 = vmatprep.subr.mxu0 0.0
        %4192 = vmatpush1.msra.mxu0 %v3573
        %4193 = vmatprep.subr.mxu0 0.0
        %4194 = vmatpush1.msra.mxu0 %v3572
        %4195 = vmatprep.subr.mxu0 0.0
        %4196 = vmatpush1.msra.mxu0 %v3571
        %4197 = vmatprep.subr.mxu0 0.0
        %4198 = vmatpush1.msra.mxu0 %v3570
        %4199 = vmatprep.subr.mxu0 0.0
        %4200 = vmatpush2.msra.mxu0 %v3657
        %4201 = vmatprep.subr.mxu0 0.0
        %4202 = vmatpush2.msra.mxu0 %v3655
        %4203 = vmatprep.subr.mxu0 0.0
        %4204 = vmatpush2.msra.mxu0 %v3647
        %4205 = vmatprep.subr.mxu0 0.0
        %4206 = vmatpush2.msra.mxu0 %v3645
        %4207 = vmatprep.subr.mxu0 0.0
        %4208 = vmatpush2.msra.mxu0 %v3643
        %4209 = vmatprep.subr.mxu0 0.0
        %4210 = vmatpush2.msra.mxu0 %v3641
        %4211 = vmatprep.subr.mxu0 0.0
        %4212 = vmatpush2.msra.mxu0 %v3639
        %4213 = vmatprep.subr.mxu0 0.0
        %4214 = vmatpush2.msra.mxu0 %v3637
        %4215 = vmatprep.subr.mxu0 0.0
        %4216 = vmatpush2.msra.mxu0 %v3629
        %4217 = vmatprep.subr.mxu0 0.0
        %4218 = vmatpush2.msra.mxu0 %v3627
        %4219 = vmatprep.subr.mxu0 0.0
        %4220 = vmatpush2.msra.mxu0 %v3625
        %4221 = vmatprep.subr.mxu0 0.0
        %4222 = vmatpush2.msra.mxu0 %v3623
        %4223 = vmatprep.subr.mxu0 0.0
        %4224 = vmatpush2.msra.mxu0 %v3621
        %4225 = vmatprep.subr.mxu0 0.0
        %4226 = vmatpush2.msra.mxu0 %v3619
        %4227 = vmatprep.subr.mxu0 0.0
        %4228 = vmatpush2.msra.mxu0 %v3611
        %4229 = vmatprep.subr.mxu0 0.0
        %4230 = vmatpush2.msra.mxu0 %v3609
        %4231 = vmatprep.mubr.f32.mxu0 %v3497
        %4232 = vmatmul.mubr.f32.gmra.mxu0 %v3496
        %v4233 = vpop.f32.mrf.mxu0
        %v4234 = vadd.f32 0.0, %v4233
        %v4235 = vpop.f32.mrf.mxu0
        %4236 = vmatprep.mubr.f32.mxu0 %v3509
        %4237 = vmatmul.mubr.f32.gmra.mxu0 %v3508
        %v4238 = vpop.f32.mrf.mxu0
        %v4239 = vadd.f32 0.0, %v4238
        %v4240 = vpop.f32.mrf.mxu0
        %4241 = vmatprep.mubr.f32.mxu0 %v3521
        %4242 = vmatmul.mubr.f32.gmra.mxu0 %v3520
        %v4243 = vpop.f32.mrf.mxu0
        %v4244 = vadd.f32 0.0, %v4243
        %v4245 = vpop.f32.mrf.mxu0
        %4246 = vdwg.mxu0
        %4247 = vmatprep.subr.mxu0 0.0
        %4248 = vmatpush1.msra.mxu0 %v3701
        %4249 = vmatprep.subr.mxu0 0.0
        %4250 = vmatpush1.msra.mxu0 %v3699
        %4251 = vmatprep.subr.mxu0 0.0
        %4252 = vmatpush1.msra.mxu0 %v3697
        %4253 = vmatprep.subr.mxu0 0.0
        %4254 = vmatpush1.msra.mxu0 %v3695
        %4255 = vmatprep.subr.mxu0 0.0
        %4256 = vmatpush1.msra.mxu0 %v3693
        %4257 = vmatprep.subr.mxu0 0.0
        %4258 = vmatpush1.msra.mxu0 %v3691
        %4259 = vmatprep.subr.mxu0 0.0
        %4260 = vmatpush1.msra.mxu0 %v3683
        %4261 = vmatprep.subr.mxu0 0.0
        %4262 = vmatpush1.msra.mxu0 %v3681
        %4263 = vmatprep.subr.mxu0 0.0
        %4264 = vmatpush1.msra.mxu0 %v3679
        %4265 = vmatprep.subr.mxu0 0.0
        %4266 = vmatpush1.msra.mxu0 %v3677
        %4267 = vmatprep.subr.mxu0 0.0
        %4268 = vmatpush1.msra.mxu0 %v3675
        %4269 = vmatprep.subr.mxu0 0.0
        %4270 = vmatpush1.msra.mxu0 %v3673
        %4271 = vmatprep.subr.mxu0 0.0
        %4272 = vmatpush1.msra.mxu0 %v3665
        %4273 = vmatprep.subr.mxu0 0.0
        %4274 = vmatpush1.msra.mxu0 %v3663
        %4275 = vmatprep.subr.mxu0 0.0
        %4276 = vmatpush1.msra.mxu0 %v3661
        %4277 = vmatprep.subr.mxu0 0.0
        %4278 = vmatpush1.msra.mxu0 %v3659
        %4279 = vmatprep.subr.mxu0 0.0
        %4280 = vmatpush2.msra.mxu0 %v3751
        %4281 = vmatprep.subr.mxu0 0.0
        %4282 = vmatpush2.msra.mxu0 %v3749
        %4283 = vmatprep.subr.mxu0 0.0
        %4284 = vmatpush2.msra.mxu0 %v3747
        %4285 = vmatprep.subr.mxu0 0.0
        %4286 = vmatpush2.msra.mxu0 %v3745
        %4287 = vmatprep.subr.mxu0 0.0
        %4288 = vmatpush2.msra.mxu0 %v3737
        %4289 = vmatprep.subr.mxu0 0.0
        %4290 = vmatpush2.msra.mxu0 %v3735
        %4291 = vmatprep.subr.mxu0 0.0
        %4292 = vmatpush2.msra.mxu0 %v3733
        %4293 = vmatprep.subr.mxu0 0.0
        %4294 = vmatpush2.msra.mxu0 %v3731
        %4295 = vmatprep.subr.mxu0 0.0
        %4296 = vmatpush2.msra.mxu0 %v3729
        %4297 = vmatprep.subr.mxu0 0.0
        %4298 = vmatpush2.msra.mxu0 %v3727
        %4299 = vmatprep.subr.mxu0 0.0
        %4300 = vmatpush2.msra.mxu0 %v3719
        %4301 = vmatprep.subr.mxu0 0.0
        %4302 = vmatpush2.msra.mxu0 %v3717
        %4303 = vmatprep.subr.mxu0 0.0
        %4304 = vmatpush2.msra.mxu0 %v3715
        %4305 = vmatprep.subr.mxu0 0.0
        %4306 = vmatpush2.msra.mxu0 %v3713
        %4307 = vmatprep.subr.mxu0 0.0
        %4308 = vmatpush2.msra.mxu0 %v3711
        %4309 = vmatprep.subr.mxu0 0.0
        %4310 = vmatpush2.msra.mxu0 %v3709
        %4311 = vmatprep.mubr.f32.mxu0 %v3499
        %4312 = vmatmul.mubr.f32.gmra.mxu0 %v3498
        %v4313 = vpop.f32.mrf.mxu0
        %v4314 = vadd.f32 %v4234, %v4313
        %v4315 = vpop.f32.mrf.mxu0
        %4316 = vmatprep.mubr.f32.mxu0 %v3511
        %4317 = vmatmul.mubr.f32.gmra.mxu0 %v3510
        %v4318 = vpop.f32.mrf.mxu0
        %v4319 = vadd.f32 %v4239, %v4318
        %v4320 = vpop.f32.mrf.mxu0
        %4321 = vmatprep.mubr.f32.mxu0 %v3523
        %4322 = vmatmul.mubr.f32.gmra.mxu0 %v3522
        %v4323 = vpop.f32.mrf.mxu0
        %v4324 = vadd.f32 %v4244, %v4323
        %v4325 = vpop.f32.mrf.mxu0
        %4326 = vdwg.mxu0
        %4327 = vmatprep.subr.mxu0 0.0
        %4328 = vmatpush1.msra.mxu0 %v3801
        %4329 = vmatprep.subr.mxu0 0.0
        %4330 = vmatpush1.msra.mxu0 %v3799
        %4331 = vmatprep.subr.mxu0 0.0
        %4332 = vmatpush1.msra.mxu0 %v3791
        %4333 = vmatprep.subr.mxu0 0.0
        %4334 = vmatpush1.msra.mxu0 %v3789
        %4335 = vmatprep.subr.mxu0 0.0
        %4336 = vmatpush1.msra.mxu0 %v3787
        %4337 = vmatprep.subr.mxu0 0.0
        %4338 = vmatpush1.msra.mxu0 %v3785
        %4339 = vmatprep.subr.mxu0 0.0
        %4340 = vmatpush1.msra.mxu0 %v3783
        %4341 = vmatprep.subr.mxu0 0.0
        %4342 = vmatpush1.msra.mxu0 %v3781
        %4343 = vmatprep.subr.mxu0 0.0
        %4344 = vmatpush1.msra.mxu0 %v3773
        %4345 = vmatprep.subr.mxu0 0.0
        %4346 = vmatpush1.msra.mxu0 %v3771
        %4347 = vmatprep.subr.mxu0 0.0
        %4348 = vmatpush1.msra.mxu0 %v3769
        %4349 = vmatprep.subr.mxu0 0.0
        %4350 = vmatpush1.msra.mxu0 %v3767
        %4351 = vmatprep.subr.mxu0 0.0
        %4352 = vmatpush1.msra.mxu0 %v3765
        %4353 = vmatprep.subr.mxu0 0.0
        %4354 = vmatpush1.msra.mxu0 %v3763
        %4355 = vmatprep.subr.mxu0 0.0
        %4356 = vmatpush1.msra.mxu0 %v3755
        %4357 = vmatprep.subr.mxu0 0.0
        %4358 = vmatpush1.msra.mxu0 %v3753
        %4359 = vmatprep.subr.mxu0 0.0
        %4360 = vmatpush2.msra.mxu0 %v3845
        %4361 = vmatprep.subr.mxu0 0.0
        %4362 = vmatpush2.msra.mxu0 %v3843
        %4363 = vmatprep.subr.mxu0 0.0
        %4364 = vmatpush2.msra.mxu0 %v3841
        %4365 = vmatprep.subr.mxu0 0.0
        %4366 = vmatpush2.msra.mxu0 %v3839
        %4367 = vmatprep.subr.mxu0 0.0
        %4368 = vmatpush2.msra.mxu0 %v3837
        %4369 = vmatprep.subr.mxu0 0.0
        %4370 = vmatpush2.msra.mxu0 %v3835
        %4371 = vmatprep.subr.mxu0 0.0
        %4372 = vmatpush2.msra.mxu0 %v3827
        %4373 = vmatprep.subr.mxu0 0.0
        %4374 = vmatpush2.msra.mxu0 %v3825
        %4375 = vmatprep.subr.mxu0 0.0
        %4376 = vmatpush2.msra.mxu0 %v3823
        %4377 = vmatprep.subr.mxu0 0.0
        %4378 = vmatpush2.msra.mxu0 %v3821
        %4379 = vmatprep.subr.mxu0 0.0
        %4380 = vmatpush2.msra.mxu0 %v3819
        %4381 = vmatprep.subr.mxu0 0.0
        %4382 = vmatpush2.msra.mxu0 %v3817
        %4383 = vmatprep.subr.mxu0 0.0
        %4384 = vmatpush2.msra.mxu0 %v3809
        %4385 = vmatprep.subr.mxu0 0.0
        %4386 = vmatpush2.msra.mxu0 %v3807
        %4387 = vmatprep.subr.mxu0 0.0
        %4388 = vmatpush2.msra.mxu0 %v3805
        %4389 = vmatprep.subr.mxu0 0.0
        %4390 = vmatpush2.msra.mxu0 %v3803
        %4391 = vmatprep.mubr.f32.mxu0 %v3501
        %4392 = vmatmul.mubr.f32.gmra.mxu0 %v3500
        %v4393 = vpop.f32.mrf.mxu0
        %v4394 = vadd.f32 %v4314, %v4393
        %v4395 = vpop.f32.mrf.mxu0
        %4396 = vmatprep.mubr.f32.mxu0 %v3513
        %4397 = vmatmul.mubr.f32.gmra.mxu0 %v3512
        %v4398 = vpop.f32.mrf.mxu0
        %v4399 = vadd.f32 %v4319, %v4398
        %v4400 = vpop.f32.mrf.mxu0
        %4401 = vmatprep.mubr.f32.mxu0 %v3525
        %4402 = vmatmul.mubr.f32.gmra.mxu0 %v3524
        %v4403 = vpop.f32.mrf.mxu0
        %v4404 = vadd.f32 %v4324, %v4403
        %v4405 = vpop.f32.mrf.mxu0
        %4406 = vdwg.mxu0
        %4407 = vmatprep.subr.mxu0 0.0
        %4408 = vmatpush1.msra.mxu0 %v3910
        %4409 = vmatprep.subr.mxu0 0.0
        %4410 = vmatpush1.msra.mxu0 %v3908
        %4411 = vmatprep.subr.mxu0 0.0
        %4412 = vmatpush1.msra.mxu0 %v3906
        %4413 = vmatprep.subr.mxu0 0.0
        %4414 = vmatpush1.msra.mxu0 %v3904
        %4415 = vmatprep.subr.mxu0 0.0
        %4416 = vmatpush1.msra.mxu0 %v3902
        %4417 = vmatprep.subr.mxu0 0.0
        %4418 = vmatpush1.msra.mxu0 %v3900
        %4419 = vmatprep.subr.mxu0 0.0
        %4420 = vmatpush1.msra.mxu0 %v3898
        %4421 = vmatprep.subr.mxu0 0.0
        %4422 = vmatpush1.msra.mxu0 %v3896
        %4423 = vmatprep.subr.mxu0 0.0
        %4424 = vmatpush1.msra.mxu0 %v3894
        %4425 = vmatprep.subr.mxu0 0.0
        %4426 = vmatpush1.msra.mxu0 %v3892
        %4427 = vmatprep.subr.mxu0 0.0
        %4428 = vmatpush1.msra.mxu0 %v3890
        %4429 = vmatprep.subr.mxu0 0.0
        %4430 = vmatpush1.msra.mxu0 %v3888
        %4431 = vmatprep.subr.mxu0 0.0
        %4432 = vmatpush1.msra.mxu0 %v3886
        %4433 = vmatprep.subr.mxu0 0.0
        %4434 = vmatpush1.msra.mxu0 %v3884
        %4435 = vmatprep.subr.mxu0 0.0
        %4436 = vmatpush1.msra.mxu0 %v3882
        %4437 = vmatprep.subr.mxu0 0.0
        %4438 = vmatpush1.msra.mxu0 %v3880
        %4439 = vmatprep.subr.mxu0 0.0
        %4440 = vmatpush2.msra.mxu0 %v3942
        %4441 = vmatprep.subr.mxu0 0.0
        %4442 = vmatpush2.msra.mxu0 %v3940
        %4443 = vmatprep.subr.mxu0 0.0
        %4444 = vmatpush2.msra.mxu0 %v3938
        %4445 = vmatprep.subr.mxu0 0.0
        %4446 = vmatpush2.msra.mxu0 %v3936
        %4447 = vmatprep.subr.mxu0 0.0
        %4448 = vmatpush2.msra.mxu0 %v3934
        %4449 = vmatprep.subr.mxu0 0.0
        %4450 = vmatpush2.msra.mxu0 %v3932
        %4451 = vmatprep.subr.mxu0 0.0
        %4452 = vmatpush2.msra.mxu0 %v3930
        %4453 = vmatprep.subr.mxu0 0.0
        %4454 = vmatpush2.msra.mxu0 %v3928
        %4455 = vmatprep.subr.mxu0 0.0
        %4456 = vmatpush2.msra.mxu0 %v3926
        %4457 = vmatprep.subr.mxu0 0.0
        %4458 = vmatpush2.msra.mxu0 %v3924
        %4459 = vmatprep.subr.mxu0 0.0
        %4460 = vmatpush2.msra.mxu0 %v3922
        %4461 = vmatprep.subr.mxu0 0.0
        %4462 = vmatpush2.msra.mxu0 %v3920
        %4463 = vmatprep.subr.mxu0 0.0
        %4464 = vmatpush2.msra.mxu0 %v3918
        %4465 = vmatprep.subr.mxu0 0.0
        %4466 = vmatpush2.msra.mxu0 %v3916
        %4467 = vmatprep.subr.mxu0 0.0
        %4468 = vmatpush2.msra.mxu0 %v3914
        %4469 = vmatprep.subr.mxu0 0.0
        %4470 = vmatpush2.msra.mxu0 %v3912
        %4471 = vmatprep.mubr.f32.mxu0 %v3503
        %4472 = vmatmul.mubr.f32.gmra.mxu0 %v3502
        %v4473 = vpop.f32.mrf.mxu0
        %v4474 = vadd.f32 %v4394, %v4473
        %v4475 = vpop.f32.mrf.mxu0
        %4476 = vmatprep.mubr.f32.mxu0 %v3515
        %4477 = vmatmul.mubr.f32.gmra.mxu0 %v3514
        %v4478 = vpop.f32.mrf.mxu0
        %v4479 = vadd.f32 %v4399, %v4478
        %v4480 = vpop.f32.mrf.mxu0
        %4481 = vmatprep.mubr.f32.mxu0 %v3527
        %4482 = vmatmul.mubr.f32.gmra.mxu0 %v3526
        %v4483 = vpop.f32.mrf.mxu0
        %v4484 = vadd.f32 %v4404, %v4483
        %v4485 = vpop.f32.mrf.mxu0
        %4486 = vdwg.mxu0
        %4487 = vmatprep.subr.mxu0 0.0
        %4488 = vmatpush1.msra.mxu0 %v3974
        %4489 = vmatprep.subr.mxu0 0.0
        %4490 = vmatpush1.msra.mxu0 %v3972
        %4491 = vmatprep.subr.mxu0 0.0
        %4492 = vmatpush1.msra.mxu0 %v3970
        %4493 = vmatprep.subr.mxu0 0.0
        %4494 = vmatpush1.msra.mxu0 %v3968
        %4495 = vmatprep.subr.mxu0 0.0
        %4496 = vmatpush1.msra.mxu0 %v3966
        %4497 = vmatprep.subr.mxu0 0.0
        %4498 = vmatpush1.msra.mxu0 %v3964
        %4499 = vmatprep.subr.mxu0 0.0
        %4500 = vmatpush1.msra.mxu0 %v3962
        %4501 = vmatprep.subr.mxu0 0.0
        %4502 = vmatpush1.msra.mxu0 %v3960
        %4503 = vmatprep.subr.mxu0 0.0
        %4504 = vmatpush1.msra.mxu0 %v3958
        %4505 = vmatprep.subr.mxu0 0.0
        %4506 = vmatpush1.msra.mxu0 %v3956
        %4507 = vmatprep.subr.mxu0 0.0
        %4508 = vmatpush1.msra.mxu0 %v3954
        %4509 = vmatprep.subr.mxu0 0.0
        %4510 = vmatpush1.msra.mxu0 %v3952
        %4511 = vmatprep.subr.mxu0 0.0
        %4512 = vmatpush1.msra.mxu0 %v3950
        %4513 = vmatprep.subr.mxu0 0.0
        %4514 = vmatpush1.msra.mxu0 %v3948
        %4515 = vmatprep.subr.mxu0 0.0
        %4516 = vmatpush1.msra.mxu0 %v3946
        %4517 = vmatprep.subr.mxu0 0.0
        %4518 = vmatpush1.msra.mxu0 %v3944
        %4519 = vmatprep.subr.mxu0 0.0
        %4520 = vmatpush2.msra.mxu0 %v4006
        %4521 = vmatprep.subr.mxu0 0.0
        %4522 = vmatpush2.msra.mxu0 %v4004
        %4523 = vmatprep.subr.mxu0 0.0
        %4524 = vmatpush2.msra.mxu0 %v4002
        %4525 = vmatprep.subr.mxu0 0.0
        %4526 = vmatpush2.msra.mxu0 %v4000
        %4527 = vmatprep.subr.mxu0 0.0
        %4528 = vmatpush2.msra.mxu0 %v3998
        %4529 = vmatprep.subr.mxu0 0.0
        %4530 = vmatpush2.msra.mxu0 %v3996
        %4531 = vmatprep.subr.mxu0 0.0
        %4532 = vmatpush2.msra.mxu0 %v3994
        %4533 = vmatprep.subr.mxu0 0.0
        %4534 = vmatpush2.msra.mxu0 %v3992
        %4535 = vmatprep.subr.mxu0 0.0
        %4536 = vmatpush2.msra.mxu0 %v3990
        %4537 = vmatprep.subr.mxu0 0.0
        %4538 = vmatpush2.msra.mxu0 %v3988
        %4539 = vmatprep.subr.mxu0 0.0
        %4540 = vmatpush2.msra.mxu0 %v3986
        %4541 = vmatprep.subr.mxu0 0.0
        %4542 = vmatpush2.msra.mxu0 %v3984
        %4543 = vmatprep.subr.mxu0 0.0
        %4544 = vmatpush2.msra.mxu0 %v3982
        %4545 = vmatprep.subr.mxu0 0.0
        %4546 = vmatpush2.msra.mxu0 %v3980
        %4547 = vmatprep.subr.mxu0 0.0
        %4548 = vmatpush2.msra.mxu0 %v3978
        %4549 = vmatprep.subr.mxu0 0.0
        %4550 = vmatpush2.msra.mxu0 %v3976
        %4551 = vmatprep.mubr.f32.mxu0 %v3505
        %4552 = vmatmul.mubr.f32.gmra.mxu0 %v3504
        %v4553 = vpop.f32.mrf.mxu0
        %v4554 = vadd.f32 %v4474, %v4553
        %v4555 = vpop.f32.mrf.mxu0
        %4556 = vmatprep.mubr.f32.mxu0 %v3517
        %4557 = vmatmul.mubr.f32.gmra.mxu0 %v3516
        %v4558 = vpop.f32.mrf.mxu0
        %v4559 = vadd.f32 %v4479, %v4558
        %v4560 = vpop.f32.mrf.mxu0
        %4561 = vmatprep.mubr.f32.mxu0 %v3529
        %4562 = vmatmul.mubr.f32.gmra.mxu0 %v3528
        %v4563 = vpop.f32.mrf.mxu0
        %v4564 = vadd.f32 %v4484, %v4563
        %v4565 = vpop.f32.mrf.mxu0
        %4566 = vdwg.mxu0
        %4567 = vmatprep.subr.mxu0 0.0
        %4568 = vmatpush1.msra.mxu0 %v4038
        %4569 = vmatprep.subr.mxu0 0.0
        %4570 = vmatpush1.msra.mxu0 %v4036
        %4571 = vmatprep.subr.mxu0 0.0
        %4572 = vmatpush1.msra.mxu0 %v4034
        %4573 = vmatprep.subr.mxu0 0.0
        %4574 = vmatpush1.msra.mxu0 %v4032
        %4575 = vmatprep.subr.mxu0 0.0
        %4576 = vmatpush1.msra.mxu0 %v4030
        %4577 = vmatprep.subr.mxu0 0.0
        %4578 = vmatpush1.msra.mxu0 %v4028
        %4579 = vmatprep.subr.mxu0 0.0
        %4580 = vmatpush1.msra.mxu0 %v4026
        %4581 = vmatprep.subr.mxu0 0.0
        %4582 = vmatpush1.msra.mxu0 %v4024
        %4583 = vmatprep.subr.mxu0 0.0
        %4584 = vmatpush1.msra.mxu0 %v4022
        %4585 = vmatprep.subr.mxu0 0.0
        %4586 = vmatpush1.msra.mxu0 %v4020
        %4587 = vmatprep.subr.mxu0 0.0
        %4588 = vmatpush1.msra.mxu0 %v4018
        %4589 = vmatprep.subr.mxu0 0.0
        %4590 = vmatpush1.msra.mxu0 %v4016
        %4591 = vmatprep.subr.mxu0 0.0
        %4592 = vmatpush1.msra.mxu0 %v4014
        %4593 = vmatprep.subr.mxu0 0.0
        %4594 = vmatpush1.msra.mxu0 %v4012
        %4595 = vmatprep.subr.mxu0 0.0
        %4596 = vmatpush1.msra.mxu0 %v4010
        %4597 = vmatprep.subr.mxu0 0.0
        %4598 = vmatpush1.msra.mxu0 %v4008
        %4599 = vmatprep.subr.mxu0 0.0
        %4600 = vmatpush2.msra.mxu0 %v4070
        %4601 = vmatprep.subr.mxu0 0.0
        %4602 = vmatpush2.msra.mxu0 %v4068
        %4603 = vmatprep.subr.mxu0 0.0
        %4604 = vmatpush2.msra.mxu0 %v4066
        %4605 = vmatprep.subr.mxu0 0.0
        %4606 = vmatpush2.msra.mxu0 %v4064
        %4607 = vmatprep.subr.mxu0 0.0
        %4608 = vmatpush2.msra.mxu0 %v4062
        %4609 = vmatprep.subr.mxu0 0.0
        %4610 = vmatpush2.msra.mxu0 %v4060
        %4611 = vmatprep.subr.mxu0 0.0
        %4612 = vmatpush2.msra.mxu0 %v4058
        %4613 = vmatprep.subr.mxu0 0.0
        %4614 = vmatpush2.msra.mxu0 %v4056
        %4615 = vmatprep.subr.mxu0 0.0
        %4616 = vmatpush2.msra.mxu0 %v4054
        %4617 = vmatprep.subr.mxu0 0.0
        %4618 = vmatpush2.msra.mxu0 %v4052
        %4619 = vmatprep.subr.mxu0 0.0
        %4620 = vmatpush2.msra.mxu0 %v4050
        %4621 = vmatprep.subr.mxu0 0.0
        %4622 = vmatpush2.msra.mxu0 %v4048
        %4623 = vmatprep.subr.mxu0 0.0
        %4624 = vmatpush2.msra.mxu0 %v4046
        %4625 = vmatprep.subr.mxu0 0.0
        %4626 = vmatpush2.msra.mxu0 %v4044
        %4627 = vmatprep.subr.mxu0 0.0
        %4628 = vmatpush2.msra.mxu0 %v4042
        %4629 = vmatprep.subr.mxu0 0.0
        %4630 = vmatpush2.msra.mxu0 %v4040
        %4631 = vmatprep.mubr.f32.mxu0 %v3507
        %4632 = vmatmul.mubr.f32.gmra.mxu0 %v3506
        %v4633 = vpop.f32.mrf.mxu0
        %v4634 = vadd.f32 %v4554, %v4633
        %v4635 = vpop.f32.mrf.mxu0
        %4636 = vmatprep.mubr.f32.mxu0 %v3519
        %4637 = vmatmul.mubr.f32.gmra.mxu0 %v3518
        %v4638 = vpop.f32.mrf.mxu0
        %v4639 = vadd.f32 %v4559, %v4638
        %v4640 = vpop.f32.mrf.mxu0
        %4641 = vmatprep.mubr.f32.mxu0 %v3531
        %4642 = vmatmul.mubr.f32.gmra.mxu0 %v3530
        %v4643 = vpop.f32.mrf.mxu0
        %v4644 = vadd.f32 %v4564, %v4643
        %v4645 = vpop.f32.mrf.mxu0
        %4646 = vdwg.mxu0
        %4648 = vset.pattern.permute.xlu0 0
        %4649 = vperm.xlu0 %4648, %v3532
        %v4650 = vpop.permute.xlu0 %4649
        %4653 = vset.pattern.permute.xlu0 0
        %4654 = vperm.xlu0 %4653, %v3533
        %v4655 = vpop.permute.xlu0 %4654
        %4658 = vset.pattern.permute.xlu0 0
        %4659 = vperm.xlu0 %4658, %v3534
        %v4660 = vpop.permute.xlu0 %4659
        %v4662 = vmul.f32 %v4634, %v4650
        %v4663 = vmul.f32 %v4639, %v4655
        %v4664 = vmul.f32 %v4644, %v4660
        %4666 = vset.pattern.permute.xlu0 0
        %4667 = vperm.xlu0 %4666, %v3535
        %v4668 = vpop.permute.xlu0 %4667
        %4671 = vset.pattern.permute.xlu0 0
        %4672 = vperm.xlu0 %4671, %v3536
        %v4673 = vpop.permute.xlu0 %4672
        %4676 = vset.pattern.permute.xlu0 0
        %4677 = vperm.xlu0 %4676, %v3537
        %v4678 = vpop.permute.xlu0 %4677
        %v4680 = vadd.f32 %v4662, %v4668
        %v4681 = vadd.f32 %v4663, %v4673
        %v4682 = vadd.f32 %v4664, %v4678
        %vm4683 = vcmp.gt.f32.partialorder %v4680, 0.0
        %vm4684 = vcmp.gt.f32.partialorder %v4681, 0.0
        %vm4685 = vcmp.gt.f32.partialorder %v4682, 0.0
        %v4686 = vmin.f32 %v4680, 0.0
        %v4687 = vmin.f32 %v4681, 0.0
        %v4688 = vmin.f32 %v4682, 0.0
        %v4689 = vmul.f32 %v4686, 1.442695
        %v4690 = vpow.pop %v4689
        %v4691 = vmul.f32 %v4687, 1.442695
        %v4692 = vpow.pop %v4691
        %v4693 = vmul.f32 %v4688, 1.442695
        %v4694 = vpow.pop %v4693
        %v4695 = vsub.f32 %v4690, 1.0
        %v4696 = vsub.f32 %v4692, 1.0
        %v4697 = vsub.f32 %v4694, 1.0
        %v4698 = vsel %vm4683, %v4680, %v4695
        %v4699 = vsel %vm4684, %v4681, %v4696
        %v4700 = vsel %vm4685, %v4682, %v4697
        %v4701 = vld [vmem:[%s10] sm:$0xff]
        %v4702 = vld [vmem:[%s10 + $0x8] sm:$0xff]
        %v4703 = vld [vmem:[%s10 + $0x10] sm:$0xff]
        %v4704 = vld [vmem:[%s10 + $0x18] sm:$0xff]
        %v4705 = vld [vmem:[%s10 + $0x20] sm:$0xff]
        %v4706 = vld [vmem:[%s10 + $0x28] sm:$0xff]
        %v4707 = vld [vmem:[%s10 + $0x30] sm:$0xf]
        %v4708 = vld [vmem:[%s10 + $0x38] sm:$0xf]
        %v4709 = vld [vmem:[%s10 + $0x40] sm:$0xf]
        %v4710 = vld [vmem:[%s10 + $0x48] sm:$0xf]
        %v4711 = vld [vmem:[%s10 + $0x50] sm:$0xf]
        %v4712 = vld [vmem:[%s10 + $0x58] sm:$0xf]
        %v4713 = vld [vmem:[%s11] sm:$0xff]
        %v4714 = vld [vmem:[%s11 + $0x8] sm:$0xf]
        %v4715 = vld [vmem:[%s12] sm:$0xff]
        %v4716 = vld [vmem:[%s12 + $0x8] sm:$0xf]
        %4720 = vrot.lane.b32.xlu0 %v4698, 15
        %v4721 = vpop.permute.xlu0 %4720
        %4722 = vrot.lane.b32.xlu0 %v4699, 15
        %v4723 = vpop.permute.xlu0 %4722
        %4724 = vrot.lane.b32.xlu0 %v4700, 15
        %v4725 = vpop.permute.xlu0 %4724
        %v4729 = vsel %vm3562, 0.0, %v4721
        %v4730 = vsel %vm3562, 0.0, %v4723
        %v4731 = vsel %vm3562, 0.0, %v4725
        %v4732 = vsel %vm3569, %v4729, 0.0
        %v4733 = vsel %vm3569, %v4730, 0.0
        %v4734 = vsel %vm3569, %v4731, 0.0
        %4738 = vrot.lane.b32.xlu0 %v4732, 127
        %v4739 = vpop.permute.xlu0 %4738
        %4740 = vrot.lane.b32.xlu0 %v4733, 127
        %v4741 = vpop.permute.xlu0 %4740
        %4742 = vrot.lane.b32.xlu0 %v4734, 127
        %v4743 = vpop.permute.xlu0 %4742
        %4747 = vrot.lane.b32.xlu0 %v4732, 126
        %v4748 = vpop.permute.xlu0 %4747
        %4749 = vrot.lane.b32.xlu0 %v4733, 126
        %v4750 = vpop.permute.xlu0 %4749
        %4751 = vrot.lane.b32.xlu0 %v4734, 126
        %v4752 = vpop.permute.xlu0 %4751
        %4756 = vrot.lane.b32.xlu0 %v4732, 125
        %v4757 = vpop.permute.xlu0 %4756
        %4758 = vrot.lane.b32.xlu0 %v4733, 125
        %v4759 = vpop.permute.xlu0 %4758
        %4760 = vrot.lane.b32.xlu0 %v4734, 125
        %v4761 = vpop.permute.xlu0 %4760
        %4765 = vrot.lane.b32.xlu0 %v4732, 124
        %v4766 = vpop.permute.xlu0 %4765
        %4767 = vrot.lane.b32.xlu0 %v4733, 124
        %v4768 = vpop.permute.xlu0 %4767
        %4769 = vrot.lane.b32.xlu0 %v4734, 124
        %v4770 = vpop.permute.xlu0 %4769
        %4774 = vrot.lane.b32.xlu0 %v4732, 123
        %v4775 = vpop.permute.xlu0 %4774
        %4776 = vrot.lane.b32.xlu0 %v4733, 123
        %v4777 = vpop.permute.xlu0 %4776
        %4778 = vrot.lane.b32.xlu0 %v4734, 123
        %v4779 = vpop.permute.xlu0 %4778
        %4783 = vrot.lane.b32.xlu0 %v4732, 122
        %v4784 = vpop.permute.xlu0 %4783
        %4785 = vrot.lane.b32.xlu0 %v4733, 122
        %v4786 = vpop.permute.xlu0 %4785
        %4787 = vrot.lane.b32.xlu0 %v4734, 122
        %v4788 = vpop.permute.xlu0 %4787
        %4792 = vrot.lane.b32.xlu0 %v4732, 121
        %v4793 = vpop.permute.xlu0 %4792
        %4794 = vrot.lane.b32.xlu0 %v4733, 121
        %v4795 = vpop.permute.xlu0 %4794
        %4796 = vrot.lane.b32.xlu0 %v4734, 121
        %v4797 = vpop.permute.xlu0 %4796
        %4801 = vrot.lane.b32.xlu0 %v4732, 120
        %v4802 = vpop.permute.xlu0 %4801
        %4803 = vrot.lane.b32.xlu0 %v4733, 120
        %v4804 = vpop.permute.xlu0 %4803
        %4805 = vrot.lane.b32.xlu0 %v4734, 120
        %v4806 = vpop.permute.xlu0 %4805
        %4810 = vrot.lane.b32.xlu0 %v4732, 119
        %v4811 = vpop.permute.xlu0 %4810
        %4812 = vrot.lane.b32.xlu0 %v4733, 119
        %v4813 = vpop.permute.xlu0 %4812
        %4814 = vrot.lane.b32.xlu0 %v4734, 119
        %v4815 = vpop.permute.xlu0 %4814
        %4819 = vrot.lane.b32.xlu0 %v4732, 118
        %v4820 = vpop.permute.xlu0 %4819
        %4821 = vrot.lane.b32.xlu0 %v4733, 118
        %v4822 = vpop.permute.xlu0 %4821
        %4823 = vrot.lane.b32.xlu0 %v4734, 118
        %v4824 = vpop.permute.xlu0 %4823
        %4828 = vrot.lane.b32.xlu0 %v4732, 117
        %v4829 = vpop.permute.xlu0 %4828
        %4830 = vrot.lane.b32.xlu0 %v4733, 117
        %v4831 = vpop.permute.xlu0 %4830
        %4832 = vrot.lane.b32.xlu0 %v4734, 117
        %v4833 = vpop.permute.xlu0 %4832
        %4837 = vrot.lane.b32.xlu0 %v4732, 116
        %v4838 = vpop.permute.xlu0 %4837
        %4839 = vrot.lane.b32.xlu0 %v4733, 116
        %v4840 = vpop.permute.xlu0 %4839
        %4841 = vrot.lane.b32.xlu0 %v4734, 116
        %v4842 = vpop.permute.xlu0 %4841
        %4846 = vrot.lane.b32.xlu0 %v4732, 115
        %v4847 = vpop.permute.xlu0 %4846
        %4848 = vrot.lane.b32.xlu0 %v4733, 115
        %v4849 = vpop.permute.xlu0 %4848
        %4850 = vrot.lane.b32.xlu0 %v4734, 115
        %v4851 = vpop.permute.xlu0 %4850
        %4855 = vrot.lane.b32.xlu0 %v4732, 114
        %v4856 = vpop.permute.xlu0 %4855
        %4857 = vrot.lane.b32.xlu0 %v4733, 114
        %v4858 = vpop.permute.xlu0 %4857
        %4859 = vrot.lane.b32.xlu0 %v4734, 114
        %v4860 = vpop.permute.xlu0 %4859
        %4864 = vrot.lane.b32.xlu0 %v4732, 113
        %v4865 = vpop.permute.xlu0 %4864
        %4866 = vrot.lane.b32.xlu0 %v4733, 113
        %v4867 = vpop.permute.xlu0 %4866
        %4868 = vrot.lane.b32.xlu0 %v4734, 113
        %v4869 = vpop.permute.xlu0 %4868
        %v4873 = vsel %vm3569, %v4847, %v3854
        %v4874 = vsel %vm3569, %v4849, %v3854
        %v4875 = vsel %vm3569, %v4851, %v3854
        %v4876 = vsel %vm3863, %v4856, %v3862
        %v4877 = vsel %vm3863, %v4858, %v3862
        %v4878 = vsel %vm3863, %v4860, %v3862
        %v4879 = vsel %vm3872, %v4865, %v3871
        %v4880 = vsel %vm3872, %v4867, %v3871
        %v4881 = vsel %vm3872, %v4869, %v3871
        %4882 = vrot.lane.b32.xlu0 %v4732, 112
        %v4883 = vpop.permute.xlu0 %4882
        %4884 = vrot.lane.b32.xlu0 %v4733, 112
        %v4885 = vpop.permute.xlu0 %4884
        %4886 = vrot.lane.b32.xlu0 %v4734, 112
        %v4887 = vpop.permute.xlu0 %4886
        %4888 = vrot.lane.b32.xlu0 %v4739, 112
        %v4889 = vpop.permute.xlu0 %4888
        %4890 = vrot.lane.b32.xlu0 %v4741, 112
        %v4891 = vpop.permute.xlu0 %4890
        %4892 = vrot.lane.b32.xlu0 %v4743, 112
        %v4893 = vpop.permute.xlu0 %4892
        %4894 = vrot.lane.b32.xlu0 %v4748, 112
        %v4895 = vpop.permute.xlu0 %4894
        %4896 = vrot.lane.b32.xlu0 %v4750, 112
        %v4897 = vpop.permute.xlu0 %4896
        %4898 = vrot.lane.b32.xlu0 %v4752, 112
        %v4899 = vpop.permute.xlu0 %4898
        %4900 = vrot.lane.b32.xlu0 %v4757, 112
        %v4901 = vpop.permute.xlu0 %4900
        %4902 = vrot.lane.b32.xlu0 %v4759, 112
        %v4903 = vpop.permute.xlu0 %4902
        %4904 = vrot.lane.b32.xlu0 %v4761, 112
        %v4905 = vpop.permute.xlu0 %4904
        %4906 = vrot.lane.b32.xlu0 %v4766, 112
        %v4907 = vpop.permute.xlu0 %4906
        %4908 = vrot.lane.b32.xlu0 %v4768, 112
        %v4909 = vpop.permute.xlu0 %4908
        %4910 = vrot.lane.b32.xlu0 %v4770, 112
        %v4911 = vpop.permute.xlu0 %4910
        %4912 = vrot.lane.b32.xlu0 %v4775, 112
        %v4913 = vpop.permute.xlu0 %4912
        %4914 = vrot.lane.b32.xlu0 %v4777, 112
        %v4915 = vpop.permute.xlu0 %4914
        %4916 = vrot.lane.b32.xlu0 %v4779, 112
        %v4917 = vpop.permute.xlu0 %4916
        %4918 = vrot.lane.b32.xlu0 %v4784, 112
        %v4919 = vpop.permute.xlu0 %4918
        %4920 = vrot.lane.b32.xlu0 %v4786, 112
        %v4921 = vpop.permute.xlu0 %4920
        %4922 = vrot.lane.b32.xlu0 %v4788, 112
        %v4923 = vpop.permute.xlu0 %4922
        %4924 = vrot.lane.b32.xlu0 %v4793, 112
        %v4925 = vpop.permute.xlu0 %4924
        %4926 = vrot.lane.b32.xlu0 %v4795, 112
        %v4927 = vpop.permute.xlu0 %4926
        %4928 = vrot.lane.b32.xlu0 %v4797, 112
        %v4929 = vpop.permute.xlu0 %4928
        %4930 = vrot.lane.b32.xlu0 %v4802, 112
        %v4931 = vpop.permute.xlu0 %4930
        %4932 = vrot.lane.b32.xlu0 %v4804, 112
        %v4933 = vpop.permute.xlu0 %4932
        %4934 = vrot.lane.b32.xlu0 %v4806, 112
        %v4935 = vpop.permute.xlu0 %4934
        %4936 = vrot.lane.b32.xlu0 %v4811, 112
        %v4937 = vpop.permute.xlu0 %4936
        %4938 = vrot.lane.b32.xlu0 %v4813, 112
        %v4939 = vpop.permute.xlu0 %4938
        %4940 = vrot.lane.b32.xlu0 %v4815, 112
        %v4941 = vpop.permute.xlu0 %4940
        %4942 = vrot.lane.b32.xlu0 %v4820, 112
        %v4943 = vpop.permute.xlu0 %4942
        %4944 = vrot.lane.b32.xlu0 %v4822, 112
        %v4945 = vpop.permute.xlu0 %4944
        %4946 = vrot.lane.b32.xlu0 %v4824, 112
        %v4947 = vpop.permute.xlu0 %4946
        %4948 = vrot.lane.b32.xlu0 %v4829, 112
        %v4949 = vpop.permute.xlu0 %4948
        %4950 = vrot.lane.b32.xlu0 %v4831, 112
        %v4951 = vpop.permute.xlu0 %4950
        %4952 = vrot.lane.b32.xlu0 %v4833, 112
        %v4953 = vpop.permute.xlu0 %4952
        %4954 = vrot.lane.b32.xlu0 %v4838, 112
        %v4955 = vpop.permute.xlu0 %4954
        %4956 = vrot.lane.b32.xlu0 %v4840, 112
        %v4957 = vpop.permute.xlu0 %4956
        %4958 = vrot.lane.b32.xlu0 %v4842, 112
        %v4959 = vpop.permute.xlu0 %4958
        %4960 = vrot.lane.b32.xlu0 %v4873, 112
        %v4961 = vpop.permute.xlu0 %4960
        %4962 = vrot.lane.b32.xlu0 %v4874, 112
        %v4963 = vpop.permute.xlu0 %4962
        %4964 = vrot.lane.b32.xlu0 %v4875, 112
        %v4965 = vpop.permute.xlu0 %4964
        %4966 = vrot.lane.b32.xlu0 %v4876, 112
        %v4967 = vpop.permute.xlu0 %4966
        %4968 = vrot.lane.b32.xlu0 %v4877, 112
        %v4969 = vpop.permute.xlu0 %4968
        %4970 = vrot.lane.b32.xlu0 %v4878, 112
        %v4971 = vpop.permute.xlu0 %4970
        %4972 = vrot.lane.b32.xlu0 %v4879, 112
        %v4973 = vpop.permute.xlu0 %4972
        %4974 = vrot.lane.b32.xlu0 %v4880, 112
        %v4975 = vpop.permute.xlu0 %4974
        %4976 = vrot.lane.b32.xlu0 %v4881, 112
        %v4977 = vpop.permute.xlu0 %4976
        %5026 = vmatprep.subr.mxu0 0.0
        %5027 = vmatpush1.msra.mxu0 %v4775
        %5028 = vmatprep.subr.mxu0 0.0
        %5029 = vmatpush1.msra.mxu0 %v4770
        %5030 = vmatprep.subr.mxu0 0.0
        %5031 = vmatpush1.msra.mxu0 %v4768
        %5032 = vmatprep.subr.mxu0 0.0
        %5033 = vmatpush1.msra.mxu0 %v4766
        %5034 = vmatprep.subr.mxu0 0.0
        %5035 = vmatpush1.msra.mxu0 %v4761
        %5036 = vmatprep.subr.mxu0 0.0
        %5037 = vmatpush1.msra.mxu0 %v4759
        %5038 = vmatprep.subr.mxu0 0.0
        %5039 = vmatpush1.msra.mxu0 %v4757
        %5040 = vmatprep.subr.mxu0 0.0
        %5041 = vmatpush1.msra.mxu0 %v4752
        %5042 = vmatprep.subr.mxu0 0.0
        %5043 = vmatpush1.msra.mxu0 %v4750
        %5044 = vmatprep.subr.mxu0 0.0
        %5045 = vmatpush1.msra.mxu0 %v4748
        %5046 = vmatprep.subr.mxu0 0.0
        %5047 = vmatpush1.msra.mxu0 %v4743
        %5048 = vmatprep.subr.mxu0 0.0
        %5049 = vmatpush1.msra.mxu0 %v4741
        %5050 = vmatprep.subr.mxu0 0.0
        %5051 = vmatpush1.msra.mxu0 %v4739
        %5052 = vmatprep.subr.mxu0 0.0
        %5053 = vmatpush1.msra.mxu0 %v4734
        %5054 = vmatprep.subr.mxu0 0.0
        %5055 = vmatpush1.msra.mxu0 %v4733
        %5056 = vmatprep.subr.mxu0 0.0
        %5057 = vmatpush1.msra.mxu0 %v4732
        %5058 = vmatprep.subr.mxu0 0.0
        %5059 = vmatpush2.msra.mxu0 %v4822
        %5060 = vmatprep.subr.mxu0 0.0
        %5061 = vmatpush2.msra.mxu0 %v4820
        %5062 = vmatprep.subr.mxu0 0.0
        %5063 = vmatpush2.msra.mxu0 %v4815
        %5064 = vmatprep.subr.mxu0 0.0
        %5065 = vmatpush2.msra.mxu0 %v4813
        %5066 = vmatprep.subr.mxu0 0.0
        %5067 = vmatpush2.msra.mxu0 %v4811
        %5068 = vmatprep.subr.mxu0 0.0
        %5069 = vmatpush2.msra.mxu0 %v4806
        %5070 = vmatprep.subr.mxu0 0.0
        %5071 = vmatpush2.msra.mxu0 %v4804
        %5072 = vmatprep.subr.mxu0 0.0
        %5073 = vmatpush2.msra.mxu0 %v4802
        %5074 = vmatprep.subr.mxu0 0.0
        %5075 = vmatpush2.msra.mxu0 %v4797
        %5076 = vmatprep.subr.mxu0 0.0
        %5077 = vmatpush2.msra.mxu0 %v4795
        %5078 = vmatprep.subr.mxu0 0.0
        %5079 = vmatpush2.msra.mxu0 %v4793
        %5080 = vmatprep.subr.mxu0 0.0
        %5081 = vmatpush2.msra.mxu0 %v4788
        %5082 = vmatprep.subr.mxu0 0.0
        %5083 = vmatpush2.msra.mxu0 %v4786
        %5084 = vmatprep.subr.mxu0 0.0
        %5085 = vmatpush2.msra.mxu0 %v4784
        %5086 = vmatprep.subr.mxu0 0.0
        %5087 = vmatpush2.msra.mxu0 %v4779
        %5088 = vmatprep.subr.mxu0 0.0
        %5089 = vmatpush2.msra.mxu0 %v4777
        %5090 = vmatprep.mubr.f32.mxu0 %v4702
        %5091 = vmatmul.mubr.f32.gmra.mxu0 %v4701
        %v5092 = vpop.f32.mrf.mxu0
        %v5093 = vadd.f32 0.0, %v5092
        %v5094 = vpop.f32.mrf.mxu0
        %5095 = vmatprep.mubr.f32.mxu0 %v4708
        %5096 = vmatmul.mubr.f32.gmra.mxu0 %v4707
        %v5097 = vpop.f32.mrf.mxu0
        %v5098 = vadd.f32 0.0, %v5097
        %v5099 = vpop.f32.mrf.mxu0
        %5100 = vdwg.mxu0
        %5101 = vmatprep.subr.mxu0 0.0
        %5102 = vmatpush1.msra.mxu0 %v4869
        %5103 = vmatprep.subr.mxu0 0.0
        %5104 = vmatpush1.msra.mxu0 %v4867
        %5105 = vmatprep.subr.mxu0 0.0
        %5106 = vmatpush1.msra.mxu0 %v4865
        %5107 = vmatprep.subr.mxu0 0.0
        %5108 = vmatpush1.msra.mxu0 %v4860
        %5109 = vmatprep.subr.mxu0 0.0
        %5110 = vmatpush1.msra.mxu0 %v4858
        %5111 = vmatprep.subr.mxu0 0.0
        %5112 = vmatpush1.msra.mxu0 %v4856
        %5113 = vmatprep.subr.mxu0 0.0
        %5114 = vmatpush1.msra.mxu0 %v4851
        %5115 = vmatprep.subr.mxu0 0.0
        %5116 = vmatpush1.msra.mxu0 %v4849
        %5117 = vmatprep.subr.mxu0 0.0
        %5118 = vmatpush1.msra.mxu0 %v4847
        %5119 = vmatprep.subr.mxu0 0.0
        %5120 = vmatpush1.msra.mxu0 %v4842
        %5121 = vmatprep.subr.mxu0 0.0
        %5122 = vmatpush1.msra.mxu0 %v4840
        %5123 = vmatprep.subr.mxu0 0.0
        %5124 = vmatpush1.msra.mxu0 %v4838
        %5125 = vmatprep.subr.mxu0 0.0
        %5126 = vmatpush1.msra.mxu0 %v4833
        %5127 = vmatprep.subr.mxu0 0.0
        %5128 = vmatpush1.msra.mxu0 %v4831
        %5129 = vmatprep.subr.mxu0 0.0
        %5130 = vmatpush1.msra.mxu0 %v4829
        %5131 = vmatprep.subr.mxu0 0.0
        %5132 = vmatpush1.msra.mxu0 %v4824
        %5133 = vmatprep.subr.mxu0 0.0
        %5134 = vmatpush2.msra.mxu0 %v4913
        %5135 = vmatprep.subr.mxu0 0.0
        %5136 = vmatpush2.msra.mxu0 %v4911
        %5137 = vmatprep.subr.mxu0 0.0
        %5138 = vmatpush2.msra.mxu0 %v4909
        %5139 = vmatprep.subr.mxu0 0.0
        %5140 = vmatpush2.msra.mxu0 %v4907
        %5141 = vmatprep.subr.mxu0 0.0
        %5142 = vmatpush2.msra.mxu0 %v4905
        %5143 = vmatprep.subr.mxu0 0.0
        %5144 = vmatpush2.msra.mxu0 %v4903
        %5145 = vmatprep.subr.mxu0 0.0
        %5146 = vmatpush2.msra.mxu0 %v4901
        %5147 = vmatprep.subr.mxu0 0.0
        %5148 = vmatpush2.msra.mxu0 %v4899
        %5149 = vmatprep.subr.mxu0 0.0
        %5150 = vmatpush2.msra.mxu0 %v4897
        %5151 = vmatprep.subr.mxu0 0.0
        %5152 = vmatpush2.msra.mxu0 %v4895
        %5153 = vmatprep.subr.mxu0 0.0
        %5154 = vmatpush2.msra.mxu0 %v4893
        %5155 = vmatprep.subr.mxu0 0.0
        %5156 = vmatpush2.msra.mxu0 %v4891
        %5157 = vmatprep.subr.mxu0 0.0
        %5158 = vmatpush2.msra.mxu0 %v4889
        %5159 = vmatprep.subr.mxu0 0.0
        %5160 = vmatpush2.msra.mxu0 %v4887
        %5161 = vmatprep.subr.mxu0 0.0
        %5162 = vmatpush2.msra.mxu0 %v4885
        %5163 = vmatprep.subr.mxu0 0.0
        %5164 = vmatpush2.msra.mxu0 %v4883
        %5165 = vmatprep.mubr.f32.mxu0 %v4704
        %5166 = vmatmul.mubr.f32.gmra.mxu0 %v4703
        %v5167 = vpop.f32.mrf.mxu0
        %v5168 = vadd.f32 %v5093, %v5167
        %v5169 = vpop.f32.mrf.mxu0
        %5170 = vmatprep.mubr.f32.mxu0 %v4710
        %5171 = vmatmul.mubr.f32.gmra.mxu0 %v4709
        %v5172 = vpop.f32.mrf.mxu0
        %v5173 = vadd.f32 %v5098, %v5172
        %v5174 = vpop.f32.mrf.mxu0
        %5175 = vdwg.mxu0
        %5176 = vmatprep.subr.mxu0 0.0
        %5177 = vmatpush1.msra.mxu0 %v4945
        %5178 = vmatprep.subr.mxu0 0.0
        %5179 = vmatpush1.msra.mxu0 %v4943
        %5180 = vmatprep.subr.mxu0 0.0
        %5181 = vmatpush1.msra.mxu0 %v4941
        %5182 = vmatprep.subr.mxu0 0.0
        %5183 = vmatpush1.msra.mxu0 %v4939
        %5184 = vmatprep.subr.mxu0 0.0
        %5185 = vmatpush1.msra.mxu0 %v4937
        %5186 = vmatprep.subr.mxu0 0.0
        %5187 = vmatpush1.msra.mxu0 %v4935
        %5188 = vmatprep.subr.mxu0 0.0
        %5189 = vmatpush1.msra.mxu0 %v4933
        %5190 = vmatprep.subr.mxu0 0.0
        %5191 = vmatpush1.msra.mxu0 %v4931
        %5192 = vmatprep.subr.mxu0 0.0
        %5193 = vmatpush1.msra.mxu0 %v4929
        %5194 = vmatprep.subr.mxu0 0.0
        %5195 = vmatpush1.msra.mxu0 %v4927
        %5196 = vmatprep.subr.mxu0 0.0
        %5197 = vmatpush1.msra.mxu0 %v4925
        %5198 = vmatprep.subr.mxu0 0.0
        %5199 = vmatpush1.msra.mxu0 %v4923
        %5200 = vmatprep.subr.mxu0 0.0
        %5201 = vmatpush1.msra.mxu0 %v4921
        %5202 = vmatprep.subr.mxu0 0.0
        %5203 = vmatpush1.msra.mxu0 %v4919
        %5204 = vmatprep.subr.mxu0 0.0
        %5205 = vmatpush1.msra.mxu0 %v4917
        %5206 = vmatprep.subr.mxu0 0.0
        %5207 = vmatpush1.msra.mxu0 %v4915
        %5208 = vmatprep.subr.mxu0 0.0
        %5209 = vmatpush2.msra.mxu0 %v4977
        %5210 = vmatprep.subr.mxu0 0.0
        %5211 = vmatpush2.msra.mxu0 %v4975
        %5212 = vmatprep.subr.mxu0 0.0
        %5213 = vmatpush2.msra.mxu0 %v4973
        %5214 = vmatprep.subr.mxu0 0.0
        %5215 = vmatpush2.msra.mxu0 %v4971
        %5216 = vmatprep.subr.mxu0 0.0
        %5217 = vmatpush2.msra.mxu0 %v4969
        %5218 = vmatprep.subr.mxu0 0.0
        %5219 = vmatpush2.msra.mxu0 %v4967
        %5220 = vmatprep.subr.mxu0 0.0
        %5221 = vmatpush2.msra.mxu0 %v4965
        %5222 = vmatprep.subr.mxu0 0.0
        %5223 = vmatpush2.msra.mxu0 %v4963
        %5224 = vmatprep.subr.mxu0 0.0
        %5225 = vmatpush2.msra.mxu0 %v4961
        %5226 = vmatprep.subr.mxu0 0.0
        %5227 = vmatpush2.msra.mxu0 %v4959
        %5228 = vmatprep.subr.mxu0 0.0
        %5229 = vmatpush2.msra.mxu0 %v4957
        %5230 = vmatprep.subr.mxu0 0.0
        %5231 = vmatpush2.msra.mxu0 %v4955
        %5232 = vmatprep.subr.mxu0 0.0
        %5233 = vmatpush2.msra.mxu0 %v4953
        %5234 = vmatprep.subr.mxu0 0.0
        %5235 = vmatpush2.msra.mxu0 %v4951
        %5236 = vmatprep.subr.mxu0 0.0
        %5237 = vmatpush2.msra.mxu0 %v4949
        %5238 = vmatprep.subr.mxu0 0.0
        %5239 = vmatpush2.msra.mxu0 %v4947
        %5240 = vmatprep.mubr.f32.mxu0 %v4706
        %5241 = vmatmul.mubr.f32.gmra.mxu0 %v4705
        %v5242 = vpop.f32.mrf.mxu0
        %v5243 = vadd.f32 %v5168, %v5242
        %v5244 = vpop.f32.mrf.mxu0
        %5245 = vmatprep.mubr.f32.mxu0 %v4712
        %5246 = vmatmul.mubr.f32.gmra.mxu0 %v4711
        %v5247 = vpop.f32.mrf.mxu0
        %v5248 = vadd.f32 %v5173, %v5247
        %v5249 = vpop.f32.mrf.mxu0
        %5250 = vdwg.mxu0
        %5252 = vset.pattern.permute.xlu0 0
        %5253 = vperm.xlu0 %5252, %v4713
        %v5254 = vpop.permute.xlu0 %5253
        %5257 = vset.pattern.permute.xlu0 0
        %5258 = vperm.xlu0 %5257, %v4714
        %v5259 = vpop.permute.xlu0 %5258
        %v5261 = vmul.f32 %v5243, %v5254
        %v5262 = vmul.f32 %v5248, %v5259
        %5264 = vset.pattern.permute.xlu0 0
        %5265 = vperm.xlu0 %5264, %v4715
        %v5266 = vpop.permute.xlu0 %5265
        %5269 = vset.pattern.permute.xlu0 0
        %5270 = vperm.xlu0 %5269, %v4716
        %v5271 = vpop.permute.xlu0 %5270
        %v5273 = vadd.f32 %v5261, %v5266
        %v5274 = vadd.f32 %v5262, %v5271
        %vm5275 = vcmp.gt.f32.partialorder %v5273, 0.0
        %vm5276 = vcmp.gt.f32.partialorder %v5274, 0.0
        %v5277 = vmin.f32 %v5273, 0.0
        %v5278 = vmin.f32 %v5274, 0.0
        %v5279 = vmul.f32 %v5277, 1.442695
        %v5280 = vpow.pop %v5279
        %v5281 = vmul.f32 %v5278, 1.442695
        %v5282 = vpow.pop %v5281
        %v5283 = vsub.f32 %v5280, 1.0
        %v5284 = vsub.f32 %v5282, 1.0
        %v5285 = vsel %vm5275, %v5273, %v5283
        %v5286 = vsel %vm5276, %v5274, %v5284
        %v5287 = vld [vmem:[%s13] sm:$0x3f]
        %v5288 = vld [vmem:[%s13 + $0x8] sm:$0x3f]
        %v5289 = vld [vmem:[%s14] sm:$0x3f]
        %v5290 = vld [vmem:[%s15] sm:$0x3f]
        %5293 = vrot.lane.b32.xlu0 %v5285, 7
        %v5294 = vpop.permute.xlu0 %5293
        %5295 = vrot.lane.b32.xlu0 %v5286, 7
        %v5296 = vpop.permute.xlu0 %5295
        %vm5299 = vcmask 56320
        %v5300 = vsel %vm5299, 0.0, %v5294
        %v5301 = vsel %vm5299, 0.0, %v5296
        %vm5302 = vcmask 875520
        %v5303 = vsel %vm5302, %v5300, 0.0
        %v5304 = vsel %vm5302, %v5301, 0.0
        %v5307 = vrot.slane %v5303, 4
        %v5308 = vrot.slane %v5304, 4
        %v5309 = vsel %vm891, %v5307, %v5308
        %5310 = vrot.lane.b32.xlu0 %v5307, 127
        %v5311 = vpop.permute.xlu0 %5310
        %5312 = vrot.lane.b32.xlu0 %v5309, 127
        %v5313 = vpop.permute.xlu0 %5312
        %5316 = vrot.lane.b32.xlu0 %v5303, 126
        %v5317 = vpop.permute.xlu0 %5316
        %5318 = vrot.lane.b32.xlu0 %v5304, 126
        %v5319 = vpop.permute.xlu0 %5318
        %5322 = vrot.lane.b32.xlu0 %v5307, 125
        %v5323 = vpop.permute.xlu0 %5322
        %5324 = vrot.lane.b32.xlu0 %v5309, 125
        %v5325 = vpop.permute.xlu0 %5324
        %5328 = vrot.lane.b32.xlu0 %v5303, 124
        %v5329 = vpop.permute.xlu0 %5328
        %5330 = vrot.lane.b32.xlu0 %v5304, 124
        %v5331 = vpop.permute.xlu0 %5330
        %5334 = vrot.lane.b32.xlu0 %v5307, 123
        %v5335 = vpop.permute.xlu0 %5334
        %5336 = vrot.lane.b32.xlu0 %v5309, 123
        %v5337 = vpop.permute.xlu0 %5336
        %5340 = vrot.lane.b32.xlu0 %v5303, 122
        %v5341 = vpop.permute.xlu0 %5340
        %5342 = vrot.lane.b32.xlu0 %v5304, 122
        %v5343 = vpop.permute.xlu0 %5342
        %5346 = vrot.lane.b32.xlu0 %v5307, 121
        %v5347 = vpop.permute.xlu0 %5346
        %5348 = vrot.lane.b32.xlu0 %v5309, 121
        %v5349 = vpop.permute.xlu0 %5348
        %5352 = vrot.lane.b32.xlu0 %v5303, 120
        %v5353 = vpop.permute.xlu0 %5352
        %5354 = vrot.lane.b32.xlu0 %v5304, 120
        %v5355 = vpop.permute.xlu0 %5354
        %5358 = vrot.lane.b32.xlu0 %v5307, 119
        %v5359 = vpop.permute.xlu0 %5358
        %5360 = vrot.lane.b32.xlu0 %v5309, 119
        %v5361 = vpop.permute.xlu0 %5360
        %5364 = vrot.lane.b32.xlu0 %v5303, 118
        %v5365 = vpop.permute.xlu0 %5364
        %5366 = vrot.lane.b32.xlu0 %v5304, 118
        %v5367 = vpop.permute.xlu0 %5366
        %5370 = vrot.lane.b32.xlu0 %v5307, 117
        %v5371 = vpop.permute.xlu0 %5370
        %5372 = vrot.lane.b32.xlu0 %v5309, 117
        %v5373 = vpop.permute.xlu0 %5372
        %5376 = vrot.lane.b32.xlu0 %v5303, 116
        %v5377 = vpop.permute.xlu0 %5376
        %5378 = vrot.lane.b32.xlu0 %v5304, 116
        %v5379 = vpop.permute.xlu0 %5378
        %5382 = vrot.lane.b32.xlu0 %v5307, 115
        %v5383 = vpop.permute.xlu0 %5382
        %5384 = vrot.lane.b32.xlu0 %v5309, 115
        %v5385 = vpop.permute.xlu0 %5384
        %5388 = vrot.lane.b32.xlu0 %v5303, 114
        %v5389 = vpop.permute.xlu0 %5388
        %5390 = vrot.lane.b32.xlu0 %v5304, 114
        %v5391 = vpop.permute.xlu0 %5390
        %5394 = vrot.lane.b32.xlu0 %v5307, 113
        %v5395 = vpop.permute.xlu0 %5394
        %5396 = vrot.lane.b32.xlu0 %v5309, 113
        %v5397 = vpop.permute.xlu0 %5396
        %v5400 = vsel %vm891, %v5304, %v5311
        %v5401 = vsel %vm891, %v5319, %v5323
        %v5402 = vsel %vm891, %v5331, %v5335
        %v5403 = vsel %vm891, %v5343, %v5347
        %v5404 = vsel %vm891, %v5355, %v5359
        %v5405 = vsel %vm891, %v5367, %v5371
        %v5406 = vsel %vm891, %v5379, %v5383
        %v5407 = vsel %vm891, %v5391, %v5395
        %v5409 = vsel %vm2589, %v5288, 0
        %5411 = vmatprep.subr.mxu0 0.0
        %5412 = vmatpush1.msra.mxu0 %v5365
        %5413 = vmatprep.subr.mxu0 0.0
        %5414 = vmatpush1.msra.mxu0 %v5361
        %5415 = vmatprep.subr.mxu0 0.0
        %5416 = vmatpush1.msra.mxu0 %v5404
        %5417 = vmatprep.subr.mxu0 0.0
        %5418 = vmatpush1.msra.mxu0 %v5353
        %5419 = vmatprep.subr.mxu0 0.0
        %5420 = vmatpush1.msra.mxu0 %v5349
        %5421 = vmatprep.subr.mxu0 0.0
        %5422 = vmatpush1.msra.mxu0 %v5403
        %5423 = vmatprep.subr.mxu0 0.0
        %5424 = vmatpush1.msra.mxu0 %v5341
        %5425 = vmatprep.subr.mxu0 0.0
        %5426 = vmatpush1.msra.mxu0 %v5337
        %5427 = vmatprep.subr.mxu0 0.0
        %5428 = vmatpush1.msra.mxu0 %v5402
        %5429 = vmatprep.subr.mxu0 0.0
        %5430 = vmatpush1.msra.mxu0 %v5329
        %5431 = vmatprep.subr.mxu0 0.0
        %5432 = vmatpush1.msra.mxu0 %v5325
        %5433 = vmatprep.subr.mxu0 0.0
        %5434 = vmatpush1.msra.mxu0 %v5401
        %5435 = vmatprep.subr.mxu0 0.0
        %5436 = vmatpush1.msra.mxu0 %v5317
        %5437 = vmatprep.subr.mxu0 0.0
        %5438 = vmatpush1.msra.mxu0 %v5313
        %5439 = vmatprep.subr.mxu0 0.0
        %5440 = vmatpush1.msra.mxu0 %v5400
        %5441 = vmatprep.subr.mxu0 0.0
        %5442 = vmatpush1.msra.mxu0 %v5303
        %5443 = vmatprep.subr.mxu0 0.0
        %5444 = vmatpush2.msra.mxu0 0.0
        %5445 = vmatprep.subr.mxu0 0.0
        %5446 = vmatpush2.msra.mxu0 0.0
        %5447 = vmatprep.subr.mxu0 0.0
        %5448 = vmatpush2.msra.mxu0 0.0
        %5449 = vmatprep.subr.mxu0 0.0
        %5450 = vmatpush2.msra.mxu0 0.0
        %5451 = vmatprep.subr.mxu0 0.0
        %5452 = vmatpush2.msra.mxu0 0.0
        %5453 = vmatprep.subr.mxu0 0.0
        %5454 = vmatpush2.msra.mxu0 0.0
        %5455 = vmatprep.subr.mxu0 0.0
        %5456 = vmatpush2.msra.mxu0 0.0
        %5457 = vmatprep.subr.mxu0 0.0
        %5458 = vmatpush2.msra.mxu0 0.0
        %5459 = vmatprep.subr.mxu0 0.0
        %5460 = vmatpush2.msra.mxu0 %v5397
        %5461 = vmatprep.subr.mxu0 0.0
        %5462 = vmatpush2.msra.mxu0 %v5407
        %5463 = vmatprep.subr.mxu0 0.0
        %5464 = vmatpush2.msra.mxu0 %v5389
        %5465 = vmatprep.subr.mxu0 0.0
        %5466 = vmatpush2.msra.mxu0 %v5385
        %5467 = vmatprep.subr.mxu0 0.0
        %5468 = vmatpush2.msra.mxu0 %v5406
        %5469 = vmatprep.subr.mxu0 0.0
        %5470 = vmatpush2.msra.mxu0 %v5377
        %5471 = vmatprep.subr.mxu0 0.0
        %5472 = vmatpush2.msra.mxu0 %v5373
        %5473 = vmatprep.subr.mxu0 0.0
        %5474 = vmatpush2.msra.mxu0 %v5405
        %5475 = vmatprep.mubr.f32.mxu0 %v5409
        %5476 = vmatmul.mubr.f32.gmra.mxu0 %v5287
        %v5477 = vpop.f32.mrf.mxu0
        %v5478 = vadd.f32 0.0, %v5477
        %v5479 = vpop.f32.mrf.mxu0
        %5480 = vdwg.mxu0
        %5482 = vset.pattern.permute.xlu0 0
        %5483 = vperm.xlu0 %5482, %v5289
        %v5484 = vpop.permute.xlu0 %5483
        %v5486 = vmul.f32 %v5478, %v5484
        %5488 = vset.pattern.permute.xlu0 0
        %5489 = vperm.xlu0 %5488, %v5290
        %v5490 = vpop.permute.xlu0 %5489
        %v5492 = vadd.f32 %v5486, %v5490
        %vm5493 = vcmp.gt.f32.partialorder %v5492, 0.0
        %v5494 = vmin.f32 %v5492, 0.0
        %v5495 = vmul.f32 %v5494, 1.442695
        %v5496 = vpow.pop %v5495
        %v5497 = vsub.f32 %v5496, 1.0
        %v5498 = vsel %vm5493, %v5492, %v5497
        %vm5499 = vcmask 816128
        %5500 = vst.msk [vmem:[%s635] sm:$0x3f] %vm5499, %v5498
        %v5501 = vld [vmem:[%s16] sm:$0x3f]
        %v5502 = vmul.f32 %v5498, %v5501
        %v5503 = vsel %vm5499, %v5502, 0.0
        %5504 = vadd.xlane.f32.xlu0 %v5503
        %v5505 = vpop.xlane.xlu0 %5504
        %v5506 = vsel %vm3042, %v5505, 0.0
        %v5507 = vrot.slane %v5506, 4
        %v5508 = vadd.f32 %v5506, %v5507
        %v5509 = vrot.slane %v5508, 2
        %v5510 = vadd.f32 %v5508, %v5509
        %v5511 = vrot.slane %v5510, 1
        %v5512 = vadd.f32 %v5510, %v5511
        %v5513 = vld [vmem:[#allocation2] sm:$0x1]
        %v5514 = vadd.f32 %v5512, %v5513
        %vm5515 = vcmask 0
        %5516 = vst.msk [vmem:[%s638] sm:$0x1] %vm5515, %v5514
        %p5517 = scmp.lt.s32.totalorder %s35, 1
        %s5518 = scalar_select %p5517, %s35, 1
        %s5519 = smul.addr %s5518, 8
        %s5520 = scalar_lea.vmem %s18, %s5519
        %p5521 = scmp.lt.s32.totalorder %s35, 1
        %s5522 = scalar_select %p5521, %s35, 1
        %s5523 = scalar_lea.vmem %s19, %s5522
        // Predicated region
        $region101: #{eeg_inception_forward.1} parent=91 // pred_check
          %p5524 = pneg %p436
        $region102: #{eeg_inception_forward.1} parent=91 // pred_check_branch
          %5526 = sbr.rel (%p5524) target = $region104
        $region103: #{eeg_inception_forward.1} parent=91 // pred_region
          _
        $region104: #{eeg_inception_forward.1} parent=91 // pred_fallthru
          _
        // Predicated region
        $region105: #{eeg_inception_forward.1} parent=91 // pred_check
          %p5527 = pneg %p462
        $region106: #{eeg_inception_forward.1} parent=91 // pred_check_branch
          %5529 = sbr.rel (%p5527) target = $region108
        $region107: #{eeg_inception_forward.1} parent=91 // pred_region
          _
        $region108: #{eeg_inception_forward.1} parent=91 // pred_fallthru
          _
      $region92: #{eeg_inception_forward.1} parent=5 // pred_fallthru
        _
      %p5530 = scmp.le.s32.totalorder 2, %s30
      // Predicated region
      $region109: #{eeg_inception_forward.1} parent=5 // pred_check
        %p5531 = pneg %p5530
      $region110: #{eeg_inception_forward.1} parent=5 // pred_check_branch
        %5533 = sbr.rel (%p5531) target = $region112
      $region111: #{eeg_inception_forward.1} parent=5 // pred_region
        %s5534 = ssub.s32 %s30, 2
        // Predicated region
        $region113: #{eeg_inception_forward.1} parent=111 // pred_check
          %p5535 = pneg %p442
        $region114: #{eeg_inception_forward.1} parent=111 // pred_check_branch
          %5537 = sbr.rel (%p5535) target = $region116
        $region115: #{eeg_inception_forward.1} parent=111 // pred_region
          %p5538 = scmp.lt.s32.totalorder %s36, 1
          %s5539 = scalar_select %p5538, %s36, 1
          %s5540 = smul.addr %s5539, 8
          %s5541 = scalar_lea.vmem %s18, %s5540
        $region116: #{eeg_inception_forward.1} parent=111 // pred_fallthru
          _
        // Predicated region
        $region117: #{eeg_inception_forward.1} parent=111 // pred_check
          %p5542 = pneg %p468
        $region118: #{eeg_inception_forward.1} parent=111 // pred_check_branch
          %5544 = sbr.rel (%p5542) target = $region120
        $region119: #{eeg_inception_forward.1} parent=111 // pred_region
          %p5545 = scmp.lt.s32.totalorder %s36, 1
          %s5546 = scalar_select %p5545, %s36, 1
          %s5547 = scalar_lea.vmem %s19, %s5546
        $region120: #{eeg_inception_forward.1} parent=111 // pred_fallthru
          _
      $region112: #{eeg_inception_forward.1} parent=5 // pred_fallthru
        _
    $region6: #{eeg_inception_forward.1} parent=1 // loop_footer
      %s34 = sadd.s32 1, %s30
    $region7: #{eeg_inception_forward.1} parent=1 // loop_footer_branch
      %29 = sbr.rel target = $region3
    $region8: #{eeg_inception_forward.1} parent=1 // loop_exit
      _
    %5548 = vsyncpa [#allocation4], 1
    %s5549 = scalar_lea.sflag [#allocation4], 1
    %5550 = vsyncpa %s5549, 1
    %5551 = vsyncpa [#allocation6], 1

</llo_original>
